<compile_context>
chip_gen: v7x
topology: tpu7x:2x2x1
jax: 0.10.0
libtpu: 0.0.40
codegen_flags: <defaults>
</compile_context>

<pallas_src>
import math

import jax
import jax.numpy as jnp
import numpy as np
from jax.experimental import pallas as pl
from jax.experimental.pallas import tpu as pltpu


def _sigmoid(v):
    # sigmoid(x) == 0.5 * tanh(0.5 * x) + 0.5  (single EUP tanh push)
    return 0.5 * jnp.tanh(0.5 * v) + 0.5


def gru_estimator_kernel(x_ref, h0_ref, wih_ref, whh_ref, bx_ref, bhn_ref,
                         fcw_ref, fcb_ref, out_ref, hout_ref, seq_ref, gxs_ref):
    """GRU recurrence + folded flatten/tanh/FC epilogue, fully VMEM-resident.

    Ref shapes (all VMEM):
      x_ref   : (S, Bp, H)  f32   layer-0 input, time-major, batch padded to Bp
      h0_ref  : (L, Bp, H)  f32
      wih_ref : (L, H, 3T)  bf16  gate-tile-padded (r | z | n), pre-transposed
      whh_ref : (L, H, 3T)  bf16
      bx_ref  : (L, 1, 3T)  f32   b_ih with b_hh(r,z) pre-summed, gate-padded
      bhn_ref : (L, 1, H)   f32   b_hh n-gate bias (scaled by r)
      fcw_ref : (S, 1, H)   f32   fc.weight reshaped so flatten order is (t, j)
      fcb_ref : (1, 1)      f32
      out_ref : (Bp, 1)     f32
      hout_ref: (L, Bp, H)  f32
      seq_ref : (S, Bp, H)  f32   scratch: non-final layers' output sequence
      gxs_ref : (S, Bp, 3T) f32   scratch: hoisted input-path gate activations
    """
    S, Bp, H = x_ref.shape
    L = h0_ref.shape[0]
    GT = gxs_ref.shape[-1]
    T = GT // 3                                       # per-gate lane tile (>=128)

    acc = jnp.zeros((Bp, H), jnp.float32)             # folded FC accumulator

    for l in range(L):
        wih_l = wih_ref[l]                            # (H, 3T) bf16
        whh_l = whh_ref[l]                            # (H, 3T) bf16
        bx_l = bx_ref[l]                              # (1, 3T)
        bhn_l = jnp.broadcast_to(bhn_ref[l], (Bp, H))  # hoisted broadcast

        # Input-path matmul hoisted off the recurrence: one MXU op per layer.
        # (S, Bp, H) -> (S*Bp, H) is layout preserving (Bp == 8 f32 sublanes).
        inp = x_ref[...] if l == 0 else seq_ref[...]
        gx_all = jnp.dot(inp.reshape(S * Bp, H).astype(jnp.bfloat16), wih_l,
                         preferred_element_type=jnp.float32) + bx_l   # (S*Bp, 3T)
        # Stage through VMEM so the unrolled t-loop doesn't hold ~24 live vregs.
        for t in range(S):
            gxs_ref[t] = gx_all[t * Bp:(t + 1) * Bp, :]

        h = h0_ref[l]                                 # (Bp, H) f32
        last = (l == L - 1)
        for t in range(S):
            gx = gxs_ref[t]                           # (Bp, 3T)
            # Only MXU op on the serial chain: fused 3-gate hidden matmul (bf16).
            gh = jnp.dot(h.astype(jnp.bfloat16), whh_l,
                         preferred_element_type=jnp.float32)           # (Bp, 3T)
            # r/z gates fused; all slices below are tile-boundary or prefix
            # slices (zero lane rotates).
            rz = _sigmoid(gx[:, :2 * T] + gh[:, :2 * T])
            r = rz[:, :H]
            z = rz[:, T:T + H]
            n = jnp.tanh(gx[:, 2 * T:2 * T + H]
                         + r * (gh[:, 2 * T:2 * T + H] + bhn_l))
            h = n + z * (h - n)                       # == (1-z)*n + z*h
            if last:
                # FC epilogue folded into the recurrence (hides under MXU).
                acc = acc + jnp.tanh(h) * fcw_ref[t]
            else:
                seq_ref[t] = h
        hout_ref[l] = h

    # Dropout p=0.0 -> identity. Single lane reduction + bias at the very end.
    out_ref[...] = jnp.sum(acc, axis=1, keepdims=True) + fcb_ref[...]


def estimator_forward(x, h0, params):
    """Wrapper: packs parameters into kernel-friendly layouts and calls Pallas."""
    B, S, H = x.shape
    L = h0.shape[0]
    n_out = params["fc_b"].shape[0]
    assert n_out == 1, "forward() reshapes fc output to (B, 1) -> n_out must be 1"

    Bp = ((B + 7) // 8) * 8                           # pad batch to sublane tile
    T = ((H + 127) // 128) * 128                      # per-gate lane tile
    GT = 3 * T

    # Glue (plain JAX, outside the kernel): time-major + batch padding.
    x_t = jnp.transpose(x.astype(jnp.float32), (1, 0, 2))        # (S, B, H)
    x_p = jnp.pad(x_t, ((0, 0), (0, Bp - B), (0, 0)))
    h0_p = jnp.pad(h0.astype(jnp.float32), ((0, 0), (0, Bp - B), (0, 0)))

    # Fused gate weights (PyTorch gate order r, z, n), pre-transposed so x @ W,
    # then each gate zero-padded into its own 128-lane tile.
    w_ih_t = jnp.transpose(params["w_ih"], (0, 2, 1)).astype(jnp.float32)  # (L,H,3H)
    w_hh_t = jnp.transpose(params["w_hh"], (0, 2, 1)).astype(jnp.float32)
    b_ih = params["b_ih"].astype(jnp.float32)                              # (L, 3H)
    b_hh = params["b_hh"].astype(jnp.float32)
    # Pre-sum r/z biases (b_ir+b_hr, b_iz+b_hz); keep b_hn separate (scaled by r).
    bx = b_ih.at[:, :2 * H].add(b_hh[:, :2 * H])                           # (L, 3H)

    def pad_gates_w(w):                               # (L, H, 3H) -> (L, H, 3T)
        out = jnp.zeros((L, H, GT), jnp.float32)
        for g in range(3):
            out = out.at[:, :, g * T:g * T + H].set(w[:, :, g * H:(g + 1) * H])
        return out

    def pad_gates_b(b):                               # (L, 3H) -> (L, 1, 3T)
        out = jnp.zeros((L, 1, GT), jnp.float32)
        for g in range(3):
            out = out.at[:, 0, g * T:g * T + H].set(b[:, g * H:(g + 1) * H])
        return out

    wih_p = pad_gates_w(w_ih_t).astype(jnp.bfloat16)
    whh_p = pad_gates_w(w_hh_t).astype(jnp.bfloat16)
    bx_p = pad_gates_b(bx)
    bhn_p = b_hh[:, 2 * H:].reshape(L, 1, H)

    # fc.weight (1, S*H) indexed as [t*H + j] -> (S, 1, H) for transpose-free use.
    fcw = params["fc_w"].reshape(S, H)[:, None, :].astype(jnp.float32)
    fcb = params["fc_b"].reshape(1, 1).astype(jnp.float32)

    vmem = pl.BlockSpec(memory_space=pltpu.MemorySpace.VMEM)
    out_p, hout_p = pl.pallas_call(
        gru_estimator_kernel,
        out_shape=(jax.ShapeDtypeStruct((Bp, 1), jnp.float32),
                   jax.ShapeDtypeStruct((L, Bp, H), jnp.float32)),
        in_specs=[vmem] * 8,
        out_specs=(vmem, vmem),
        scratch_shapes=[pltpu.VMEM((S, Bp, H), jnp.float32),
                        pltpu.VMEM((S, Bp, GT), jnp.float32)],
    )(x_p, h0_p, wih_p, whh_p, bx_p, bhn_p, fcw, fcb)

    return out_p[:B, :], hout_p[:, :B, :]


def estimator_reference(x, h0, params):
    """Pure-JAX reference mirroring torch.nn.GRU + Linear semantics (f32)."""
    B, S, H = x.shape
    L = h0.shape[0]
    seq = x
    h_final = []
    for l in range(L):
        w_ih = params["w_ih"][l]   # (3H, H)
        w_hh = params["w_hh"][l]
        b_ih = params["b_ih"][l]   # (3H,)
        b_hh = params["b_hh"][l]
        h = h0[l]
        outs = []
        for t in range(S):
            xt = seq[:, t, :]
            gx = xt @ w_ih.T + b_ih
            gh = h @ w_hh.T + b_hh
            r = jax.nn.sigmoid(gx[:, :H] + gh[:, :H])
            z = jax.nn.sigmoid(gx[:, H:2 * H] + gh[:, H:2 * H])
            n = jnp.tanh(gx[:, 2 * H:] + r * gh[:, 2 * H:])
            h = (1.0 - z) * n + z * h
            outs.append(h)
        seq = jnp.stack(outs, axis=1)
        h_final.append(h)
    flat = jnp.tanh(seq.reshape(B, S * H))
    out = flat @ params["fc_w"].T + params["fc_b"]
    return out.reshape(B, 1), jnp.stack(h_final, axis=0)


if __name__ == "__main__":
    # Small shapes consistent with the module: GRU variant, n_out must be 1.
    B, S, H, L, N_OUT = 4, 8, 32, 2, 1

    key = jax.random.PRNGKey(0)
    keys = jax.random.split(key, 8)
    std = 1.0 / math.sqrt(H)

    params = {
        "w_ih": jax.random.uniform(keys[0], (L, 3 * H, H), jnp.float32, -std, std),
        "w_hh": jax.random.uniform(keys[1], (L, 3 * H, H), jnp.float32, -std, std),
        "b_ih": jax.random.uniform(keys[2], (L, 3 * H), jnp.float32, -std, std),
        "b_hh": jax.random.uniform(keys[3], (L, 3 * H), jnp.float32, -std, std),
        "fc_w": jax.random.uniform(keys[4], (N_OUT, S * H), jnp.float32,
                                   -1.0 / math.sqrt(S * H), 1.0 / math.sqrt(S * H)),
        "fc_b": jax.random.uniform(keys[5], (N_OUT,), jnp.float32,
                                   -1.0 / math.sqrt(S * H), 1.0 / math.sqrt(S * H)),
    }

    x = jax.random.normal(keys[6], (B, S, H), jnp.float32)
    h0 = jnp.zeros((L, B, H), jnp.float32)  # init_hidden(): zeros

    out, h_out = estimator_forward(x, h0, params)
    out = jax.block_until_ready(out)
    h_out = jax.block_until_ready(h_out)

    ref_out, ref_h = estimator_reference(x, h0, params)
    # bf16 MXU inputs with f32 accumulation -> slightly looser tolerance vs f32 ref.
    np.testing.assert_allclose(np.asarray(out), np.asarray(ref_out), atol=2e-2, rtol=2e-2)
    np.testing.assert_allclose(np.asarray(h_out), np.asarray(ref_h), atol=2e-2, rtol=2e-2)

    assert out.shape == (B, 1) and h_out.shape == (L, B, H)
    print("KERNEL_OK")
</pallas_src>

<mosaic_0001>
module attributes {stable_mosaic.version = 11 : i64} {
  func.func @gru_estimator_kernel(%arg0: memref<8x8x32xf32, #tpu.memory_space<vmem>>, %arg1: memref<2x8x32xf32, #tpu.memory_space<vmem>>, %arg2: memref<2x32x384xbf16, #tpu.memory_space<vmem>>, %arg3: memref<2x32x384xbf16, #tpu.memory_space<vmem>>, %arg4: memref<2x1x384xf32, #tpu.memory_space<vmem>>, %arg5: memref<2x1x32xf32, #tpu.memory_space<vmem>>, %arg6: memref<8x1x32xf32, #tpu.memory_space<vmem>>, %arg7: memref<1x1xf32, #tpu.memory_space<vmem>>, %arg8: memref<8x1xf32, #tpu.memory_space<vmem>>, %arg9: memref<2x8x32xf32, #tpu.memory_space<vmem>>, %arg10: memref<8x8x32xf32, #tpu.memory_space<vmem>>, %arg11: memref<8x8x384xf32, #tpu.memory_space<vmem>>) attributes {dimension_semantics = [], scalar_prefetch = 0 : i64, scratch_operands = 2 : i64, tpu.core_type = #tpu.core_type<tc>} {
    %cst = arith.constant 0.000000e+00 : f32
    %0 = vector.broadcast %cst : f32 to vector<8x32xf32>
    %c0 = arith.constant 0 : index
    %c0_0 = arith.constant 0 : index
    %c0_1 = arith.constant 0 : index
    %1 = vector.load %arg2[%c0, %c0_0, %c0_1] : memref<2x32x384xbf16, #tpu.memory_space<vmem>>, vector<1x32x384xbf16>
    %2 = vector.shape_cast %1 : vector<1x32x384xbf16> to vector<32x384xbf16>
    %c0_2 = arith.constant 0 : index
    %c0_3 = arith.constant 0 : index
    %c0_4 = arith.constant 0 : index
    %3 = vector.load %arg3[%c0_2, %c0_3, %c0_4] : memref<2x32x384xbf16, #tpu.memory_space<vmem>>, vector<1x32x384xbf16>
    %4 = vector.shape_cast %3 : vector<1x32x384xbf16> to vector<32x384xbf16>
    %c0_5 = arith.constant 0 : index
    %c0_6 = arith.constant 0 : index
    %c0_7 = arith.constant 0 : index
    %5 = vector.load %arg4[%c0_5, %c0_6, %c0_7] : memref<2x1x384xf32, #tpu.memory_space<vmem>>, vector<1x1x384xf32>
    %6 = vector.shape_cast %5 : vector<1x1x384xf32> to vector<1x384xf32>
    %c0_8 = arith.constant 0 : index
    %c0_9 = arith.constant 0 : index
    %c0_10 = arith.constant 0 : index
    %7 = vector.load %arg5[%c0_8, %c0_9, %c0_10] : memref<2x1x32xf32, #tpu.memory_space<vmem>>, vector<1x1x32xf32>
    %8 = vector.shape_cast %7 : vector<1x1x32xf32> to vector<1x32xf32>
    %9 = vector.shape_cast %8 : vector<1x32xf32> to vector<1x32xf32>
    %10 = vector.broadcast %9 : vector<1x32xf32> to vector<8x32xf32>
    %c0_11 = arith.constant 0 : index
    %c0_12 = arith.constant 0 : index
    %c0_13 = arith.constant 0 : index
    %11 = vector.load %arg0[%c0_11, %c0_12, %c0_13] : memref<8x8x32xf32, #tpu.memory_space<vmem>>, vector<8x8x32xf32>
    %12 = vector.shape_cast %11 : vector<8x8x32xf32> to vector<64x32xf32>
    %13 = arith.truncf %12 : vector<64x32xf32> to vector<64x32xbf16>
    %cst_14 = arith.constant dense<0.000000e+00> : vector<64x384xf32>
    %14 = tpu.matmul %13, %2, %cst_14 {dimension_numbers = #tpu.dot_dimension_numbers<[1], [0], [0], [1], [0, 0, 1, 1], [], []>} : vector<64x32xbf16>, vector<32x384xbf16>, vector<64x384xf32> -> vector<64x384xf32>
    %15 = vector.broadcast %6 : vector<1x384xf32> to vector<64x384xf32>
    %16 = arith.addf %14, %15 : vector<64x384xf32>
    %17 = vector.extract_strided_slice %16 {offsets = [0, 0], sizes = [8, 384], strides = [1, 1]} : vector<64x384xf32> to vector<8x384xf32>
    %c0_15 = arith.constant 0 : index
    %c0_16 = arith.constant 0 : index
    %c0_17 = arith.constant 0 : index
    %18 = vector.load %arg11[%c0_15, %c0_16, %c0_17] : memref<8x8x384xf32, #tpu.memory_space<vmem>>, vector<1x8x384xf32>
    %19 = vector.shape_cast %18 : vector<1x8x384xf32> to vector<8x384xf32>
    %20 = vector.shape_cast %17 : vector<8x384xf32> to vector<1x8x384xf32>
    tpu.vector_store %arg11[%c0_15, %c0_16, %c0_17], %20 {strides = array<i32>} : memref<8x8x384xf32, #tpu.memory_space<vmem>>, vector<1x8x384xf32>,
    %21 = vector.extract_strided_slice %16 {offsets = [8, 0], sizes = [8, 384], strides = [1, 1]} : vector<64x384xf32> to vector<8x384xf32>
    %c1 = arith.constant 1 : index
    %c0_18 = arith.constant 0 : index
    %c0_19 = arith.constant 0 : index
    %22 = vector.load %arg11[%c1, %c0_18, %c0_19] : memref<8x8x384xf32, #tpu.memory_space<vmem>>, vector<1x8x384xf32>
    %23 = vector.shape_cast %22 : vector<1x8x384xf32> to vector<8x384xf32>
    %24 = vector.shape_cast %21 : vector<8x384xf32> to vector<1x8x384xf32>
    tpu.vector_store %arg11[%c1, %c0_18, %c0_19], %24 {strides = array<i32>} : memref<8x8x384xf32, #tpu.memory_space<vmem>>, vector<1x8x384xf32>,
    %25 = vector.extract_strided_slice %16 {offsets = [16, 0], sizes = [8, 384], strides = [1, 1]} : vector<64x384xf32> to vector<8x384xf32>
    %c2 = arith.constant 2 : index
    %c0_20 = arith.constant 0 : index
    %c0_21 = arith.constant 0 : index
    %26 = vector.load %arg11[%c2, %c0_20, %c0_21] : memref<8x8x384xf32, #tpu.memory_space<vmem>>, vector<1x8x384xf32>
    %27 = vector.shape_cast %26 : vector<1x8x384xf32> to vector<8x384xf32>
    %28 = vector.shape_cast %25 : vector<8x384xf32> to vector<1x8x384xf32>
    tpu.vector_store %arg11[%c2, %c0_20, %c0_21], %28 {strides = array<i32>} : memref<8x8x384xf32, #tpu.memory_space<vmem>>, vector<1x8x384xf32>,
    %29 = vector.extract_strided_slice %16 {offsets = [24, 0], sizes = [8, 384], strides = [1, 1]} : vector<64x384xf32> to vector<8x384xf32>
    %c3 = arith.constant 3 : index
    %c0_22 = arith.constant 0 : index
    %c0_23 = arith.constant 0 : index
    %30 = vector.load %arg11[%c3, %c0_22, %c0_23] : memref<8x8x384xf32, #tpu.memory_space<vmem>>, vector<1x8x384xf32>
    %31 = vector.shape_cast %30 : vector<1x8x384xf32> to vector<8x384xf32>
    %32 = vector.shape_cast %29 : vector<8x384xf32> to vector<1x8x384xf32>
    tpu.vector_store %arg11[%c3, %c0_22, %c0_23], %32 {strides = array<i32>} : memref<8x8x384xf32, #tpu.memory_space<vmem>>, vector<1x8x384xf32>,
    %33 = vector.extract_strided_slice %16 {offsets = [32, 0], sizes = [8, 384], strides = [1, 1]} : vector<64x384xf32> to vector<8x384xf32>
    %c4 = arith.constant 4 : index
    %c0_24 = arith.constant 0 : index
    %c0_25 = arith.constant 0 : index
    %34 = vector.load %arg11[%c4, %c0_24, %c0_25] : memref<8x8x384xf32, #tpu.memory_space<vmem>>, vector<1x8x384xf32>
    %35 = vector.shape_cast %34 : vector<1x8x384xf32> to vector<8x384xf32>
    %36 = vector.shape_cast %33 : vector<8x384xf32> to vector<1x8x384xf32>
    tpu.vector_store %arg11[%c4, %c0_24, %c0_25], %36 {strides = array<i32>} : memref<8x8x384xf32, #tpu.memory_space<vmem>>, vector<1x8x384xf32>,
    %37 = vector.extract_strided_slice %16 {offsets = [40, 0], sizes = [8, 384], strides = [1, 1]} : vector<64x384xf32> to vector<8x384xf32>
    %c5 = arith.constant 5 : index
    %c0_26 = arith.constant 0 : index
    %c0_27 = arith.constant 0 : index
    %38 = vector.load %arg11[%c5, %c0_26, %c0_27] : memref<8x8x384xf32, #tpu.memory_space<vmem>>, vector<1x8x384xf32>
    %39 = vector.shape_cast %38 : vector<1x8x384xf32> to vector<8x384xf32>
    %40 = vector.shape_cast %37 : vector<8x384xf32> to vector<1x8x384xf32>
    tpu.vector_store %arg11[%c5, %c0_26, %c0_27], %40 {strides = array<i32>} : memref<8x8x384xf32, #tpu.memory_space<vmem>>, vector<1x8x384xf32>,
    %41 = vector.extract_strided_slice %16 {offsets = [48, 0], sizes = [8, 384], strides = [1, 1]} : vector<64x384xf32> to vector<8x384xf32>
    %c6 = arith.constant 6 : index
    %c0_28 = arith.constant 0 : index
    %c0_29 = arith.constant 0 : index
    %42 = vector.load %arg11[%c6, %c0_28, %c0_29] : memref<8x8x384xf32, #tpu.memory_space<vmem>>, vector<1x8x384xf32>
    %43 = vector.shape_cast %42 : vector<1x8x384xf32> to vector<8x384xf32>
    %44 = vector.shape_cast %41 : vector<8x384xf32> to vector<1x8x384xf32>
    tpu.vector_store %arg11[%c6, %c0_28, %c0_29], %44 {strides = array<i32>} : memref<8x8x384xf32, #tpu.memory_space<vmem>>, vector<1x8x384xf32>,
    %45 = vector.extract_strided_slice %16 {offsets = [56, 0], sizes = [8, 384], strides = [1, 1]} : vector<64x384xf32> to vector<8x384xf32>
    %c7 = arith.constant 7 : index
    %c0_30 = arith.constant 0 : index
    %c0_31 = arith.constant 0 : index
    %46 = vector.load %arg11[%c7, %c0_30, %c0_31] : memref<8x8x384xf32, #tpu.memory_space<vmem>>, vector<1x8x384xf32>
    %47 = vector.shape_cast %46 : vector<1x8x384xf32> to vector<8x384xf32>
    %48 = vector.shape_cast %45 : vector<8x384xf32> to vector<1x8x384xf32>
    tpu.vector_store %arg11[%c7, %c0_30, %c0_31], %48 {strides = array<i32>} : memref<8x8x384xf32, #tpu.memory_space<vmem>>, vector<1x8x384xf32>,
    %c0_32 = arith.constant 0 : index
    %c0_33 = arith.constant 0 : index
    %c0_34 = arith.constant 0 : index
    %49 = vector.load %arg1[%c0_32, %c0_33, %c0_34] : memref<2x8x32xf32, #tpu.memory_space<vmem>>, vector<1x8x32xf32>
    %50 = vector.shape_cast %49 : vector<1x8x32xf32> to vector<8x32xf32>
    %c0_35 = arith.constant 0 : index
    %c0_36 = arith.constant 0 : index
    %c0_37 = arith.constant 0 : index
    %51 = vector.load %arg11[%c0_35, %c0_36, %c0_37] : memref<8x8x384xf32, #tpu.memory_space<vmem>>, vector<1x8x384xf32>
    %52 = vector.shape_cast %51 : vector<1x8x384xf32> to vector<8x384xf32>
    %53 = arith.truncf %50 : vector<8x32xf32> to vector<8x32xbf16>
    %cst_38 = arith.constant dense<0.000000e+00> : vector<8x384xf32>
    %54 = tpu.matmul %53, %4, %cst_38 {dimension_numbers = #tpu.dot_dimension_numbers<[1], [0], [0], [1], [0, 0, 1, 1], [], []>} : vector<8x32xbf16>, vector<32x384xbf16>, vector<8x384xf32> -> vector<8x384xf32>
    %55 = vector.extract_strided_slice %52 {offsets = [0, 0], sizes = [8, 256], strides = [1, 1]} : vector<8x384xf32> to vector<8x256xf32>
    %56 = vector.extract_strided_slice %54 {offsets = [0, 0], sizes = [8, 256], strides = [1, 1]} : vector<8x384xf32> to vector<8x256xf32>
    %57 = arith.addf %55, %56 : vector<8x256xf32>
    %cst_39 = arith.constant 5.000000e-01 : f32
    %58 = vector.broadcast %cst_39 : f32 to vector<8x256xf32>
    %59 = arith.mulf %58, %57 : vector<8x256xf32>
    %60 = math.tanh %59 : vector<8x256xf32>
    %cst_40 = arith.constant 5.000000e-01 : f32
    %61 = vector.broadcast %cst_40 : f32 to vector<8x256xf32>
    %62 = arith.mulf %61, %60 : vector<8x256xf32>
    %cst_41 = arith.constant 5.000000e-01 : f32
    %63 = vector.broadcast %cst_41 : f32 to vector<8x256xf32>
    %64 = arith.addf %62, %63 : vector<8x256xf32>
    %65 = vector.extract_strided_slice %64 {offsets = [0, 0], sizes = [8, 32], strides = [1, 1]} : vector<8x256xf32> to vector<8x32xf32>
    %66 = vector.extract_strided_slice %64 {offsets = [0, 128], sizes = [8, 32], strides = [1, 1]} : vector<8x256xf32> to vector<8x32xf32>
    %67 = vector.extract_strided_slice %52 {offsets = [0, 256], sizes = [8, 32], strides = [1, 1]} : vector<8x384xf32> to vector<8x32xf32>
    %68 = vector.extract_strided_slice %54 {offsets = [0, 256], sizes = [8, 32], strides = [1, 1]} : vector<8x384xf32> to vector<8x32xf32>
    %69 = arith.addf %68, %10 : vector<8x32xf32>
    %70 = arith.mulf %65, %69 : vector<8x32xf32>
    %71 = arith.addf %67, %70 : vector<8x32xf32>
    %72 = math.tanh %71 : vector<8x32xf32>
    %73 = arith.subf %50, %72 : vector<8x32xf32>
    %74 = arith.mulf %66, %73 : vector<8x32xf32>
    %75 = arith.addf %72, %74 : vector<8x32xf32>
    %c0_42 = arith.constant 0 : index
    %c0_43 = arith.constant 0 : index
    %c0_44 = arith.constant 0 : index
    %76 = vector.load %arg10[%c0_42, %c0_43, %c0_44] : memref<8x8x32xf32, #tpu.memory_space<vmem>>, vector<1x8x32xf32>
    %77 = vector.shape_cast %76 : vector<1x8x32xf32> to vector<8x32xf32>
    %78 = vector.shape_cast %75 : vector<8x32xf32> to vector<1x8x32xf32>
    tpu.vector_store %arg10[%c0_42, %c0_43, %c0_44], %78 {strides = array<i32>} : memref<8x8x32xf32, #tpu.memory_space<vmem>>, vector<1x8x32xf32>,
    %c1_45 = arith.constant 1 : index
    %c0_46 = arith.constant 0 : index
    %c0_47 = arith.constant 0 : index
    %79 = vector.load %arg11[%c1_45, %c0_46, %c0_47] : memref<8x8x384xf32, #tpu.memory_space<vmem>>, vector<1x8x384xf32>
    %80 = vector.shape_cast %79 : vector<1x8x384xf32> to vector<8x384xf32>
    %81 = arith.truncf %75 : vector<8x32xf32> to vector<8x32xbf16>
    %cst_48 = arith.constant dense<0.000000e+00> : vector<8x384xf32>
    %82 = tpu.matmul %81, %4, %cst_48 {dimension_numbers = #tpu.dot_dimension_numbers<[1], [0], [0], [1], [0, 0, 1, 1], [], []>} : vector<8x32xbf16>, vector<32x384xbf16>, vector<8x384xf32> -> vector<8x384xf32>
    %83 = vector.extract_strided_slice %80 {offsets = [0, 0], sizes = [8, 256], strides = [1, 1]} : vector<8x384xf32> to vector<8x256xf32>
    %84 = vector.extract_strided_slice %82 {offsets = [0, 0], sizes = [8, 256], strides = [1, 1]} : vector<8x384xf32> to vector<8x256xf32>
    %85 = arith.addf %83, %84 : vector<8x256xf32>
    %cst_49 = arith.constant 5.000000e-01 : f32
    %86 = vector.broadcast %cst_49 : f32 to vector<8x256xf32>
    %87 = arith.mulf %86, %85 : vector<8x256xf32>
    %88 = math.tanh %87 : vector<8x256xf32>
    %cst_50 = arith.constant 5.000000e-01 : f32
    %89 = vector.broadcast %cst_50 : f32 to vector<8x256xf32>
    %90 = arith.mulf %89, %88 : vector<8x256xf32>
    %cst_51 = arith.constant 5.000000e-01 : f32
    %91 = vector.broadcast %cst_51 : f32 to vector<8x256xf32>
    %92 = arith.addf %90, %91 : vector<8x256xf32>
    %93 = vector.extract_strided_slice %92 {offsets = [0, 0], sizes = [8, 32], strides = [1, 1]} : vector<8x256xf32> to vector<8x32xf32>
    %94 = vector.extract_strided_slice %92 {offsets = [0, 128], sizes = [8, 32], strides = [1, 1]} : vector<8x256xf32> to vector<8x32xf32>
    %95 = vector.extract_strided_slice %80 {offsets = [0, 256], sizes = [8, 32], strides = [1, 1]} : vector<8x384xf32> to vector<8x32xf32>
    %96 = vector.extract_strided_slice %82 {offsets = [0, 256], sizes = [8, 32], strides = [1, 1]} : vector<8x384xf32> to vector<8x32xf32>
    %97 = arith.addf %96, %10 : vector<8x32xf32>
    %98 = arith.mulf %93, %97 : vector<8x32xf32>
    %99 = arith.addf %95, %98 : vector<8x32xf32>
    %100 = math.tanh %99 : vector<8x32xf32>
    %101 = arith.subf %75, %100 : vector<8x32xf32>
    %102 = arith.mulf %94, %101 : vector<8x32xf32>
    %103 = arith.addf %100, %102 : vector<8x32xf32>
    %c1_52 = arith.constant 1 : index
    %c0_53 = arith.constant 0 : index
    %c0_54 = arith.constant 0 : index
    %104 = vector.load %arg10[%c1_52, %c0_53, %c0_54] : memref<8x8x32xf32, #tpu.memory_space<vmem>>, vector<1x8x32xf32>
    %105 = vector.shape_cast %104 : vector<1x8x32xf32> to vector<8x32xf32>
    %106 = vector.shape_cast %103 : vector<8x32xf32> to vector<1x8x32xf32>
    tpu.vector_store %arg10[%c1_52, %c0_53, %c0_54], %106 {strides = array<i32>} : memref<8x8x32xf32, #tpu.memory_space<vmem>>, vector<1x8x32xf32>,
    %c2_55 = arith.constant 2 : index
    %c0_56 = arith.constant 0 : index
    %c0_57 = arith.constant 0 : index
    %107 = vector.load %arg11[%c2_55, %c0_56, %c0_57] : memref<8x8x384xf32, #tpu.memory_space<vmem>>, vector<1x8x384xf32>
    %108 = vector.shape_cast %107 : vector<1x8x384xf32> to vector<8x384xf32>
    %109 = arith.truncf %103 : vector<8x32xf32> to vector<8x32xbf16>
    %cst_58 = arith.constant dense<0.000000e+00> : vector<8x384xf32>
    %110 = tpu.matmul %109, %4, %cst_58 {dimension_numbers = #tpu.dot_dimension_numbers<[1], [0], [0], [1], [0, 0, 1, 1], [], []>} : vector<8x32xbf16>, vector<32x384xbf16>, vector<8x384xf32> -> vector<8x384xf32>
    %111 = vector.extract_strided_slice %108 {offsets = [0, 0], sizes = [8, 256], strides = [1, 1]} : vector<8x384xf32> to vector<8x256xf32>
    %112 = vector.extract_strided_slice %110 {offsets = [0, 0], sizes = [8, 256], strides = [1, 1]} : vector<8x384xf32> to vector<8x256xf32>
    %113 = arith.addf %111, %112 : vector<8x256xf32>
    %cst_59 = arith.constant 5.000000e-01 : f32
    %114 = vector.broadcast %cst_59 : f32 to vector<8x256xf32>
    %115 = arith.mulf %114, %113 : vector<8x256xf32>
    %116 = math.tanh %115 : vector<8x256xf32>
    %cst_60 = arith.constant 5.000000e-01 : f32
    %117 = vector.broadcast %cst_60 : f32 to vector<8x256xf32>
    %118 = arith.mulf %117, %116 : vector<8x256xf32>
    %cst_61 = arith.constant 5.000000e-01 : f32
    %119 = vector.broadcast %cst_61 : f32 to vector<8x256xf32>
    %120 = arith.addf %118, %119 : vector<8x256xf32>
    %121 = vector.extract_strided_slice %120 {offsets = [0, 0], sizes = [8, 32], strides = [1, 1]} : vector<8x256xf32> to vector<8x32xf32>
    %122 = vector.extract_strided_slice %120 {offsets = [0, 128], sizes = [8, 32], strides = [1, 1]} : vector<8x256xf32> to vector<8x32xf32>
    %123 = vector.extract_strided_slice %108 {offsets = [0, 256], sizes = [8, 32], strides = [1, 1]} : vector<8x384xf32> to vector<8x32xf32>
    %124 = vector.extract_strided_slice %110 {offsets = [0, 256], sizes = [8, 32], strides = [1, 1]} : vector<8x384xf32> to vector<8x32xf32>
    %125 = arith.addf %124, %10 : vector<8x32xf32>
    %126 = arith.mulf %121, %125 : vector<8x32xf32>
    %127 = arith.addf %123, %126 : vector<8x32xf32>
    %128 = math.tanh %127 : vector<8x32xf32>
    %129 = arith.subf %103, %128 : vector<8x32xf32>
    %130 = arith.mulf %122, %129 : vector<8x32xf32>
    %131 = arith.addf %128, %130 : vector<8x32xf32>
    %c2_62 = arith.constant 2 : index
    %c0_63 = arith.constant 0 : index
    %c0_64 = arith.constant 0 : index
    %132 = vector.load %arg10[%c2_62, %c0_63, %c0_64] : memref<8x8x32xf32, #tpu.memory_space<vmem>>, vector<1x8x32xf32>
    %133 = vector.shape_cast %132 : vector<1x8x32xf32> to vector<8x32xf32>
    %134 = vector.shape_cast %131 : vector<8x32xf32> to vector<1x8x32xf32>
    tpu.vector_store %arg10[%c2_62, %c0_63, %c0_64], %134 {strides = array<i32>} : memref<8x8x32xf32, #tpu.memory_space<vmem>>, vector<1x8x32xf32>,
    %c3_65 = arith.constant 3 : index
    %c0_66 = arith.constant 0 : index
    %c0_67 = arith.constant 0 : index
    %135 = vector.load %arg11[%c3_65, %c0_66, %c0_67] : memref<8x8x384xf32, #tpu.memory_space<vmem>>, vector<1x8x384xf32>
    %136 = vector.shape_cast %135 : vector<1x8x384xf32> to vector<8x384xf32>
    %137 = arith.truncf %131 : vector<8x32xf32> to vector<8x32xbf16>
    %cst_68 = arith.constant dense<0.000000e+00> : vector<8x384xf32>
    %138 = tpu.matmul %137, %4, %cst_68 {dimension_numbers = #tpu.dot_dimension_numbers<[1], [0], [0], [1], [0, 0, 1, 1], [], []>} : vector<8x32xbf16>, vector<32x384xbf16>, vector<8x384xf32> -> vector<8x384xf32>
    %139 = vector.extract_strided_slice %136 {offsets = [0, 0], sizes = [8, 256], strides = [1, 1]} : vector<8x384xf32> to vector<8x256xf32>
    %140 = vector.extract_strided_slice %138 {offsets = [0, 0], sizes = [8, 256], strides = [1, 1]} : vector<8x384xf32> to vector<8x256xf32>
    %141 = arith.addf %139, %140 : vector<8x256xf32>
    %cst_69 = arith.constant 5.000000e-01 : f32
    %142 = vector.broadcast %cst_69 : f32 to vector<8x256xf32>
    %143 = arith.mulf %142, %141 : vector<8x256xf32>
    %144 = math.tanh %143 : vector<8x256xf32>
    %cst_70 = arith.constant 5.000000e-01 : f32
    %145 = vector.broadcast %cst_70 : f32 to vector<8x256xf32>
    %146 = arith.mulf %145, %144 : vector<8x256xf32>
    %cst_71 = arith.constant 5.000000e-01 : f32
    %147 = vector.broadcast %cst_71 : f32 to vector<8x256xf32>
    %148 = arith.addf %146, %147 : vector<8x256xf32>
    %149 = vector.extract_strided_slice %148 {offsets = [0, 0], sizes = [8, 32], strides = [1, 1]} : vector<8x256xf32> to vector<8x32xf32>
    %150 = vector.extract_strided_slice %148 {offsets = [0, 128], sizes = [8, 32], strides = [1, 1]} : vector<8x256xf32> to vector<8x32xf32>
    %151 = vector.extract_strided_slice %136 {offsets = [0, 256], sizes = [8, 32], strides = [1, 1]} : vector<8x384xf32> to vector<8x32xf32>
    %152 = vector.extract_strided_slice %138 {offsets = [0, 256], sizes = [8, 32], strides = [1, 1]} : vector<8x384xf32> to vector<8x32xf32>
    %153 = arith.addf %152, %10 : vector<8x32xf32>
    %154 = arith.mulf %149, %153 : vector<8x32xf32>
    %155 = arith.addf %151, %154 : vector<8x32xf32>
    %156 = math.tanh %155 : vector<8x32xf32>
    %157 = arith.subf %131, %156 : vector<8x32xf32>
    %158 = arith.mulf %150, %157 : vector<8x32xf32>
    %159 = arith.addf %156, %158 : vector<8x32xf32>
    %c3_72 = arith.constant 3 : index
    %c0_73 = arith.constant 0 : index
    %c0_74 = arith.constant 0 : index
    %160 = vector.load %arg10[%c3_72, %c0_73, %c0_74] : memref<8x8x32xf32, #tpu.memory_space<vmem>>, vector<1x8x32xf32>
    %161 = vector.shape_cast %160 : vector<1x8x32xf32> to vector<8x32xf32>
    %162 = vector.shape_cast %159 : vector<8x32xf32> to vector<1x8x32xf32>
    tpu.vector_store %arg10[%c3_72, %c0_73, %c0_74], %162 {strides = array<i32>} : memref<8x8x32xf32, #tpu.memory_space<vmem>>, vector<1x8x32xf32>,
    %c4_75 = arith.constant 4 : index
    %c0_76 = arith.constant 0 : index
    %c0_77 = arith.constant 0 : index
    %163 = vector.load %arg11[%c4_75, %c0_76, %c0_77] : memref<8x8x384xf32, #tpu.memory_space<vmem>>, vector<1x8x384xf32>
    %164 = vector.shape_cast %163 : vector<1x8x384xf32> to vector<8x384xf32>
    %165 = arith.truncf %159 : vector<8x32xf32> to vector<8x32xbf16>
    %cst_78 = arith.constant dense<0.000000e+00> : vector<8x384xf32>
    %166 = tpu.matmul %165, %4, %cst_78 {dimension_numbers = #tpu.dot_dimension_numbers<[1], [0], [0], [1], [0, 0, 1, 1], [], []>} : vector<8x32xbf16>, vector<32x384xbf16>, vector<8x384xf32> -> vector<8x384xf32>
    %167 = vector.extract_strided_slice %164 {offsets = [0, 0], sizes = [8, 256], strides = [1, 1]} : vector<8x384xf32> to vector<8x256xf32>
    %168 = vector.extract_strided_slice %166 {offsets = [0, 0], sizes = [8, 256], strides = [1, 1]} : vector<8x384xf32> to vector<8x256xf32>
    %169 = arith.addf %167, %168 : vector<8x256xf32>
    %cst_79 = arith.constant 5.000000e-01 : f32
    %170 = vector.broadcast %cst_79 : f32 to vector<8x256xf32>
    %171 = arith.mulf %170, %169 : vector<8x256xf32>
    %172 = math.tanh %171 : vector<8x256xf32>
    %cst_80 = arith.constant 5.000000e-01 : f32
    %173 = vector.broadcast %cst_80 : f32 to vector<8x256xf32>
    %174 = arith.mulf %173, %172 : vector<8x256xf32>
    %cst_81 = arith.constant 5.000000e-01 : f32
    %175 = vector.broadcast %cst_81 : f32 to vector<8x256xf32>
    %176 = arith.addf %174, %175 : vector<8x256xf32>
    %177 = vector.extract_strided_slice %176 {offsets = [0, 0], sizes = [8, 32], strides = [1, 1]} : vector<8x256xf32> to vector<8x32xf32>
    %178 = vector.extract_strided_slice %176 {offsets = [0, 128], sizes = [8, 32], strides = [1, 1]} : vector<8x256xf32> to vector<8x32xf32>
    %179 = vector.extract_strided_slice %164 {offsets = [0, 256], sizes = [8, 32], strides = [1, 1]} : vector<8x384xf32> to vector<8x32xf32>
    %180 = vector.extract_strided_slice %166 {offsets = [0, 256], sizes = [8, 32], strides = [1, 1]} : vector<8x384xf32> to vector<8x32xf32>
    %181 = arith.addf %180, %10 : vector<8x32xf32>
    %182 = arith.mulf %177, %181 : vector<8x32xf32>
    %183 = arith.addf %179, %182 : vector<8x32xf32>
    %184 = math.tanh %183 : vector<8x32xf32>
    %185 = arith.subf %159, %184 : vector<8x32xf32>
    %186 = arith.mulf %178, %185 : vector<8x32xf32>
    %187 = arith.addf %184, %186 : vector<8x32xf32>
    %c4_82 = arith.constant 4 : index
    %c0_83 = arith.constant 0 : index
    %c0_84 = arith.constant 0 : index
    %188 = vector.load %arg10[%c4_82, %c0_83, %c0_84] : memref<8x8x32xf32, #tpu.memory_space<vmem>>, vector<1x8x32xf32>
    %189 = vector.shape_cast %188 : vector<1x8x32xf32> to vector<8x32xf32>
    %190 = vector.shape_cast %187 : vector<8x32xf32> to vector<1x8x32xf32>
    tpu.vector_store %arg10[%c4_82, %c0_83, %c0_84], %190 {strides = array<i32>} : memref<8x8x32xf32, #tpu.memory_space<vmem>>, vector<1x8x32xf32>,
    %c5_85 = arith.constant 5 : index
    %c0_86 = arith.constant 0 : index
    %c0_87 = arith.constant 0 : index
    %191 = vector.load %arg11[%c5_85, %c0_86, %c0_87] : memref<8x8x384xf32, #tpu.memory_space<vmem>>, vector<1x8x384xf32>
    %192 = vector.shape_cast %191 : vector<1x8x384xf32> to vector<8x384xf32>
    %193 = arith.truncf %187 : vector<8x32xf32> to vector<8x32xbf16>
    %cst_88 = arith.constant dense<0.000000e+00> : vector<8x384xf32>
    %194 = tpu.matmul %193, %4, %cst_88 {dimension_numbers = #tpu.dot_dimension_numbers<[1], [0], [0], [1], [0, 0, 1, 1], [], []>} : vector<8x32xbf16>, vector<32x384xbf16>, vector<8x384xf32> -> vector<8x384xf32>
    %195 = vector.extract_strided_slice %192 {offsets = [0, 0], sizes = [8, 256], strides = [1, 1]} : vector<8x384xf32> to vector<8x256xf32>
    %196 = vector.extract_strided_slice %194 {offsets = [0, 0], sizes = [8, 256], strides = [1, 1]} : vector<8x384xf32> to vector<8x256xf32>
    %197 = arith.addf %195, %196 : vector<8x256xf32>
    %cst_89 = arith.constant 5.000000e-01 : f32
    %198 = vector.broadcast %cst_89 : f32 to vector<8x256xf32>
    %199 = arith.mulf %198, %197 : vector<8x256xf32>
    %200 = math.tanh %199 : vector<8x256xf32>
    %cst_90 = arith.constant 5.000000e-01 : f32
    %201 = vector.broadcast %cst_90 : f32 to vector<8x256xf32>
    %202 = arith.mulf %201, %200 : vector<8x256xf32>
    %cst_91 = arith.constant 5.000000e-01 : f32
    %203 = vector.broadcast %cst_91 : f32 to vector<8x256xf32>
    %204 = arith.addf %202, %203 : vector<8x256xf32>
    %205 = vector.extract_strided_slice %204 {offsets = [0, 0], sizes = [8, 32], strides = [1, 1]} : vector<8x256xf32> to vector<8x32xf32>
    %206 = vector.extract_strided_slice %204 {offsets = [0, 128], sizes = [8, 32], strides = [1, 1]} : vector<8x256xf32> to vector<8x32xf32>
    %207 = vector.extract_strided_slice %192 {offsets = [0, 256], sizes = [8, 32], strides = [1, 1]} : vector<8x384xf32> to vector<8x32xf32>
    %208 = vector.extract_strided_slice %194 {offsets = [0, 256], sizes = [8, 32], strides = [1, 1]} : vector<8x384xf32> to vector<8x32xf32>
    %209 = arith.addf %208, %10 : vector<8x32xf32>
    %210 = arith.mulf %205, %209 : vector<8x32xf32>
    %211 = arith.addf %207, %210 : vector<8x32xf32>
    %212 = math.tanh %211 : vector<8x32xf32>
    %213 = arith.subf %187, %212 : vector<8x32xf32>
    %214 = arith.mulf %206, %213 : vector<8x32xf32>
    %215 = arith.addf %212, %214 : vector<8x32xf32>
    %c5_92 = arith.constant 5 : index
    %c0_93 = arith.constant 0 : index
    %c0_94 = arith.constant 0 : index
    %216 = vector.load %arg10[%c5_92, %c0_93, %c0_94] : memref<8x8x32xf32, #tpu.memory_space<vmem>>, vector<1x8x32xf32>
    %217 = vector.shape_cast %216 : vector<1x8x32xf32> to vector<8x32xf32>
    %218 = vector.shape_cast %215 : vector<8x32xf32> to vector<1x8x32xf32>
    tpu.vector_store %arg10[%c5_92, %c0_93, %c0_94], %218 {strides = array<i32>} : memref<8x8x32xf32, #tpu.memory_space<vmem>>, vector<1x8x32xf32>,
    %c6_95 = arith.constant 6 : index
    %c0_96 = arith.constant 0 : index
    %c0_97 = arith.constant 0 : index
    %219 = vector.load %arg11[%c6_95, %c0_96, %c0_97] : memref<8x8x384xf32, #tpu.memory_space<vmem>>, vector<1x8x384xf32>
    %220 = vector.shape_cast %219 : vector<1x8x384xf32> to vector<8x384xf32>
    %221 = arith.truncf %215 : vector<8x32xf32> to vector<8x32xbf16>
    %cst_98 = arith.constant dense<0.000000e+00> : vector<8x384xf32>
    %222 = tpu.matmul %221, %4, %cst_98 {dimension_numbers = #tpu.dot_dimension_numbers<[1], [0], [0], [1], [0, 0, 1, 1], [], []>} : vector<8x32xbf16>, vector<32x384xbf16>, vector<8x384xf32> -> vector<8x384xf32>
    %223 = vector.extract_strided_slice %220 {offsets = [0, 0], sizes = [8, 256], strides = [1, 1]} : vector<8x384xf32> to vector<8x256xf32>
    %224 = vector.extract_strided_slice %222 {offsets = [0, 0], sizes = [8, 256], strides = [1, 1]} : vector<8x384xf32> to vector<8x256xf32>
    %225 = arith.addf %223, %224 : vector<8x256xf32>
    %cst_99 = arith.constant 5.000000e-01 : f32
    %226 = vector.broadcast %cst_99 : f32 to vector<8x256xf32>
    %227 = arith.mulf %226, %225 : vector<8x256xf32>
    %228 = math.tanh %227 : vector<8x256xf32>
    %cst_100 = arith.constant 5.000000e-01 : f32
    %229 = vector.broadcast %cst_100 : f32 to vector<8x256xf32>
    %230 = arith.mulf %229, %228 : vector<8x256xf32>
    %cst_101 = arith.constant 5.000000e-01 : f32
    %231 = vector.broadcast %cst_101 : f32 to vector<8x256xf32>
    %232 = arith.addf %230, %231 : vector<8x256xf32>
    %233 = vector.extract_strided_slice %232 {offsets = [0, 0], sizes = [8, 32], strides = [1, 1]} : vector<8x256xf32> to vector<8x32xf32>
    %234 = vector.extract_strided_slice %232 {offsets = [0, 128], sizes = [8, 32], strides = [1, 1]} : vector<8x256xf32> to vector<8x32xf32>
    %235 = vector.extract_strided_slice %220 {offsets = [0, 256], sizes = [8, 32], strides = [1, 1]} : vector<8x384xf32> to vector<8x32xf32>
    %236 = vector.extract_strided_slice %222 {offsets = [0, 256], sizes = [8, 32], strides = [1, 1]} : vector<8x384xf32> to vector<8x32xf32>
    %237 = arith.addf %236, %10 : vector<8x32xf32>
    %238 = arith.mulf %233, %237 : vector<8x32xf32>
    %239 = arith.addf %235, %238 : vector<8x32xf32>
    %240 = math.tanh %239 : vector<8x32xf32>
    %241 = arith.subf %215, %240 : vector<8x32xf32>
    %242 = arith.mulf %234, %241 : vector<8x32xf32>
    %243 = arith.addf %240, %242 : vector<8x32xf32>
    %c6_102 = arith.constant 6 : index
    %c0_103 = arith.constant 0 : index
    %c0_104 = arith.constant 0 : index
    %244 = vector.load %arg10[%c6_102, %c0_103, %c0_104] : memref<8x8x32xf32, #tpu.memory_space<vmem>>, vector<1x8x32xf32>
    %245 = vector.shape_cast %244 : vector<1x8x32xf32> to vector<8x32xf32>
    %246 = vector.shape_cast %243 : vector<8x32xf32> to vector<1x8x32xf32>
    tpu.vector_store %arg10[%c6_102, %c0_103, %c0_104], %246 {strides = array<i32>} : memref<8x8x32xf32, #tpu.memory_space<vmem>>, vector<1x8x32xf32>,
    %c7_105 = arith.constant 7 : index
    %c0_106 = arith.constant 0 : index
    %c0_107 = arith.constant 0 : index
    %247 = vector.load %arg11[%c7_105, %c0_106, %c0_107] : memref<8x8x384xf32, #tpu.memory_space<vmem>>, vector<1x8x384xf32>
    %248 = vector.shape_cast %247 : vector<1x8x384xf32> to vector<8x384xf32>
    %249 = arith.truncf %243 : vector<8x32xf32> to vector<8x32xbf16>
    %cst_108 = arith.constant dense<0.000000e+00> : vector<8x384xf32>
    %250 = tpu.matmul %249, %4, %cst_108 {dimension_numbers = #tpu.dot_dimension_numbers<[1], [0], [0], [1], [0, 0, 1, 1], [], []>} : vector<8x32xbf16>, vector<32x384xbf16>, vector<8x384xf32> -> vector<8x384xf32>
    %251 = vector.extract_strided_slice %248 {offsets = [0, 0], sizes = [8, 256], strides = [1, 1]} : vector<8x384xf32> to vector<8x256xf32>
    %252 = vector.extract_strided_slice %250 {offsets = [0, 0], sizes = [8, 256], strides = [1, 1]} : vector<8x384xf32> to vector<8x256xf32>
    %253 = arith.addf %251, %252 : vector<8x256xf32>
    %cst_109 = arith.constant 5.000000e-01 : f32
    %254 = vector.broadcast %cst_109 : f32 to vector<8x256xf32>
    %255 = arith.mulf %254, %253 : vector<8x256xf32>
    %256 = math.tanh %255 : vector<8x256xf32>
    %cst_110 = arith.constant 5.000000e-01 : f32
    %257 = vector.broadcast %cst_110 : f32 to vector<8x256xf32>
    %258 = arith.mulf %257, %256 : vector<8x256xf32>
    %cst_111 = arith.constant 5.000000e-01 : f32
    %259 = vector.broadcast %cst_111 : f32 to vector<8x256xf32>
    %260 = arith.addf %258, %259 : vector<8x256xf32>
    %261 = vector.extract_strided_slice %260 {offsets = [0, 0], sizes = [8, 32], strides = [1, 1]} : vector<8x256xf32> to vector<8x32xf32>
    %262 = vector.extract_strided_slice %260 {offsets = [0, 128], sizes = [8, 32], strides = [1, 1]} : vector<8x256xf32> to vector<8x32xf32>
    %263 = vector.extract_strided_slice %248 {offsets = [0, 256], sizes = [8, 32], strides = [1, 1]} : vector<8x384xf32> to vector<8x32xf32>
    %264 = vector.extract_strided_slice %250 {offsets = [0, 256], sizes = [8, 32], strides = [1, 1]} : vector<8x384xf32> to vector<8x32xf32>
    %265 = arith.addf %264, %10 : vector<8x32xf32>
    %266 = arith.mulf %261, %265 : vector<8x32xf32>
    %267 = arith.addf %263, %266 : vector<8x32xf32>
    %268 = math.tanh %267 : vector<8x32xf32>
    %269 = arith.subf %243, %268 : vector<8x32xf32>
    %270 = arith.mulf %262, %269 : vector<8x32xf32>
    %271 = arith.addf %268, %270 : vector<8x32xf32>
    %c7_112 = arith.constant 7 : index
    %c0_113 = arith.constant 0 : index
    %c0_114 = arith.constant 0 : index
    %272 = vector.load %arg10[%c7_112, %c0_113, %c0_114] : memref<8x8x32xf32, #tpu.memory_space<vmem>>, vector<1x8x32xf32>
    %273 = vector.shape_cast %272 : vector<1x8x32xf32> to vector<8x32xf32>
    %274 = vector.shape_cast %271 : vector<8x32xf32> to vector<1x8x32xf32>
    tpu.vector_store %arg10[%c7_112, %c0_113, %c0_114], %274 {strides = array<i32>} : memref<8x8x32xf32, #tpu.memory_space<vmem>>, vector<1x8x32xf32>,
    %c0_115 = arith.constant 0 : index
    %c0_116 = arith.constant 0 : index
    %c0_117 = arith.constant 0 : index
    %275 = vector.load %arg9[%c0_115, %c0_116, %c0_117] : memref<2x8x32xf32, #tpu.memory_space<vmem>>, vector<1x8x32xf32>
    %276 = vector.shape_cast %275 : vector<1x8x32xf32> to vector<8x32xf32>
    %277 = vector.shape_cast %271 : vector<8x32xf32> to vector<1x8x32xf32>
    tpu.vector_store %arg9[%c0_115, %c0_116, %c0_117], %277 {strides = array<i32>} : memref<2x8x32xf32, #tpu.memory_space<vmem>>, vector<1x8x32xf32>,
    %c1_118 = arith.constant 1 : index
    %c0_119 = arith.constant 0 : index
    %c0_120 = arith.constant 0 : index
    %278 = vector.load %arg2[%c1_118, %c0_119, %c0_120] : memref<2x32x384xbf16, #tpu.memory_space<vmem>>, vector<1x32x384xbf16>
    %279 = vector.shape_cast %278 : vector<1x32x384xbf16> to vector<32x384xbf16>
    %c1_121 = arith.constant 1 : index
    %c0_122 = arith.constant 0 : index
    %c0_123 = arith.constant 0 : index
    %280 = vector.load %arg3[%c1_121, %c0_122, %c0_123] : memref<2x32x384xbf16, #tpu.memory_space<vmem>>, vector<1x32x384xbf16>
    %281 = vector.shape_cast %280 : vector<1x32x384xbf16> to vector<32x384xbf16>
    %c1_124 = arith.constant 1 : index
    %c0_125 = arith.constant 0 : index
    %c0_126 = arith.constant 0 : index
    %282 = vector.load %arg4[%c1_124, %c0_125, %c0_126] : memref<2x1x384xf32, #tpu.memory_space<vmem>>, vector<1x1x384xf32>
    %283 = vector.shape_cast %282 : vector<1x1x384xf32> to vector<1x384xf32>
    %c1_127 = arith.constant 1 : index
    %c0_128 = arith.constant 0 : index
    %c0_129 = arith.constant 0 : index
    %284 = vector.load %arg5[%c1_127, %c0_128, %c0_129] : memref<2x1x32xf32, #tpu.memory_space<vmem>>, vector<1x1x32xf32>
    %285 = vector.shape_cast %284 : vector<1x1x32xf32> to vector<1x32xf32>
    %286 = vector.shape_cast %285 : vector<1x32xf32> to vector<1x32xf32>
    %287 = vector.broadcast %286 : vector<1x32xf32> to vector<8x32xf32>
    %c0_130 = arith.constant 0 : index
    %c0_131 = arith.constant 0 : index
    %c0_132 = arith.constant 0 : index
    %288 = vector.load %arg10[%c0_130, %c0_131, %c0_132] : memref<8x8x32xf32, #tpu.memory_space<vmem>>, vector<8x8x32xf32>
    %289 = vector.shape_cast %288 : vector<8x8x32xf32> to vector<64x32xf32>
    %290 = arith.truncf %289 : vector<64x32xf32> to vector<64x32xbf16>
    %cst_133 = arith.constant dense<0.000000e+00> : vector<64x384xf32>
    %291 = tpu.matmul %290, %279, %cst_133 {dimension_numbers = #tpu.dot_dimension_numbers<[1], [0], [0], [1], [0, 0, 1, 1], [], []>} : vector<64x32xbf16>, vector<32x384xbf16>, vector<64x384xf32> -> vector<64x384xf32>
    %292 = vector.broadcast %283 : vector<1x384xf32> to vector<64x384xf32>
    %293 = arith.addf %291, %292 : vector<64x384xf32>
    %294 = vector.extract_strided_slice %293 {offsets = [0, 0], sizes = [8, 384], strides = [1, 1]} : vector<64x384xf32> to vector<8x384xf32>
    %c0_134 = arith.constant 0 : index
    %c0_135 = arith.constant 0 : index
    %c0_136 = arith.constant 0 : index
    %295 = vector.load %arg11[%c0_134, %c0_135, %c0_136] : memref<8x8x384xf32, #tpu.memory_space<vmem>>, vector<1x8x384xf32>
    %296 = vector.shape_cast %295 : vector<1x8x384xf32> to vector<8x384xf32>
    %297 = vector.shape_cast %294 : vector<8x384xf32> to vector<1x8x384xf32>
    tpu.vector_store %arg11[%c0_134, %c0_135, %c0_136], %297 {strides = array<i32>} : memref<8x8x384xf32, #tpu.memory_space<vmem>>, vector<1x8x384xf32>,
    %298 = vector.extract_strided_slice %293 {offsets = [8, 0], sizes = [8, 384], strides = [1, 1]} : vector<64x384xf32> to vector<8x384xf32>
    %c1_137 = arith.constant 1 : index
    %c0_138 = arith.constant 0 : index
    %c0_139 = arith.constant 0 : index
    %299 = vector.load %arg11[%c1_137, %c0_138, %c0_139] : memref<8x8x384xf32, #tpu.memory_space<vmem>>, vector<1x8x384xf32>
    %300 = vector.shape_cast %299 : vector<1x8x384xf32> to vector<8x384xf32>
    %301 = vector.shape_cast %298 : vector<8x384xf32> to vector<1x8x384xf32>
    tpu.vector_store %arg11[%c1_137, %c0_138, %c0_139], %301 {strides = array<i32>} : memref<8x8x384xf32, #tpu.memory_space<vmem>>, vector<1x8x384xf32>,
    %302 = vector.extract_strided_slice %293 {offsets = [16, 0], sizes = [8, 384], strides = [1, 1]} : vector<64x384xf32> to vector<8x384xf32>
    %c2_140 = arith.constant 2 : index
    %c0_141 = arith.constant 0 : index
    %c0_142 = arith.constant 0 : index
    %303 = vector.load %arg11[%c2_140, %c0_141, %c0_142] : memref<8x8x384xf32, #tpu.memory_space<vmem>>, vector<1x8x384xf32>
    %304 = vector.shape_cast %303 : vector<1x8x384xf32> to vector<8x384xf32>
    %305 = vector.shape_cast %302 : vector<8x384xf32> to vector<1x8x384xf32>
    tpu.vector_store %arg11[%c2_140, %c0_141, %c0_142], %305 {strides = array<i32>} : memref<8x8x384xf32, #tpu.memory_space<vmem>>, vector<1x8x384xf32>,
    %306 = vector.extract_strided_slice %293 {offsets = [24, 0], sizes = [8, 384], strides = [1, 1]} : vector<64x384xf32> to vector<8x384xf32>
    %c3_143 = arith.constant 3 : index
    %c0_144 = arith.constant 0 : index
    %c0_145 = arith.constant 0 : index
    %307 = vector.load %arg11[%c3_143, %c0_144, %c0_145] : memref<8x8x384xf32, #tpu.memory_space<vmem>>, vector<1x8x384xf32>
    %308 = vector.shape_cast %307 : vector<1x8x384xf32> to vector<8x384xf32>
    %309 = vector.shape_cast %306 : vector<8x384xf32> to vector<1x8x384xf32>
    tpu.vector_store %arg11[%c3_143, %c0_144, %c0_145], %309 {strides = array<i32>} : memref<8x8x384xf32, #tpu.memory_space<vmem>>, vector<1x8x384xf32>,
    %310 = vector.extract_strided_slice %293 {offsets = [32, 0], sizes = [8, 384], strides = [1, 1]} : vector<64x384xf32> to vector<8x384xf32>
    %c4_146 = arith.constant 4 : index
    %c0_147 = arith.constant 0 : index
    %c0_148 = arith.constant 0 : index
    %311 = vector.load %arg11[%c4_146, %c0_147, %c0_148] : memref<8x8x384xf32, #tpu.memory_space<vmem>>, vector<1x8x384xf32>
    %312 = vector.shape_cast %311 : vector<1x8x384xf32> to vector<8x384xf32>
    %313 = vector.shape_cast %310 : vector<8x384xf32> to vector<1x8x384xf32>
    tpu.vector_store %arg11[%c4_146, %c0_147, %c0_148], %313 {strides = array<i32>} : memref<8x8x384xf32, #tpu.memory_space<vmem>>, vector<1x8x384xf32>,
    %314 = vector.extract_strided_slice %293 {offsets = [40, 0], sizes = [8, 384], strides = [1, 1]} : vector<64x384xf32> to vector<8x384xf32>
    %c5_149 = arith.constant 5 : index
    %c0_150 = arith.constant 0 : index
    %c0_151 = arith.constant 0 : index
    %315 = vector.load %arg11[%c5_149, %c0_150, %c0_151] : memref<8x8x384xf32, #tpu.memory_space<vmem>>, vector<1x8x384xf32>
    %316 = vector.shape_cast %315 : vector<1x8x384xf32> to vector<8x384xf32>
    %317 = vector.shape_cast %314 : vector<8x384xf32> to vector<1x8x384xf32>
    tpu.vector_store %arg11[%c5_149, %c0_150, %c0_151], %317 {strides = array<i32>} : memref<8x8x384xf32, #tpu.memory_space<vmem>>, vector<1x8x384xf32>,
    %318 = vector.extract_strided_slice %293 {offsets = [48, 0], sizes = [8, 384], strides = [1, 1]} : vector<64x384xf32> to vector<8x384xf32>
    %c6_152 = arith.constant 6 : index
    %c0_153 = arith.constant 0 : index
    %c0_154 = arith.constant 0 : index
    %319 = vector.load %arg11[%c6_152, %c0_153, %c0_154] : memref<8x8x384xf32, #tpu.memory_space<vmem>>, vector<1x8x384xf32>
    %320 = vector.shape_cast %319 : vector<1x8x384xf32> to vector<8x384xf32>
    %321 = vector.shape_cast %318 : vector<8x384xf32> to vector<1x8x384xf32>
    tpu.vector_store %arg11[%c6_152, %c0_153, %c0_154], %321 {strides = array<i32>} : memref<8x8x384xf32, #tpu.memory_space<vmem>>, vector<1x8x384xf32>,
    %322 = vector.extract_strided_slice %293 {offsets = [56, 0], sizes = [8, 384], strides = [1, 1]} : vector<64x384xf32> to vector<8x384xf32>
    %c7_155 = arith.constant 7 : index
    %c0_156 = arith.constant 0 : index
    %c0_157 = arith.constant 0 : index
    %323 = vector.load %arg11[%c7_155, %c0_156, %c0_157] : memref<8x8x384xf32, #tpu.memory_space<vmem>>, vector<1x8x384xf32>
    %324 = vector.shape_cast %323 : vector<1x8x384xf32> to vector<8x384xf32>
    %325 = vector.shape_cast %322 : vector<8x384xf32> to vector<1x8x384xf32>
    tpu.vector_store %arg11[%c7_155, %c0_156, %c0_157], %325 {strides = array<i32>} : memref<8x8x384xf32, #tpu.memory_space<vmem>>, vector<1x8x384xf32>,
    %c1_158 = arith.constant 1 : index
    %c0_159 = arith.constant 0 : index
    %c0_160 = arith.constant 0 : index
    %326 = vector.load %arg1[%c1_158, %c0_159, %c0_160] : memref<2x8x32xf32, #tpu.memory_space<vmem>>, vector<1x8x32xf32>
    %327 = vector.shape_cast %326 : vector<1x8x32xf32> to vector<8x32xf32>
    %c0_161 = arith.constant 0 : index
    %c0_162 = arith.constant 0 : index
    %c0_163 = arith.constant 0 : index
    %328 = vector.load %arg11[%c0_161, %c0_162, %c0_163] : memref<8x8x384xf32, #tpu.memory_space<vmem>>, vector<1x8x384xf32>
    %329 = vector.shape_cast %328 : vector<1x8x384xf32> to vector<8x384xf32>
    %330 = arith.truncf %327 : vector<8x32xf32> to vector<8x32xbf16>
    %cst_164 = arith.constant dense<0.000000e+00> : vector<8x384xf32>
    %331 = tpu.matmul %330, %281, %cst_164 {dimension_numbers = #tpu.dot_dimension_numbers<[1], [0], [0], [1], [0, 0, 1, 1], [], []>} : vector<8x32xbf16>, vector<32x384xbf16>, vector<8x384xf32> -> vector<8x384xf32>
    %332 = vector.extract_strided_slice %329 {offsets = [0, 0], sizes = [8, 256], strides = [1, 1]} : vector<8x384xf32> to vector<8x256xf32>
    %333 = vector.extract_strided_slice %331 {offsets = [0, 0], sizes = [8, 256], strides = [1, 1]} : vector<8x384xf32> to vector<8x256xf32>
    %334 = arith.addf %332, %333 : vector<8x256xf32>
    %cst_165 = arith.constant 5.000000e-01 : f32
    %335 = vector.broadcast %cst_165 : f32 to vector<8x256xf32>
    %336 = arith.mulf %335, %334 : vector<8x256xf32>
    %337 = math.tanh %336 : vector<8x256xf32>
    %cst_166 = arith.constant 5.000000e-01 : f32
    %338 = vector.broadcast %cst_166 : f32 to vector<8x256xf32>
    %339 = arith.mulf %338, %337 : vector<8x256xf32>
    %cst_167 = arith.constant 5.000000e-01 : f32
    %340 = vector.broadcast %cst_167 : f32 to vector<8x256xf32>
    %341 = arith.addf %339, %340 : vector<8x256xf32>
    %342 = vector.extract_strided_slice %341 {offsets = [0, 0], sizes = [8, 32], strides = [1, 1]} : vector<8x256xf32> to vector<8x32xf32>
    %343 = vector.extract_strided_slice %341 {offsets = [0, 128], sizes = [8, 32], strides = [1, 1]} : vector<8x256xf32> to vector<8x32xf32>
    %344 = vector.extract_strided_slice %329 {offsets = [0, 256], sizes = [8, 32], strides = [1, 1]} : vector<8x384xf32> to vector<8x32xf32>
    %345 = vector.extract_strided_slice %331 {offsets = [0, 256], sizes = [8, 32], strides = [1, 1]} : vector<8x384xf32> to vector<8x32xf32>
    %346 = arith.addf %345, %287 : vector<8x32xf32>
    %347 = arith.mulf %342, %346 : vector<8x32xf32>
    %348 = arith.addf %344, %347 : vector<8x32xf32>
    %349 = math.tanh %348 : vector<8x32xf32>
    %350 = arith.subf %327, %349 : vector<8x32xf32>
    %351 = arith.mulf %343, %350 : vector<8x32xf32>
    %352 = arith.addf %349, %351 : vector<8x32xf32>
    %353 = math.tanh %352 : vector<8x32xf32>
    %c0_168 = arith.constant 0 : index
    %c0_169 = arith.constant 0 : index
    %c0_170 = arith.constant 0 : index
    %354 = vector.load %arg6[%c0_168, %c0_169, %c0_170] : memref<8x1x32xf32, #tpu.memory_space<vmem>>, vector<1x1x32xf32>
    %355 = vector.shape_cast %354 : vector<1x1x32xf32> to vector<1x32xf32>
    %356 = vector.broadcast %355 : vector<1x32xf32> to vector<8x32xf32>
    %357 = arith.mulf %353, %356 : vector<8x32xf32>
    %358 = arith.addf %0, %357 : vector<8x32xf32>
    %c1_171 = arith.constant 1 : index
    %c0_172 = arith.constant 0 : index
    %c0_173 = arith.constant 0 : index
    %359 = vector.load %arg11[%c1_171, %c0_172, %c0_173] : memref<8x8x384xf32, #tpu.memory_space<vmem>>, vector<1x8x384xf32>
    %360 = vector.shape_cast %359 : vector<1x8x384xf32> to vector<8x384xf32>
    %361 = arith.truncf %352 : vector<8x32xf32> to vector<8x32xbf16>
    %cst_174 = arith.constant dense<0.000000e+00> : vector<8x384xf32>
    %362 = tpu.matmul %361, %281, %cst_174 {dimension_numbers = #tpu.dot_dimension_numbers<[1], [0], [0], [1], [0, 0, 1, 1], [], []>} : vector<8x32xbf16>, vector<32x384xbf16>, vector<8x384xf32> -> vector<8x384xf32>
    %363 = vector.extract_strided_slice %360 {offsets = [0, 0], sizes = [8, 256], strides = [1, 1]} : vector<8x384xf32> to vector<8x256xf32>
    %364 = vector.extract_strided_slice %362 {offsets = [0, 0], sizes = [8, 256], strides = [1, 1]} : vector<8x384xf32> to vector<8x256xf32>
    %365 = arith.addf %363, %364 : vector<8x256xf32>
    %cst_175 = arith.constant 5.000000e-01 : f32
    %366 = vector.broadcast %cst_175 : f32 to vector<8x256xf32>
    %367 = arith.mulf %366, %365 : vector<8x256xf32>
    %368 = math.tanh %367 : vector<8x256xf32>
    %cst_176 = arith.constant 5.000000e-01 : f32
    %369 = vector.broadcast %cst_176 : f32 to vector<8x256xf32>
    %370 = arith.mulf %369, %368 : vector<8x256xf32>
    %cst_177 = arith.constant 5.000000e-01 : f32
    %371 = vector.broadcast %cst_177 : f32 to vector<8x256xf32>
    %372 = arith.addf %370, %371 : vector<8x256xf32>
    %373 = vector.extract_strided_slice %372 {offsets = [0, 0], sizes = [8, 32], strides = [1, 1]} : vector<8x256xf32> to vector<8x32xf32>
    %374 = vector.extract_strided_slice %372 {offsets = [0, 128], sizes = [8, 32], strides = [1, 1]} : vector<8x256xf32> to vector<8x32xf32>
    %375 = vector.extract_strided_slice %360 {offsets = [0, 256], sizes = [8, 32], strides = [1, 1]} : vector<8x384xf32> to vector<8x32xf32>
    %376 = vector.extract_strided_slice %362 {offsets = [0, 256], sizes = [8, 32], strides = [1, 1]} : vector<8x384xf32> to vector<8x32xf32>
    %377 = arith.addf %376, %287 : vector<8x32xf32>
    %378 = arith.mulf %373, %377 : vector<8x32xf32>
    %379 = arith.addf %375, %378 : vector<8x32xf32>
    %380 = math.tanh %379 : vector<8x32xf32>
    %381 = arith.subf %352, %380 : vector<8x32xf32>
    %382 = arith.mulf %374, %381 : vector<8x32xf32>
    %383 = arith.addf %380, %382 : vector<8x32xf32>
    %384 = math.tanh %383 : vector<8x32xf32>
    %c1_178 = arith.constant 1 : index
    %c0_179 = arith.constant 0 : index
    %c0_180 = arith.constant 0 : index
    %385 = vector.load %arg6[%c1_178, %c0_179, %c0_180] : memref<8x1x32xf32, #tpu.memory_space<vmem>>, vector<1x1x32xf32>
    %386 = vector.shape_cast %385 : vector<1x1x32xf32> to vector<1x32xf32>
    %387 = vector.broadcast %386 : vector<1x32xf32> to vector<8x32xf32>
    %388 = arith.mulf %384, %387 : vector<8x32xf32>
    %389 = arith.addf %358, %388 : vector<8x32xf32>
    %c2_181 = arith.constant 2 : index
    %c0_182 = arith.constant 0 : index
    %c0_183 = arith.constant 0 : index
    %390 = vector.load %arg11[%c2_181, %c0_182, %c0_183] : memref<8x8x384xf32, #tpu.memory_space<vmem>>, vector<1x8x384xf32>
    %391 = vector.shape_cast %390 : vector<1x8x384xf32> to vector<8x384xf32>
    %392 = arith.truncf %383 : vector<8x32xf32> to vector<8x32xbf16>
    %cst_184 = arith.constant dense<0.000000e+00> : vector<8x384xf32>
    %393 = tpu.matmul %392, %281, %cst_184 {dimension_numbers = #tpu.dot_dimension_numbers<[1], [0], [0], [1], [0, 0, 1, 1], [], []>} : vector<8x32xbf16>, vector<32x384xbf16>, vector<8x384xf32> -> vector<8x384xf32>
    %394 = vector.extract_strided_slice %391 {offsets = [0, 0], sizes = [8, 256], strides = [1, 1]} : vector<8x384xf32> to vector<8x256xf32>
    %395 = vector.extract_strided_slice %393 {offsets = [0, 0], sizes = [8, 256], strides = [1, 1]} : vector<8x384xf32> to vector<8x256xf32>
    %396 = arith.addf %394, %395 : vector<8x256xf32>
    %cst_185 = arith.constant 5.000000e-01 : f32
    %397 = vector.broadcast %cst_185 : f32 to vector<8x256xf32>
    %398 = arith.mulf %397, %396 : vector<8x256xf32>
    %399 = math.tanh %398 : vector<8x256xf32>
    %cst_186 = arith.constant 5.000000e-01 : f32
    %400 = vector.broadcast %cst_186 : f32 to vector<8x256xf32>
    %401 = arith.mulf %400, %399 : vector<8x256xf32>
    %cst_187 = arith.constant 5.000000e-01 : f32
    %402 = vector.broadcast %cst_187 : f32 to vector<8x256xf32>
    %403 = arith.addf %401, %402 : vector<8x256xf32>
    %404 = vector.extract_strided_slice %403 {offsets = [0, 0], sizes = [8, 32], strides = [1, 1]} : vector<8x256xf32> to vector<8x32xf32>
    %405 = vector.extract_strided_slice %403 {offsets = [0, 128], sizes = [8, 32], strides = [1, 1]} : vector<8x256xf32> to vector<8x32xf32>
    %406 = vector.extract_strided_slice %391 {offsets = [0, 256], sizes = [8, 32], strides = [1, 1]} : vector<8x384xf32> to vector<8x32xf32>
    %407 = vector.extract_strided_slice %393 {offsets = [0, 256], sizes = [8, 32], strides = [1, 1]} : vector<8x384xf32> to vector<8x32xf32>
    %408 = arith.addf %407, %287 : vector<8x32xf32>
    %409 = arith.mulf %404, %408 : vector<8x32xf32>
    %410 = arith.addf %406, %409 : vector<8x32xf32>
    %411 = math.tanh %410 : vector<8x32xf32>
    %412 = arith.subf %383, %411 : vector<8x32xf32>
    %413 = arith.mulf %405, %412 : vector<8x32xf32>
    %414 = arith.addf %411, %413 : vector<8x32xf32>
    %415 = math.tanh %414 : vector<8x32xf32>
    %c2_188 = arith.constant 2 : index
    %c0_189 = arith.constant 0 : index
    %c0_190 = arith.constant 0 : index
    %416 = vector.load %arg6[%c2_188, %c0_189, %c0_190] : memref<8x1x32xf32, #tpu.memory_space<vmem>>, vector<1x1x32xf32>
    %417 = vector.shape_cast %416 : vector<1x1x32xf32> to vector<1x32xf32>
    %418 = vector.broadcast %417 : vector<1x32xf32> to vector<8x32xf32>
    %419 = arith.mulf %415, %418 : vector<8x32xf32>
    %420 = arith.addf %389, %419 : vector<8x32xf32>
    %c3_191 = arith.constant 3 : index
    %c0_192 = arith.constant 0 : index
    %c0_193 = arith.constant 0 : index
    %421 = vector.load %arg11[%c3_191, %c0_192, %c0_193] : memref<8x8x384xf32, #tpu.memory_space<vmem>>, vector<1x8x384xf32>
    %422 = vector.shape_cast %421 : vector<1x8x384xf32> to vector<8x384xf32>
    %423 = arith.truncf %414 : vector<8x32xf32> to vector<8x32xbf16>
    %cst_194 = arith.constant dense<0.000000e+00> : vector<8x384xf32>
    %424 = tpu.matmul %423, %281, %cst_194 {dimension_numbers = #tpu.dot_dimension_numbers<[1], [0], [0], [1], [0, 0, 1, 1], [], []>} : vector<8x32xbf16>, vector<32x384xbf16>, vector<8x384xf32> -> vector<8x384xf32>
    %425 = vector.extract_strided_slice %422 {offsets = [0, 0], sizes = [8, 256], strides = [1, 1]} : vector<8x384xf32> to vector<8x256xf32>
    %426 = vector.extract_strided_slice %424 {offsets = [0, 0], sizes = [8, 256], strides = [1, 1]} : vector<8x384xf32> to vector<8x256xf32>
    %427 = arith.addf %425, %426 : vector<8x256xf32>
    %cst_195 = arith.constant 5.000000e-01 : f32
    %428 = vector.broadcast %cst_195 : f32 to vector<8x256xf32>
    %429 = arith.mulf %428, %427 : vector<8x256xf32>
    %430 = math.tanh %429 : vector<8x256xf32>
    %cst_196 = arith.constant 5.000000e-01 : f32
    %431 = vector.broadcast %cst_196 : f32 to vector<8x256xf32>
    %432 = arith.mulf %431, %430 : vector<8x256xf32>
    %cst_197 = arith.constant 5.000000e-01 : f32
    %433 = vector.broadcast %cst_197 : f32 to vector<8x256xf32>
    %434 = arith.addf %432, %433 : vector<8x256xf32>
    %435 = vector.extract_strided_slice %434 {offsets = [0, 0], sizes = [8, 32], strides = [1, 1]} : vector<8x256xf32> to vector<8x32xf32>
    %436 = vector.extract_strided_slice %434 {offsets = [0, 128], sizes = [8, 32], strides = [1, 1]} : vector<8x256xf32> to vector<8x32xf32>
    %437 = vector.extract_strided_slice %422 {offsets = [0, 256], sizes = [8, 32], strides = [1, 1]} : vector<8x384xf32> to vector<8x32xf32>
    %438 = vector.extract_strided_slice %424 {offsets = [0, 256], sizes = [8, 32], strides = [1, 1]} : vector<8x384xf32> to vector<8x32xf32>
    %439 = arith.addf %438, %287 : vector<8x32xf32>
    %440 = arith.mulf %435, %439 : vector<8x32xf32>
    %441 = arith.addf %437, %440 : vector<8x32xf32>
    %442 = math.tanh %441 : vector<8x32xf32>
    %443 = arith.subf %414, %442 : vector<8x32xf32>
    %444 = arith.mulf %436, %443 : vector<8x32xf32>
    %445 = arith.addf %442, %444 : vector<8x32xf32>
    %446 = math.tanh %445 : vector<8x32xf32>
    %c3_198 = arith.constant 3 : index
    %c0_199 = arith.constant 0 : index
    %c0_200 = arith.constant 0 : index
    %447 = vector.load %arg6[%c3_198, %c0_199, %c0_200] : memref<8x1x32xf32, #tpu.memory_space<vmem>>, vector<1x1x32xf32>
    %448 = vector.shape_cast %447 : vector<1x1x32xf32> to vector<1x32xf32>
    %449 = vector.broadcast %448 : vector<1x32xf32> to vector<8x32xf32>
    %450 = arith.mulf %446, %449 : vector<8x32xf32>
    %451 = arith.addf %420, %450 : vector<8x32xf32>
    %c4_201 = arith.constant 4 : index
    %c0_202 = arith.constant 0 : index
    %c0_203 = arith.constant 0 : index
    %452 = vector.load %arg11[%c4_201, %c0_202, %c0_203] : memref<8x8x384xf32, #tpu.memory_space<vmem>>, vector<1x8x384xf32>
    %453 = vector.shape_cast %452 : vector<1x8x384xf32> to vector<8x384xf32>
    %454 = arith.truncf %445 : vector<8x32xf32> to vector<8x32xbf16>
    %cst_204 = arith.constant dense<0.000000e+00> : vector<8x384xf32>
    %455 = tpu.matmul %454, %281, %cst_204 {dimension_numbers = #tpu.dot_dimension_numbers<[1], [0], [0], [1], [0, 0, 1, 1], [], []>} : vector<8x32xbf16>, vector<32x384xbf16>, vector<8x384xf32> -> vector<8x384xf32>
    %456 = vector.extract_strided_slice %453 {offsets = [0, 0], sizes = [8, 256], strides = [1, 1]} : vector<8x384xf32> to vector<8x256xf32>
    %457 = vector.extract_strided_slice %455 {offsets = [0, 0], sizes = [8, 256], strides = [1, 1]} : vector<8x384xf32> to vector<8x256xf32>
    %458 = arith.addf %456, %457 : vector<8x256xf32>
    %cst_205 = arith.constant 5.000000e-01 : f32
    %459 = vector.broadcast %cst_205 : f32 to vector<8x256xf32>
    %460 = arith.mulf %459, %458 : vector<8x256xf32>
    %461 = math.tanh %460 : vector<8x256xf32>
    %cst_206 = arith.constant 5.000000e-01 : f32
    %462 = vector.broadcast %cst_206 : f32 to vector<8x256xf32>
    %463 = arith.mulf %462, %461 : vector<8x256xf32>
    %cst_207 = arith.constant 5.000000e-01 : f32
    %464 = vector.broadcast %cst_207 : f32 to vector<8x256xf32>
    %465 = arith.addf %463, %464 : vector<8x256xf32>
    %466 = vector.extract_strided_slice %465 {offsets = [0, 0], sizes = [8, 32], strides = [1, 1]} : vector<8x256xf32> to vector<8x32xf32>
    %467 = vector.extract_strided_slice %465 {offsets = [0, 128], sizes = [8, 32], strides = [1, 1]} : vector<8x256xf32> to vector<8x32xf32>
    %468 = vector.extract_strided_slice %453 {offsets = [0, 256], sizes = [8, 32], strides = [1, 1]} : vector<8x384xf32> to vector<8x32xf32>
    %469 = vector.extract_strided_slice %455 {offsets = [0, 256], sizes = [8, 32], strides = [1, 1]} : vector<8x384xf32> to vector<8x32xf32>
    %470 = arith.addf %469, %287 : vector<8x32xf32>
    %471 = arith.mulf %466, %470 : vector<8x32xf32>
    %472 = arith.addf %468, %471 : vector<8x32xf32>
    %473 = math.tanh %472 : vector<8x32xf32>
    %474 = arith.subf %445, %473 : vector<8x32xf32>
    %475 = arith.mulf %467, %474 : vector<8x32xf32>
    %476 = arith.addf %473, %475 : vector<8x32xf32>
    %477 = math.tanh %476 : vector<8x32xf32>
    %c4_208 = arith.constant 4 : index
    %c0_209 = arith.constant 0 : index
    %c0_210 = arith.constant 0 : index
    %478 = vector.load %arg6[%c4_208, %c0_209, %c0_210] : memref<8x1x32xf32, #tpu.memory_space<vmem>>, vector<1x1x32xf32>
    %479 = vector.shape_cast %478 : vector<1x1x32xf32> to vector<1x32xf32>
    %480 = vector.broadcast %479 : vector<1x32xf32> to vector<8x32xf32>
    %481 = arith.mulf %477, %480 : vector<8x32xf32>
    %482 = arith.addf %451, %481 : vector<8x32xf32>
    %c5_211 = arith.constant 5 : index
    %c0_212 = arith.constant 0 : index
    %c0_213 = arith.constant 0 : index
    %483 = vector.load %arg11[%c5_211, %c0_212, %c0_213] : memref<8x8x384xf32, #tpu.memory_space<vmem>>, vector<1x8x384xf32>
    %484 = vector.shape_cast %483 : vector<1x8x384xf32> to vector<8x384xf32>
    %485 = arith.truncf %476 : vector<8x32xf32> to vector<8x32xbf16>
    %cst_214 = arith.constant dense<0.000000e+00> : vector<8x384xf32>
    %486 = tpu.matmul %485, %281, %cst_214 {dimension_numbers = #tpu.dot_dimension_numbers<[1], [0], [0], [1], [0, 0, 1, 1], [], []>} : vector<8x32xbf16>, vector<32x384xbf16>, vector<8x384xf32> -> vector<8x384xf32>
    %487 = vector.extract_strided_slice %484 {offsets = [0, 0], sizes = [8, 256], strides = [1, 1]} : vector<8x384xf32> to vector<8x256xf32>
    %488 = vector.extract_strided_slice %486 {offsets = [0, 0], sizes = [8, 256], strides = [1, 1]} : vector<8x384xf32> to vector<8x256xf32>
    %489 = arith.addf %487, %488 : vector<8x256xf32>
    %cst_215 = arith.constant 5.000000e-01 : f32
    %490 = vector.broadcast %cst_215 : f32 to vector<8x256xf32>
    %491 = arith.mulf %490, %489 : vector<8x256xf32>
    %492 = math.tanh %491 : vector<8x256xf32>
    %cst_216 = arith.constant 5.000000e-01 : f32
    %493 = vector.broadcast %cst_216 : f32 to vector<8x256xf32>
    %494 = arith.mulf %493, %492 : vector<8x256xf32>
    %cst_217 = arith.constant 5.000000e-01 : f32
    %495 = vector.broadcast %cst_217 : f32 to vector<8x256xf32>
    %496 = arith.addf %494, %495 : vector<8x256xf32>
    %497 = vector.extract_strided_slice %496 {offsets = [0, 0], sizes = [8, 32], strides = [1, 1]} : vector<8x256xf32> to vector<8x32xf32>
    %498 = vector.extract_strided_slice %496 {offsets = [0, 128], sizes = [8, 32], strides = [1, 1]} : vector<8x256xf32> to vector<8x32xf32>
    %499 = vector.extract_strided_slice %484 {offsets = [0, 256], sizes = [8, 32], strides = [1, 1]} : vector<8x384xf32> to vector<8x32xf32>
    %500 = vector.extract_strided_slice %486 {offsets = [0, 256], sizes = [8, 32], strides = [1, 1]} : vector<8x384xf32> to vector<8x32xf32>
    %501 = arith.addf %500, %287 : vector<8x32xf32>
    %502 = arith.mulf %497, %501 : vector<8x32xf32>
    %503 = arith.addf %499, %502 : vector<8x32xf32>
    %504 = math.tanh %503 : vector<8x32xf32>
    %505 = arith.subf %476, %504 : vector<8x32xf32>
    %506 = arith.mulf %498, %505 : vector<8x32xf32>
    %507 = arith.addf %504, %506 : vector<8x32xf32>
    %508 = math.tanh %507 : vector<8x32xf32>
    %c5_218 = arith.constant 5 : index
    %c0_219 = arith.constant 0 : index
    %c0_220 = arith.constant 0 : index
    %509 = vector.load %arg6[%c5_218, %c0_219, %c0_220] : memref<8x1x32xf32, #tpu.memory_space<vmem>>, vector<1x1x32xf32>
    %510 = vector.shape_cast %509 : vector<1x1x32xf32> to vector<1x32xf32>
    %511 = vector.broadcast %510 : vector<1x32xf32> to vector<8x32xf32>
    %512 = arith.mulf %508, %511 : vector<8x32xf32>
    %513 = arith.addf %482, %512 : vector<8x32xf32>
    %c6_221 = arith.constant 6 : index
    %c0_222 = arith.constant 0 : index
    %c0_223 = arith.constant 0 : index
    %514 = vector.load %arg11[%c6_221, %c0_222, %c0_223] : memref<8x8x384xf32, #tpu.memory_space<vmem>>, vector<1x8x384xf32>
    %515 = vector.shape_cast %514 : vector<1x8x384xf32> to vector<8x384xf32>
    %516 = arith.truncf %507 : vector<8x32xf32> to vector<8x32xbf16>
    %cst_224 = arith.constant dense<0.000000e+00> : vector<8x384xf32>
    %517 = tpu.matmul %516, %281, %cst_224 {dimension_numbers = #tpu.dot_dimension_numbers<[1], [0], [0], [1], [0, 0, 1, 1], [], []>} : vector<8x32xbf16>, vector<32x384xbf16>, vector<8x384xf32> -> vector<8x384xf32>
    %518 = vector.extract_strided_slice %515 {offsets = [0, 0], sizes = [8, 256], strides = [1, 1]} : vector<8x384xf32> to vector<8x256xf32>
    %519 = vector.extract_strided_slice %517 {offsets = [0, 0], sizes = [8, 256], strides = [1, 1]} : vector<8x384xf32> to vector<8x256xf32>
    %520 = arith.addf %518, %519 : vector<8x256xf32>
    %cst_225 = arith.constant 5.000000e-01 : f32
    %521 = vector.broadcast %cst_225 : f32 to vector<8x256xf32>
    %522 = arith.mulf %521, %520 : vector<8x256xf32>
    %523 = math.tanh %522 : vector<8x256xf32>
    %cst_226 = arith.constant 5.000000e-01 : f32
    %524 = vector.broadcast %cst_226 : f32 to vector<8x256xf32>
    %525 = arith.mulf %524, %523 : vector<8x256xf32>
    %cst_227 = arith.constant 5.000000e-01 : f32
    %526 = vector.broadcast %cst_227 : f32 to vector<8x256xf32>
    %527 = arith.addf %525, %526 : vector<8x256xf32>
    %528 = vector.extract_strided_slice %527 {offsets = [0, 0], sizes = [8, 32], strides = [1, 1]} : vector<8x256xf32> to vector<8x32xf32>
    %529 = vector.extract_strided_slice %527 {offsets = [0, 128], sizes = [8, 32], strides = [1, 1]} : vector<8x256xf32> to vector<8x32xf32>
    %530 = vector.extract_strided_slice %515 {offsets = [0, 256], sizes = [8, 32], strides = [1, 1]} : vector<8x384xf32> to vector<8x32xf32>
    %531 = vector.extract_strided_slice %517 {offsets = [0, 256], sizes = [8, 32], strides = [1, 1]} : vector<8x384xf32> to vector<8x32xf32>
    %532 = arith.addf %531, %287 : vector<8x32xf32>
    %533 = arith.mulf %528, %532 : vector<8x32xf32>
    %534 = arith.addf %530, %533 : vector<8x32xf32>
    %535 = math.tanh %534 : vector<8x32xf32>
    %536 = arith.subf %507, %535 : vector<8x32xf32>
    %537 = arith.mulf %529, %536 : vector<8x32xf32>
    %538 = arith.addf %535, %537 : vector<8x32xf32>
    %539 = math.tanh %538 : vector<8x32xf32>
    %c6_228 = arith.constant 6 : index
    %c0_229 = arith.constant 0 : index
    %c0_230 = arith.constant 0 : index
    %540 = vector.load %arg6[%c6_228, %c0_229, %c0_230] : memref<8x1x32xf32, #tpu.memory_space<vmem>>, vector<1x1x32xf32>
    %541 = vector.shape_cast %540 : vector<1x1x32xf32> to vector<1x32xf32>
    %542 = vector.broadcast %541 : vector<1x32xf32> to vector<8x32xf32>
    %543 = arith.mulf %539, %542 : vector<8x32xf32>
    %544 = arith.addf %513, %543 : vector<8x32xf32>
    %c7_231 = arith.constant 7 : index
    %c0_232 = arith.constant 0 : index
    %c0_233 = arith.constant 0 : index
    %545 = vector.load %arg11[%c7_231, %c0_232, %c0_233] : memref<8x8x384xf32, #tpu.memory_space<vmem>>, vector<1x8x384xf32>
    %546 = vector.shape_cast %545 : vector<1x8x384xf32> to vector<8x384xf32>
    %547 = arith.truncf %538 : vector<8x32xf32> to vector<8x32xbf16>
    %cst_234 = arith.constant dense<0.000000e+00> : vector<8x384xf32>
    %548 = tpu.matmul %547, %281, %cst_234 {dimension_numbers = #tpu.dot_dimension_numbers<[1], [0], [0], [1], [0, 0, 1, 1], [], []>} : vector<8x32xbf16>, vector<32x384xbf16>, vector<8x384xf32> -> vector<8x384xf32>
    %549 = vector.extract_strided_slice %546 {offsets = [0, 0], sizes = [8, 256], strides = [1, 1]} : vector<8x384xf32> to vector<8x256xf32>
    %550 = vector.extract_strided_slice %548 {offsets = [0, 0], sizes = [8, 256], strides = [1, 1]} : vector<8x384xf32> to vector<8x256xf32>
    %551 = arith.addf %549, %550 : vector<8x256xf32>
    %cst_235 = arith.constant 5.000000e-01 : f32
    %552 = vector.broadcast %cst_235 : f32 to vector<8x256xf32>
    %553 = arith.mulf %552, %551 : vector<8x256xf32>
    %554 = math.tanh %553 : vector<8x256xf32>
    %cst_236 = arith.constant 5.000000e-01 : f32
    %555 = vector.broadcast %cst_236 : f32 to vector<8x256xf32>
    %556 = arith.mulf %555, %554 : vector<8x256xf32>
    %cst_237 = arith.constant 5.000000e-01 : f32
    %557 = vector.broadcast %cst_237 : f32 to vector<8x256xf32>
    %558 = arith.addf %556, %557 : vector<8x256xf32>
    %559 = vector.extract_strided_slice %558 {offsets = [0, 0], sizes = [8, 32], strides = [1, 1]} : vector<8x256xf32> to vector<8x32xf32>
    %560 = vector.extract_strided_slice %558 {offsets = [0, 128], sizes = [8, 32], strides = [1, 1]} : vector<8x256xf32> to vector<8x32xf32>
    %561 = vector.extract_strided_slice %546 {offsets = [0, 256], sizes = [8, 32], strides = [1, 1]} : vector<8x384xf32> to vector<8x32xf32>
    %562 = vector.extract_strided_slice %548 {offsets = [0, 256], sizes = [8, 32], strides = [1, 1]} : vector<8x384xf32> to vector<8x32xf32>
    %563 = arith.addf %562, %287 : vector<8x32xf32>
    %564 = arith.mulf %559, %563 : vector<8x32xf32>
    %565 = arith.addf %561, %564 : vector<8x32xf32>
    %566 = math.tanh %565 : vector<8x32xf32>
    %567 = arith.subf %538, %566 : vector<8x32xf32>
    %568 = arith.mulf %560, %567 : vector<8x32xf32>
    %569 = arith.addf %566, %568 : vector<8x32xf32>
    %570 = math.tanh %569 : vector<8x32xf32>
    %c7_238 = arith.constant 7 : index
    %c0_239 = arith.constant 0 : index
    %c0_240 = arith.constant 0 : index
    %571 = vector.load %arg6[%c7_238, %c0_239, %c0_240] : memref<8x1x32xf32, #tpu.memory_space<vmem>>, vector<1x1x32xf32>
    %572 = vector.shape_cast %571 : vector<1x1x32xf32> to vector<1x32xf32>
    %573 = vector.broadcast %572 : vector<1x32xf32> to vector<8x32xf32>
    %574 = arith.mulf %570, %573 : vector<8x32xf32>
    %575 = arith.addf %544, %574 : vector<8x32xf32>
    %c1_241 = arith.constant 1 : index
    %c0_242 = arith.constant 0 : index
    %c0_243 = arith.constant 0 : index
    %576 = vector.load %arg9[%c1_241, %c0_242, %c0_243] : memref<2x8x32xf32, #tpu.memory_space<vmem>>, vector<1x8x32xf32>
    %577 = vector.shape_cast %576 : vector<1x8x32xf32> to vector<8x32xf32>
    %578 = vector.shape_cast %569 : vector<8x32xf32> to vector<1x8x32xf32>
    tpu.vector_store %arg9[%c1_241, %c0_242, %c0_243], %578 {strides = array<i32>} : memref<2x8x32xf32, #tpu.memory_space<vmem>>, vector<1x8x32xf32>,
    %cst_244 = arith.constant dense<0.000000e+00> : vector<8xf32>
    %579 = vector.multi_reduction <add>, %575, %cst_244 [1] : vector<8x32xf32> to vector<8xf32>
    %580 = vector.shape_cast %579 : vector<8xf32> to vector<8x1xf32>
    %c0_245 = arith.constant 0 : index
    %c0_246 = arith.constant 0 : index
    %581 = vector.load %arg7[%c0_245, %c0_246] : memref<1x1xf32, #tpu.memory_space<vmem>>, vector<1x1xf32>
    %582 = vector.broadcast %581 : vector<1x1xf32> to vector<8x1xf32>
    %583 = arith.addf %580, %582 : vector<8x1xf32>
    %c0_247 = arith.constant 0 : index
    %c0_248 = arith.constant 0 : index
    %584 = vector.load %arg8[%c0_247, %c0_248] : memref<8x1xf32, #tpu.memory_space<vmem>>, vector<8x1xf32>
    tpu.vector_store %arg8[%c0_247, %c0_248], %583 {strides = array<i32>} : memref<8x1xf32, #tpu.memory_space<vmem>>, vector<8x1xf32>,
    return
  }
}

</mosaic_0001>

<llo_original>
// kernel: tpu_custom_call.1
$region0: #{tpu_custom_call.1}
  #allocation0 [shape = 'u32[]', space=smem, size = 0x4, offset = 0x4, fixed_abs, tag = 'smem constant byte address 0x4 - core index']
  #allocation1 [shape = 'u32[144,128]{1,0:T(1,128)}', space=vmem, size = 0x12000, scoped, tag = 'internal scratch']
  #allocation2 [shape = 'f32[8,8,32]{2,1,0:T(8,128)}', space=vmem, size = 0x8000, scoped, tag = 'scratch operand']
  #allocation3 [shape = 'f32[8,8,384]{2,1,0:T(8,128)}', space=vmem, size = 0x18000, scoped, tag = 'scratch operand']
  #allocation4 [shape = 'f32[1,1]{1,0:T(1,128)S(1)}', space=vmem, size = 0x200, scoped, tag = 'scoped memory for tpu_custom_call.1']
  %s0 = inlined_call_operand.hbm [shape: f32[8,8,32], index: 0, kind: input, shape index: {}]
  %s1 = inlined_call_operand.hbm [shape: f32[2,8,32], index: 1, kind: input, shape index: {}]
  %s2 = inlined_call_operand.hbm [shape: bf16[2,32,384], index: 2, kind: input, shape index: {}]
  %s3 = inlined_call_operand.hbm [shape: bf16[2,32,384], index: 3, kind: input, shape index: {}]
  %s4 = inlined_call_operand.vmem [shape: f32[2,1,384], index: 4, kind: input, shape index: {}]
  %s5 = inlined_call_operand.vmem [shape: f32[2,1,32], index: 5, kind: input, shape index: {}]
  %s6 = inlined_call_operand.vmem [shape: f32[8,1,32], index: 6, kind: input, shape index: {}]
  %s7 = inlined_call_operand.<no memory space> [shape: f32[1,1], index: 7, kind: input, shape index: {}]
  %s8 = inlined_call_operand.vmem [shape: f32[8,1], index: 8, kind: output, shape index: {0}]
  %s9 = inlined_call_operand.hbm [shape: f32[2,8,32], index: 9, kind: output, shape index: {1}]
  %10 = xla_tuple %s8, %s9
  %s11 = sld [smem:[#allocation0]]
  $region66: #{tpu_custom_call.1} parent=0
    _
  %s13 = ssub.s32 1, %s11
  %s14 = scalar_select 0, %s13, %s11
  %v15 = vstv %s7
  %16 = vst [vmem:[#allocation4] sm:$0x1] %v15
  $region1: #{tpu_custom_call.1} parent=0
    #allocation5 [shape = 'u8[32768]{0}', space=vmem, size = 0x8000, scoped, tag = 'input window, operand 0, single buffered']
    #allocation6 [shape = 's32[1]{0}', space=sflag, size = 0x4, scoped, tag = 'scoped memory for tpu_custom_call.1']
    #allocation7 [shape = 's32[1]{0}', space=sflag, size = 0x4, scoped, tag = 'scoped memory for tpu_custom_call.1']
    #allocation8 [shape = 'u8[8192]{0}', space=vmem, size = 0x2000, scoped, tag = 'input window, operand 1, single buffered']
    #allocation9 [shape = 's32[1]{0}', space=sflag, size = 0x4, scoped, tag = 'scoped memory for tpu_custom_call.1']
    #allocation10 [shape = 'u8[49152]{0}', space=vmem, size = 0xc000, scoped, tag = 'input window, operand 2, single buffered']
    #allocation11 [shape = 'u8[49152]{0}', space=vmem, size = 0xc000, scoped, tag = 'input window, operand 3, single buffered']
    #allocation12 [shape = 's32[1]{0}', space=sflag, size = 0x4, scoped, tag = 'scoped memory for tpu_custom_call.1']
    #allocation13 [shape = 'u8[8192]{0}', space=vmem, size = 0x2000, scoped, tag = 'output window, operand 1, single buffered']
    %17 = vsyncpa [#allocation6], 0
    %18 = vsyncpa [#allocation9], 0
    %19 = vsyncpa [#allocation12], 0
    %20 = vsyncpa [#allocation7], 0
    // Predicated region
    $region2: #{tpu_custom_call.1} parent=1 // pred_check
      _
    $region3: #{tpu_custom_call.1} parent=1 // pred_check_branch
      %22 = sbr.rel (0) target = $region5
    $region4: #{tpu_custom_call.1} parent=1 // pred_region
      %s24 = ssub.s32 1024, 1024
      %25 = vsyncadd [#allocation6], %s24
      %s26 = sshll.u32 [#allocation5], 4
      %s27 = int_to_ptr.vmem [resolvable:$true] %s26
      %32 = dma.hbm_to_vmem [thread:$0]  %s0, 1024, %s27, [#allocation6], 128, 128, 8
    $region5: #{tpu_custom_call.1} parent=1 // pred_fallthru
      _
    // Predicated region
    $region6: #{tpu_custom_call.1} parent=1 // pred_check
      _
    $region7: #{tpu_custom_call.1} parent=1 // pred_check_branch
      %34 = sbr.rel (0) target = $region9
    $region8: #{tpu_custom_call.1} parent=1 // pred_region
      %s36 = ssub.s32 256, 256
      %37 = vsyncadd [#allocation9], %s36
      %s38 = sshll.u32 [#allocation8], 4
      %s39 = int_to_ptr.vmem [resolvable:$true] %s38
      %44 = dma.hbm_to_vmem [thread:$0]  %s1, 256, %s39, [#allocation9], 128, 128, 8
    $region9: #{tpu_custom_call.1} parent=1 // pred_fallthru
      _
    // Predicated region
    $region10: #{tpu_custom_call.1} parent=1 // pred_check
      _
    $region11: #{tpu_custom_call.1} parent=1 // pred_check_branch
      %46 = sbr.rel (0) target = $region13
    $region12: #{tpu_custom_call.1} parent=1 // pred_region
      %s48 = ssub.s32 1536, 1536
      %49 = vsyncadd [#allocation9], %s48
      %s50 = sshll.u32 [#allocation10], 4
      %s51 = int_to_ptr.vmem [resolvable:$true] %s50
      %56 = dma.hbm_to_vmem [thread:$0]  %s2, 1536, %s51, [#allocation9], 192, 192, 12
    $region13: #{tpu_custom_call.1} parent=1 // pred_fallthru
      _
    // Predicated region
    $region14: #{tpu_custom_call.1} parent=1 // pred_check
      _
    $region15: #{tpu_custom_call.1} parent=1 // pred_check_branch
      %58 = sbr.rel (0) target = $region17
    $region16: #{tpu_custom_call.1} parent=1 // pred_region
      %s60 = ssub.s32 1536, 1536
      %61 = vsyncadd [#allocation12], %s60
      %s62 = sshll.u32 [#allocation11], 4
      %s63 = int_to_ptr.vmem [resolvable:$true] %s62
      %68 = dma.hbm_to_vmem [thread:$0]  %s3, 1536, %s63, [#allocation12], 192, 192, 12
    $region17: #{tpu_custom_call.1} parent=1 // pred_fallthru
      _
    // Predicated region
    $region18: #{tpu_custom_call.1} parent=1 // pred_check
      _
    $region19: #{tpu_custom_call.1} parent=1 // pred_check_branch
      %70 = sbr.rel (0) target = $region21
    $region20: #{tpu_custom_call.1} parent=1 // pred_region
      _
    $region21: #{tpu_custom_call.1} parent=1 // pred_fallthru
      _
    // Predicated region
    $region22: #{tpu_custom_call.1} parent=1 // pred_check
      _
    $region23: #{tpu_custom_call.1} parent=1 // pred_check_branch
      %72 = sbr.rel (0) target = $region25
    $region24: #{tpu_custom_call.1} parent=1 // pred_region
      _
    $region25: #{tpu_custom_call.1} parent=1 // pred_fallthru
      _
    // Predicated region
    $region26: #{tpu_custom_call.1} parent=1 // pred_check
      _
    $region27: #{tpu_custom_call.1} parent=1 // pred_check_branch
      %74 = sbr.rel (0) target = $region29
    $region28: #{tpu_custom_call.1} parent=1 // pred_region
      _
    $region29: #{tpu_custom_call.1} parent=1 // pred_fallthru
      _
    // Predicated region
    $region30: #{tpu_custom_call.1} parent=1 // pred_check
      _
    $region31: #{tpu_custom_call.1} parent=1 // pred_check_branch
      %76 = sbr.rel (0) target = $region33
    $region32: #{tpu_custom_call.1} parent=1 // pred_region
      _
    $region33: #{tpu_custom_call.1} parent=1 // pred_fallthru
      _
    // Predicated region
    $region34: #{tpu_custom_call.1} parent=1 // pred_check
      _
    $region35: #{tpu_custom_call.1} parent=1 // pred_check_branch
      %78 = sbr.rel (0) target = $region37
    $region36: #{tpu_custom_call.1} parent=1 // pred_region
      %79 = dma.done [#allocation6], 1024
    $region37: #{tpu_custom_call.1} parent=1 // pred_fallthru
      _
    // Predicated region
    $region38: #{tpu_custom_call.1} parent=1 // pred_check
      _
    $region39: #{tpu_custom_call.1} parent=1 // pred_check_branch
      %81 = sbr.rel (0) target = $region41
    $region40: #{tpu_custom_call.1} parent=1 // pred_region
      %82 = dma.done [#allocation9], 256
    $region41: #{tpu_custom_call.1} parent=1 // pred_fallthru
      _
    // Predicated region
    $region42: #{tpu_custom_call.1} parent=1 // pred_check
      _
    $region43: #{tpu_custom_call.1} parent=1 // pred_check_branch
      %84 = sbr.rel (0) target = $region45
    $region44: #{tpu_custom_call.1} parent=1 // pred_region
      %85 = dma.done [#allocation9], 1536
    $region45: #{tpu_custom_call.1} parent=1 // pred_fallthru
      _
    // Predicated region
    $region46: #{tpu_custom_call.1} parent=1 // pred_check
      _
    $region47: #{tpu_custom_call.1} parent=1 // pred_check_branch
      %87 = sbr.rel (0) target = $region49
    $region48: #{tpu_custom_call.1} parent=1 // pred_region
      %88 = dma.done [#allocation12], 1536
    $region49: #{tpu_custom_call.1} parent=1 // pred_fallthru
      _
    %v90 = vld [vmem:[#allocation10] sm:$0xff]
    %v91 = vld [vmem:[#allocation10 + $0x8] sm:$0xf]
    %v92 = vld [vmem:[#allocation10 + $0xc] sm:$0xff]
    %v93 = vld [vmem:[#allocation10 + $0x14] sm:$0xf]
    %v94 = vld [vmem:[#allocation10 + $0x18] sm:$0xff]
    %v95 = vld [vmem:[#allocation10 + $0x20] sm:$0xf]
    %v96 = vld [vmem:[#allocation10 + $0x24] sm:$0xff]
    %v97 = vld [vmem:[#allocation10 + $0x2c] sm:$0xf]
    %v98 = vld [vmem:[#allocation11] sm:$0xff]
    %v99 = vld [vmem:[#allocation11 + $0x8] sm:$0xf]
    %v100 = vld [vmem:[#allocation11 + $0xc] sm:$0xff]
    %v101 = vld [vmem:[#allocation11 + $0x14] sm:$0xf]
    %v102 = vld [vmem:[#allocation11 + $0x18] sm:$0xff]
    %v103 = vld [vmem:[#allocation11 + $0x20] sm:$0xf]
    %v104 = vld [vmem:[#allocation11 + $0x24] sm:$0xff]
    %v105 = vld [vmem:[#allocation11 + $0x2c] sm:$0xf]
    %v106 = vld [vmem:[%s4] sm:$0x7]
    %v107 = vld [vmem:[%s5] sm:$0x1]
    %v109 = vlaneseq
    %v110 = vshrl.u32 %v109, 7
    %v111 = vsub.s32 0, %v110
    %v112 = vrot.slane %v107, %v111
    %v114 = vld [vmem:[#allocation5] sm:$0xff]
    %v115 = vld [vmem:[#allocation5 + $0x8] sm:$0xff]
    %v116 = vld [vmem:[#allocation5 + $0x10] sm:$0xff]
    %v117 = vld [vmem:[#allocation5 + $0x18] sm:$0xff]
    %v118 = vld [vmem:[#allocation5 + $0x20] sm:$0xff]
    %v119 = vld [vmem:[#allocation5 + $0x28] sm:$0xff]
    %v120 = vld [vmem:[#allocation5 + $0x30] sm:$0xff]
    %v121 = vld [vmem:[#allocation5 + $0x38] sm:$0xff]
    %v122 = vpack.c.bf16 %v115, %v114
    %v123 = vpack.c.bf16 %v117, %v116
    %v124 = vpack.c.bf16 %v119, %v118
    %v125 = vpack.c.bf16 %v121, %v120
    %v127 = vlaneseq
    %v128 = vshrl.u32 %v127, 7
    %v129 = vsub.s32 0, %v128
    %v130 = vrot.slane %v106, %v129
    %v131 = vlaneseq
    %v132 = vshrl.u32 %v131, 7
    %v133 = vsub.s32 1, %v132
    %v134 = vrot.slane %v106, %v133
    %v135 = vlaneseq
    %v136 = vshrl.u32 %v135, 7
    %v137 = vsub.s32 2, %v136
    %v138 = vrot.slane %v106, %v137
    %v150 = vunpack.c.l.b16 %v90
    %v151 = vunpack.c.h.b16 %v90
    %v152 = vunpack.c.l.b16 %v91
    %v153 = vunpack.c.l.b16 %v92
    %v154 = vunpack.c.h.b16 %v92
    %v155 = vunpack.c.l.b16 %v93
    %v156 = vunpack.c.l.b16 %v94
    %v157 = vunpack.c.h.b16 %v94
    %v158 = vunpack.c.l.b16 %v95
    %v159 = vunpack.c.l.b16 %v96
    %v160 = vunpack.c.h.b16 %v96
    %v161 = vunpack.c.l.b16 %v97
    %v162 = vpack.c.b16 %v153, %v150
    %v163 = vpack.c.b16 %v154, %v151
    %v164 = vpack.c.b16 %v155, %v152
    %v165 = vpack.c.b16 %v159, %v156
    %v166 = vpack.c.b16 %v160, %v157
    %v167 = vpack.c.b16 %v161, %v158
    %vm174 = vcmask 261120
    %v176 = vsel %vm174, %v122, 0
    %v179 = vsel %vm174, %v123, 0
    %v182 = vsel %vm174, %v124, 0
    %v185 = vsel %vm174, %v125, 0
    %187 = vmatprep.subr.bf16.mxu0 %v163
    %188 = vmatpush1.bf16.msra.mxu0 %v162
    %189 = vmatprep.subr.bf16.mxu0 %v166
    %190 = vmatpush1.bf16.msra.mxu0 %v165
    %191 = vmatprep.subr.bf16.mxu0 0
    %192 = vmatpush1.bf16.msra.mxu0 0
    %193 = vmatprep.subr.bf16.mxu0 0
    %194 = vmatpush1.bf16.msra.mxu0 0
    %195 = vmatprep.subr.bf16.mxu0 0
    %196 = vmatpush1.bf16.msra.mxu0 0
    %197 = vmatprep.subr.bf16.mxu0 0
    %198 = vmatpush1.bf16.msra.mxu0 0
    %199 = vmatprep.subr.bf16.mxu0 0
    %200 = vmatpush1.bf16.msra.mxu0 0
    %201 = vmatprep.subr.bf16.mxu0 0
    %202 = vmatpush1.bf16.msra.mxu0 0
    %203 = vmatprep.subr.bf16.mxu0 0
    %204 = vmatpush1.bf16.msra.mxu0 0
    %205 = vmatprep.subr.bf16.mxu0 0
    %206 = vmatpush1.bf16.msra.mxu0 0
    %207 = vmatprep.subr.bf16.mxu0 0
    %208 = vmatpush1.bf16.msra.mxu0 0
    %209 = vmatprep.subr.bf16.mxu0 0
    %210 = vmatpush1.bf16.msra.mxu0 0
    %211 = vmatprep.subr.bf16.mxu0 0
    %212 = vmatpush1.bf16.msra.mxu0 0
    %213 = vmatprep.subr.bf16.mxu0 0
    %214 = vmatpush1.bf16.msra.mxu0 0
    %215 = vmatprep.subr.bf16.mxu0 0
    %216 = vmatpush1.bf16.msra.mxu0 0
    %217 = vmatprep.subr.bf16.mxu0 0
    %218 = vmatpush1.bf16.msra.mxu0 0
    %219 = vmatprep.mubr.bf16.mxu0 0
    %220 = vmatmul.mubr.bf16.gmra.mrb[0].mxu0 %v176
    %v221 = vpop.f32.mrb[0].mxu0
    %v222 = vadd.f32 %v130, %v221
    %v223 = vpop.f32.mrb[0].mxu0
    %v224 = vadd.f32 %v134, %v223
    %v225 = vpop.f32.mrb[0].mxu0
    %v226 = vadd.f32 %v130, %v225
    %v227 = vpop.f32.mrb[0].mxu0
    %v228 = vadd.f32 %v134, %v227
    %229 = vmatprep.mubr.bf16.mxu0 0
    %230 = vmatmul.mubr.bf16.gmra.mrb[0].mxu0 %v179
    %v231 = vpop.f32.mrb[0].mxu0
    %v232 = vadd.f32 %v130, %v231
    %v233 = vpop.f32.mrb[0].mxu0
    %v234 = vadd.f32 %v134, %v233
    %v235 = vpop.f32.mrb[0].mxu0
    %v236 = vadd.f32 %v130, %v235
    %v237 = vpop.f32.mrb[0].mxu0
    %v238 = vadd.f32 %v134, %v237
    %239 = vmatprep.mubr.bf16.mxu0 0
    %240 = vmatmul.mubr.bf16.gmra.mrb[0].mxu0 %v182
    %v241 = vpop.f32.mrb[0].mxu0
    %v242 = vadd.f32 %v130, %v241
    %v243 = vpop.f32.mrb[0].mxu0
    %v244 = vadd.f32 %v134, %v243
    %v245 = vpop.f32.mrb[0].mxu0
    %v246 = vadd.f32 %v130, %v245
    %v247 = vpop.f32.mrb[0].mxu0
    %v248 = vadd.f32 %v134, %v247
    %249 = vmatprep.mubr.bf16.mxu0 0
    %250 = vmatmul.mubr.bf16.gmra.mrb[0].mxu0 %v185
    %v251 = vpop.f32.mrb[0].mxu0
    %v252 = vadd.f32 %v130, %v251
    %v253 = vpop.f32.mrb[0].mxu0
    %v254 = vadd.f32 %v134, %v253
    %v255 = vpop.f32.mrb[0].mxu0
    %v256 = vadd.f32 %v130, %v255
    %v257 = vpop.f32.mrb[0].mxu0
    %v258 = vadd.f32 %v134, %v257
    %259 = vdwg.mxu0
    %260 = vmatprep.subr.bf16.mxu0 0
    %261 = vmatpush1.bf16.msra.mxu0 %v164
    %262 = vmatprep.subr.bf16.mxu0 0
    %263 = vmatpush1.bf16.msra.mxu0 %v167
    %264 = vmatprep.subr.bf16.mxu0 0
    %265 = vmatpush1.bf16.msra.mxu0 0
    %266 = vmatprep.subr.bf16.mxu0 0
    %267 = vmatpush1.bf16.msra.mxu0 0
    %268 = vmatprep.subr.bf16.mxu0 0
    %269 = vmatpush1.bf16.msra.mxu0 0
    %270 = vmatprep.subr.bf16.mxu0 0
    %271 = vmatpush1.bf16.msra.mxu0 0
    %272 = vmatprep.subr.bf16.mxu0 0
    %273 = vmatpush1.bf16.msra.mxu0 0
    %274 = vmatprep.subr.bf16.mxu0 0
    %275 = vmatpush1.bf16.msra.mxu0 0
    %276 = vmatprep.subr.bf16.mxu0 0
    %277 = vmatpush1.bf16.msra.mxu0 0
    %278 = vmatprep.subr.bf16.mxu0 0
    %279 = vmatpush1.bf16.msra.mxu0 0
    %280 = vmatprep.subr.bf16.mxu0 0
    %281 = vmatpush1.bf16.msra.mxu0 0
    %282 = vmatprep.subr.bf16.mxu0 0
    %283 = vmatpush1.bf16.msra.mxu0 0
    %284 = vmatprep.subr.bf16.mxu0 0
    %285 = vmatpush1.bf16.msra.mxu0 0
    %286 = vmatprep.subr.bf16.mxu0 0
    %287 = vmatpush1.bf16.msra.mxu0 0
    %288 = vmatprep.subr.bf16.mxu0 0
    %289 = vmatpush1.bf16.msra.mxu0 0
    %290 = vmatprep.subr.bf16.mxu0 0
    %291 = vmatpush1.bf16.msra.mxu0 0
    %292 = vmatprep.mubr.bf16.mxu0 0
    %293 = vmatmul.mubr.bf16.gmra.mrb[0].mxu0 %v176
    %v294 = vpop.f32.mrb[0].mxu0
    %v295 = vadd.f32 %v138, %v294
    %v296 = vpop.f32.mrb[0].mxu0
    %v297 = vpop.f32.mrb[0].mxu0
    %v298 = vadd.f32 %v138, %v297
    %v299 = vpop.f32.mrb[0].mxu0
    %300 = vmatprep.mubr.bf16.mxu0 0
    %301 = vmatmul.mubr.bf16.gmra.mrb[0].mxu0 %v179
    %v302 = vpop.f32.mrb[0].mxu0
    %v303 = vadd.f32 %v138, %v302
    %v304 = vpop.f32.mrb[0].mxu0
    %v305 = vpop.f32.mrb[0].mxu0
    %v306 = vadd.f32 %v138, %v305
    %v307 = vpop.f32.mrb[0].mxu0
    %308 = vmatprep.mubr.bf16.mxu0 0
    %309 = vmatmul.mubr.bf16.gmra.mrb[0].mxu0 %v182
    %v310 = vpop.f32.mrb[0].mxu0
    %v311 = vadd.f32 %v138, %v310
    %v312 = vpop.f32.mrb[0].mxu0
    %v313 = vpop.f32.mrb[0].mxu0
    %v314 = vadd.f32 %v138, %v313
    %v315 = vpop.f32.mrb[0].mxu0
    %316 = vmatprep.mubr.bf16.mxu0 0
    %317 = vmatmul.mubr.bf16.gmra.mrb[0].mxu0 %v185
    %v318 = vpop.f32.mrb[0].mxu0
    %v319 = vadd.f32 %v138, %v318
    %v320 = vpop.f32.mrb[0].mxu0
    %v321 = vpop.f32.mrb[0].mxu0
    %v322 = vadd.f32 %v138, %v321
    %v323 = vpop.f32.mrb[0].mxu0
    %324 = vdwg.mxu0
    %325 = vst [vmem:[#allocation3] sm:$0xff] %v222
    %326 = vst [vmem:[#allocation3 + $0x8] sm:$0xff] %v224
    %327 = vst [vmem:[#allocation3 + $0x10] sm:$0xff] %v295
    %s328 = scalar_lea.vmem [#allocation3], 24
    %329 = vst [vmem:[%s328] sm:$0xff] %v226
    %330 = vst [vmem:[%s328 + $0x8] sm:$0xff] %v228
    %331 = vst [vmem:[%s328 + $0x10] sm:$0xff] %v298
    %s332 = scalar_lea.vmem [#allocation3], 48
    %333 = vst [vmem:[%s332] sm:$0xff] %v232
    %334 = vst [vmem:[%s332 + $0x8] sm:$0xff] %v234
    %335 = vst [vmem:[%s332 + $0x10] sm:$0xff] %v303
    %s336 = scalar_lea.vmem [#allocation3], 72
    %337 = vst [vmem:[%s336] sm:$0xff] %v236
    %338 = vst [vmem:[%s336 + $0x8] sm:$0xff] %v238
    %339 = vst [vmem:[%s336 + $0x10] sm:$0xff] %v306
    %s340 = scalar_lea.vmem [#allocation3], 96
    %341 = vst [vmem:[%s340] sm:$0xff] %v242
    %342 = vst [vmem:[%s340 + $0x8] sm:$0xff] %v244
    %343 = vst [vmem:[%s340 + $0x10] sm:$0xff] %v311
    %s344 = scalar_lea.vmem [#allocation3], 120
    %345 = vst [vmem:[%s344] sm:$0xff] %v246
    %346 = vst [vmem:[%s344 + $0x8] sm:$0xff] %v248
    %347 = vst [vmem:[%s344 + $0x10] sm:$0xff] %v314
    %s348 = scalar_lea.vmem [#allocation3], 144
    %349 = vst [vmem:[%s348] sm:$0xff] %v252
    %350 = vst [vmem:[%s348 + $0x8] sm:$0xff] %v254
    %351 = vst [vmem:[%s348 + $0x10] sm:$0xff] %v319
    %s352 = scalar_lea.vmem [#allocation3], 168
    %353 = vst [vmem:[%s352] sm:$0xff] %v256
    %354 = vst [vmem:[%s352 + $0x8] sm:$0xff] %v258
    %355 = vst [vmem:[%s352 + $0x10] sm:$0xff] %v322
    %v356 = vld [vmem:[#allocation8] sm:$0xff]
    %v357 = vld [vmem:[#allocation3] sm:$0xff]
    %v358 = vld [vmem:[#allocation3 + $0x8] sm:$0xff]
    %v359 = vld [vmem:[#allocation3 + $0x10] sm:$0xff]
    %v360 = vpack.c.bf16 %v356, %v356
    %v369 = vunpack.c.l.b16 %v98
    %v370 = vunpack.c.h.b16 %v98
    %v371 = vunpack.c.l.b16 %v99
    %v372 = vunpack.c.l.b16 %v100
    %v373 = vunpack.c.h.b16 %v100
    %v374 = vunpack.c.l.b16 %v101
    %v375 = vunpack.c.l.b16 %v102
    %v376 = vunpack.c.h.b16 %v102
    %v377 = vunpack.c.l.b16 %v103
    %v378 = vunpack.c.l.b16 %v104
    %v379 = vunpack.c.h.b16 %v104
    %v380 = vunpack.c.l.b16 %v105
    %v381 = vpack.c.b16 %v372, %v369
    %v382 = vpack.c.b16 %v373, %v370
    %v383 = vpack.c.b16 %v374, %v371
    %v384 = vpack.c.b16 %v378, %v375
    %v385 = vpack.c.b16 %v379, %v376
    %v386 = vpack.c.b16 %v380, %v377
    %v394 = vsel %vm174, %v360, 0
    %396 = vmatprep.subr.bf16.mxu0 %v382
    %397 = vmatpush1.bf16.msra.mxu0 %v381
    %398 = vmatprep.subr.bf16.mxu0 %v385
    %399 = vmatpush1.bf16.msra.mxu0 %v384
    %400 = vmatprep.subr.bf16.mxu0 0
    %401 = vmatpush1.bf16.msra.mxu0 0
    %402 = vmatprep.subr.bf16.mxu0 0
    %403 = vmatpush1.bf16.msra.mxu0 0
    %404 = vmatprep.subr.bf16.mxu0 0
    %405 = vmatpush1.bf16.msra.mxu0 0
    %406 = vmatprep.subr.bf16.mxu0 0
    %407 = vmatpush1.bf16.msra.mxu0 0
    %408 = vmatprep.subr.bf16.mxu0 0
    %409 = vmatpush1.bf16.msra.mxu0 0
    %410 = vmatprep.subr.bf16.mxu0 0
    %411 = vmatpush1.bf16.msra.mxu0 0
    %412 = vmatprep.subr.bf16.mxu0 0
    %413 = vmatpush1.bf16.msra.mxu0 0
    %414 = vmatprep.subr.bf16.mxu0 0
    %415 = vmatpush1.bf16.msra.mxu0 0
    %416 = vmatprep.subr.bf16.mxu0 0
    %417 = vmatpush1.bf16.msra.mxu0 0
    %418 = vmatprep.subr.bf16.mxu0 0
    %419 = vmatpush1.bf16.msra.mxu0 0
    %420 = vmatprep.subr.bf16.mxu0 0
    %421 = vmatpush1.bf16.msra.mxu0 0
    %422 = vmatprep.subr.bf16.mxu0 0
    %423 = vmatpush1.bf16.msra.mxu0 0
    %424 = vmatprep.subr.bf16.mxu0 0
    %425 = vmatpush1.bf16.msra.mxu0 0
    %426 = vmatprep.subr.bf16.mxu0 0
    %427 = vmatpush1.bf16.msra.mxu0 0
    %428 = vmatprep.mubr.bf16.mxu0 0
    %429 = vmatmul.mubr.bf16.gmra.mrb[0].mxu0 %v394
    %v430 = vpop.f32.mrb[0].mxu0
    %v431 = vadd.f32 0.0, %v430
    %v432 = vpop.f32.mrb[0].mxu0
    %v433 = vadd.f32 0.0, %v432
    %v434 = vpop.f32.mrb[0].mxu0
    %v435 = vpop.f32.mrb[0].mxu0
    %436 = vdwg.mxu0
    %437 = vmatprep.subr.bf16.mxu0 0
    %438 = vmatpush1.bf16.msra.mxu0 %v383
    %439 = vmatprep.subr.bf16.mxu0 0
    %440 = vmatpush1.bf16.msra.mxu0 %v386
    %441 = vmatprep.subr.bf16.mxu0 0
    %442 = vmatpush1.bf16.msra.mxu0 0
    %443 = vmatprep.subr.bf16.mxu0 0
    %444 = vmatpush1.bf16.msra.mxu0 0
    %445 = vmatprep.subr.bf16.mxu0 0
    %446 = vmatpush1.bf16.msra.mxu0 0
    %447 = vmatprep.subr.bf16.mxu0 0
    %448 = vmatpush1.bf16.msra.mxu0 0
    %449 = vmatprep.subr.bf16.mxu0 0
    %450 = vmatpush1.bf16.msra.mxu0 0
    %451 = vmatprep.subr.bf16.mxu0 0
    %452 = vmatpush1.bf16.msra.mxu0 0
    %453 = vmatprep.subr.bf16.mxu0 0
    %454 = vmatpush1.bf16.msra.mxu0 0
    %455 = vmatprep.subr.bf16.mxu0 0
    %456 = vmatpush1.bf16.msra.mxu0 0
    %457 = vmatprep.subr.bf16.mxu0 0
    %458 = vmatpush1.bf16.msra.mxu0 0
    %459 = vmatprep.subr.bf16.mxu0 0
    %460 = vmatpush1.bf16.msra.mxu0 0
    %461 = vmatprep.subr.bf16.mxu0 0
    %462 = vmatpush1.bf16.msra.mxu0 0
    %463 = vmatprep.subr.bf16.mxu0 0
    %464 = vmatpush1.bf16.msra.mxu0 0
    %465 = vmatprep.subr.bf16.mxu0 0
    %466 = vmatpush1.bf16.msra.mxu0 0
    %467 = vmatprep.subr.bf16.mxu0 0
    %468 = vmatpush1.bf16.msra.mxu0 0
    %469 = vmatprep.mubr.bf16.mxu0 0
    %470 = vmatmul.mubr.bf16.gmra.mrb[0].mxu0 %v394
    %v471 = vpop.f32.mrb[0].mxu0
    %v472 = vadd.f32 0.0, %v471
    %v473 = vpop.f32.mrb[0].mxu0
    %v474 = vpop.f32.mrb[0].mxu0
    %v475 = vpop.f32.mrb[0].mxu0
    %476 = vdwg.mxu0
    %v477 = vadd.f32 %v357, %v431
    %v478 = vadd.f32 %v358, %v433
    %v479 = vmul.f32 %v477, 0.5
    %v480 = vmul.f32 %v478, 0.5
    %v481 = vtanh.pop %v479
    %v482 = vtanh.pop %v480
    %v483 = vmul.f32 %v481, 0.5
    %v484 = vmul.f32 %v482, 0.5
    %v485 = vadd.f32 %v483, 0.5
    %v486 = vadd.f32 %v484, 0.5
    %v487 = vadd.f32 %v472, %v112
    %v488 = vmul.f32 %v485, %v487
    %v489 = vadd.f32 %v359, %v488
    %v490 = vtanh.pop %v489
    %v491 = vsub.f32 %v356, %v490
    %v492 = vmul.f32 %v486, %v491
    %v493 = vadd.f32 %v490, %v492
    %494 = vst.msk [vmem:[#allocation2] sm:$0xff] %vm174, %v493
    %v495 = vld [vmem:[%s328] sm:$0xff]
    %v496 = vld [vmem:[%s328 + $0x8] sm:$0xff]
    %v497 = vld [vmem:[%s328 + $0x10] sm:$0xff]
    %v498 = vpack.c.bf16 %v493, %v493
    %v500 = vsel %vm174, %v498, 0
    %502 = vmatprep.subr.bf16.mxu0 %v382
    %503 = vmatpush1.bf16.msra.mxu0 %v381
    %504 = vmatprep.subr.bf16.mxu0 %v385
    %505 = vmatpush1.bf16.msra.mxu0 %v384
    %506 = vmatprep.subr.bf16.mxu0 0
    %507 = vmatpush1.bf16.msra.mxu0 0
    %508 = vmatprep.subr.bf16.mxu0 0
    %509 = vmatpush1.bf16.msra.mxu0 0
    %510 = vmatprep.subr.bf16.mxu0 0
    %511 = vmatpush1.bf16.msra.mxu0 0
    %512 = vmatprep.subr.bf16.mxu0 0
    %513 = vmatpush1.bf16.msra.mxu0 0
    %514 = vmatprep.subr.bf16.mxu0 0
    %515 = vmatpush1.bf16.msra.mxu0 0
    %516 = vmatprep.subr.bf16.mxu0 0
    %517 = vmatpush1.bf16.msra.mxu0 0
    %518 = vmatprep.subr.bf16.mxu0 0
    %519 = vmatpush1.bf16.msra.mxu0 0
    %520 = vmatprep.subr.bf16.mxu0 0
    %521 = vmatpush1.bf16.msra.mxu0 0
    %522 = vmatprep.subr.bf16.mxu0 0
    %523 = vmatpush1.bf16.msra.mxu0 0
    %524 = vmatprep.subr.bf16.mxu0 0
    %525 = vmatpush1.bf16.msra.mxu0 0
    %526 = vmatprep.subr.bf16.mxu0 0
    %527 = vmatpush1.bf16.msra.mxu0 0
    %528 = vmatprep.subr.bf16.mxu0 0
    %529 = vmatpush1.bf16.msra.mxu0 0
    %530 = vmatprep.subr.bf16.mxu0 0
    %531 = vmatpush1.bf16.msra.mxu0 0
    %532 = vmatprep.subr.bf16.mxu0 0
    %533 = vmatpush1.bf16.msra.mxu0 0
    %534 = vmatprep.mubr.bf16.mxu0 0
    %535 = vmatmul.mubr.bf16.gmra.mrb[0].mxu0 %v500
    %v536 = vpop.f32.mrb[0].mxu0
    %v537 = vadd.f32 0.0, %v536
    %v538 = vpop.f32.mrb[0].mxu0
    %v539 = vadd.f32 0.0, %v538
    %v540 = vpop.f32.mrb[0].mxu0
    %v541 = vpop.f32.mrb[0].mxu0
    %542 = vdwg.mxu0
    %543 = vmatprep.subr.bf16.mxu0 0
    %544 = vmatpush1.bf16.msra.mxu0 %v383
    %545 = vmatprep.subr.bf16.mxu0 0
    %546 = vmatpush1.bf16.msra.mxu0 %v386
    %547 = vmatprep.subr.bf16.mxu0 0
    %548 = vmatpush1.bf16.msra.mxu0 0
    %549 = vmatprep.subr.bf16.mxu0 0
    %550 = vmatpush1.bf16.msra.mxu0 0
    %551 = vmatprep.subr.bf16.mxu0 0
    %552 = vmatpush1.bf16.msra.mxu0 0
    %553 = vmatprep.subr.bf16.mxu0 0
    %554 = vmatpush1.bf16.msra.mxu0 0
    %555 = vmatprep.subr.bf16.mxu0 0
    %556 = vmatpush1.bf16.msra.mxu0 0
    %557 = vmatprep.subr.bf16.mxu0 0
    %558 = vmatpush1.bf16.msra.mxu0 0
    %559 = vmatprep.subr.bf16.mxu0 0
    %560 = vmatpush1.bf16.msra.mxu0 0
    %561 = vmatprep.subr.bf16.mxu0 0
    %562 = vmatpush1.bf16.msra.mxu0 0
    %563 = vmatprep.subr.bf16.mxu0 0
    %564 = vmatpush1.bf16.msra.mxu0 0
    %565 = vmatprep.subr.bf16.mxu0 0
    %566 = vmatpush1.bf16.msra.mxu0 0
    %567 = vmatprep.subr.bf16.mxu0 0
    %568 = vmatpush1.bf16.msra.mxu0 0
    %569 = vmatprep.subr.bf16.mxu0 0
    %570 = vmatpush1.bf16.msra.mxu0 0
    %571 = vmatprep.subr.bf16.mxu0 0
    %572 = vmatpush1.bf16.msra.mxu0 0
    %573 = vmatprep.subr.bf16.mxu0 0
    %574 = vmatpush1.bf16.msra.mxu0 0
    %575 = vmatprep.mubr.bf16.mxu0 0
    %576 = vmatmul.mubr.bf16.gmra.mrb[0].mxu0 %v500
    %v577 = vpop.f32.mrb[0].mxu0
    %v578 = vadd.f32 0.0, %v577
    %v579 = vpop.f32.mrb[0].mxu0
    %v580 = vpop.f32.mrb[0].mxu0
    %v581 = vpop.f32.mrb[0].mxu0
    %582 = vdwg.mxu0
    %v583 = vadd.f32 %v495, %v537
    %v584 = vadd.f32 %v496, %v539
    %v585 = vmul.f32 %v583, 0.5
    %v586 = vmul.f32 %v584, 0.5
    %v587 = vtanh.pop %v585
    %v588 = vtanh.pop %v586
    %v589 = vmul.f32 %v587, 0.5
    %v590 = vmul.f32 %v588, 0.5
    %v591 = vadd.f32 %v589, 0.5
    %v592 = vadd.f32 %v590, 0.5
    %v593 = vadd.f32 %v578, %v112
    %v594 = vmul.f32 %v591, %v593
    %v595 = vadd.f32 %v497, %v594
    %v596 = vtanh.pop %v595
    %v597 = vsub.f32 %v493, %v596
    %v598 = vmul.f32 %v592, %v597
    %v599 = vadd.f32 %v596, %v598
    %s600 = scalar_lea.vmem [#allocation2], 8
    %601 = vst.msk [vmem:[%s600] sm:$0xff] %vm174, %v599
    %v602 = vld [vmem:[%s332] sm:$0xff]
    %v603 = vld [vmem:[%s332 + $0x8] sm:$0xff]
    %v604 = vld [vmem:[%s332 + $0x10] sm:$0xff]
    %v605 = vpack.c.bf16 %v599, %v599
    %v607 = vsel %vm174, %v605, 0
    %609 = vmatprep.subr.bf16.mxu0 %v382
    %610 = vmatpush1.bf16.msra.mxu0 %v381
    %611 = vmatprep.subr.bf16.mxu0 %v385
    %612 = vmatpush1.bf16.msra.mxu0 %v384
    %613 = vmatprep.subr.bf16.mxu0 0
    %614 = vmatpush1.bf16.msra.mxu0 0
    %615 = vmatprep.subr.bf16.mxu0 0
    %616 = vmatpush1.bf16.msra.mxu0 0
    %617 = vmatprep.subr.bf16.mxu0 0
    %618 = vmatpush1.bf16.msra.mxu0 0
    %619 = vmatprep.subr.bf16.mxu0 0
    %620 = vmatpush1.bf16.msra.mxu0 0
    %621 = vmatprep.subr.bf16.mxu0 0
    %622 = vmatpush1.bf16.msra.mxu0 0
    %623 = vmatprep.subr.bf16.mxu0 0
    %624 = vmatpush1.bf16.msra.mxu0 0
    %625 = vmatprep.subr.bf16.mxu0 0
    %626 = vmatpush1.bf16.msra.mxu0 0
    %627 = vmatprep.subr.bf16.mxu0 0
    %628 = vmatpush1.bf16.msra.mxu0 0
    %629 = vmatprep.subr.bf16.mxu0 0
    %630 = vmatpush1.bf16.msra.mxu0 0
    %631 = vmatprep.subr.bf16.mxu0 0
    %632 = vmatpush1.bf16.msra.mxu0 0
    %633 = vmatprep.subr.bf16.mxu0 0
    %634 = vmatpush1.bf16.msra.mxu0 0
    %635 = vmatprep.subr.bf16.mxu0 0
    %636 = vmatpush1.bf16.msra.mxu0 0
    %637 = vmatprep.subr.bf16.mxu0 0
    %638 = vmatpush1.bf16.msra.mxu0 0
    %639 = vmatprep.subr.bf16.mxu0 0
    %640 = vmatpush1.bf16.msra.mxu0 0
    %641 = vmatprep.mubr.bf16.mxu0 0
    %642 = vmatmul.mubr.bf16.gmra.mrb[0].mxu0 %v607
    %v643 = vpop.f32.mrb[0].mxu0
    %v644 = vadd.f32 0.0, %v643
    %v645 = vpop.f32.mrb[0].mxu0
    %v646 = vadd.f32 0.0, %v645
    %v647 = vpop.f32.mrb[0].mxu0
    %v648 = vpop.f32.mrb[0].mxu0
    %649 = vdwg.mxu0
    %650 = vmatprep.subr.bf16.mxu0 0
    %651 = vmatpush1.bf16.msra.mxu0 %v383
    %652 = vmatprep.subr.bf16.mxu0 0
    %653 = vmatpush1.bf16.msra.mxu0 %v386
    %654 = vmatprep.subr.bf16.mxu0 0
    %655 = vmatpush1.bf16.msra.mxu0 0
    %656 = vmatprep.subr.bf16.mxu0 0
    %657 = vmatpush1.bf16.msra.mxu0 0
    %658 = vmatprep.subr.bf16.mxu0 0
    %659 = vmatpush1.bf16.msra.mxu0 0
    %660 = vmatprep.subr.bf16.mxu0 0
    %661 = vmatpush1.bf16.msra.mxu0 0
    %662 = vmatprep.subr.bf16.mxu0 0
    %663 = vmatpush1.bf16.msra.mxu0 0
    %664 = vmatprep.subr.bf16.mxu0 0
    %665 = vmatpush1.bf16.msra.mxu0 0
    %666 = vmatprep.subr.bf16.mxu0 0
    %667 = vmatpush1.bf16.msra.mxu0 0
    %668 = vmatprep.subr.bf16.mxu0 0
    %669 = vmatpush1.bf16.msra.mxu0 0
    %670 = vmatprep.subr.bf16.mxu0 0
    %671 = vmatpush1.bf16.msra.mxu0 0
    %672 = vmatprep.subr.bf16.mxu0 0
    %673 = vmatpush1.bf16.msra.mxu0 0
    %674 = vmatprep.subr.bf16.mxu0 0
    %675 = vmatpush1.bf16.msra.mxu0 0
    %676 = vmatprep.subr.bf16.mxu0 0
    %677 = vmatpush1.bf16.msra.mxu0 0
    %678 = vmatprep.subr.bf16.mxu0 0
    %679 = vmatpush1.bf16.msra.mxu0 0
    %680 = vmatprep.subr.bf16.mxu0 0
    %681 = vmatpush1.bf16.msra.mxu0 0
    %682 = vmatprep.mubr.bf16.mxu0 0
    %683 = vmatmul.mubr.bf16.gmra.mrb[0].mxu0 %v607
    %v684 = vpop.f32.mrb[0].mxu0
    %v685 = vadd.f32 0.0, %v684
    %v686 = vpop.f32.mrb[0].mxu0
    %v687 = vpop.f32.mrb[0].mxu0
    %v688 = vpop.f32.mrb[0].mxu0
    %689 = vdwg.mxu0
    %v690 = vadd.f32 %v602, %v644
    %v691 = vadd.f32 %v603, %v646
    %v692 = vmul.f32 %v690, 0.5
    %v693 = vmul.f32 %v691, 0.5
    %v694 = vtanh.pop %v692
    %v695 = vtanh.pop %v693
    %v696 = vmul.f32 %v694, 0.5
    %v697 = vmul.f32 %v695, 0.5
    %v698 = vadd.f32 %v696, 0.5
    %v699 = vadd.f32 %v697, 0.5
    %v700 = vadd.f32 %v685, %v112
    %v701 = vmul.f32 %v698, %v700
    %v702 = vadd.f32 %v604, %v701
    %v703 = vtanh.pop %v702
    %v704 = vsub.f32 %v599, %v703
    %v705 = vmul.f32 %v699, %v704
    %v706 = vadd.f32 %v703, %v705
    %s707 = scalar_lea.vmem [#allocation2], 16
    %708 = vst.msk [vmem:[%s707] sm:$0xff] %vm174, %v706
    %v709 = vld [vmem:[%s336] sm:$0xff]
    %v710 = vld [vmem:[%s336 + $0x8] sm:$0xff]
    %v711 = vld [vmem:[%s336 + $0x10] sm:$0xff]
    %v712 = vpack.c.bf16 %v706, %v706
    %v714 = vsel %vm174, %v712, 0
    %716 = vmatprep.subr.bf16.mxu0 %v382
    %717 = vmatpush1.bf16.msra.mxu0 %v381
    %718 = vmatprep.subr.bf16.mxu0 %v385
    %719 = vmatpush1.bf16.msra.mxu0 %v384
    %720 = vmatprep.subr.bf16.mxu0 0
    %721 = vmatpush1.bf16.msra.mxu0 0
    %722 = vmatprep.subr.bf16.mxu0 0
    %723 = vmatpush1.bf16.msra.mxu0 0
    %724 = vmatprep.subr.bf16.mxu0 0
    %725 = vmatpush1.bf16.msra.mxu0 0
    %726 = vmatprep.subr.bf16.mxu0 0
    %727 = vmatpush1.bf16.msra.mxu0 0
    %728 = vmatprep.subr.bf16.mxu0 0
    %729 = vmatpush1.bf16.msra.mxu0 0
    %730 = vmatprep.subr.bf16.mxu0 0
    %731 = vmatpush1.bf16.msra.mxu0 0
    %732 = vmatprep.subr.bf16.mxu0 0
    %733 = vmatpush1.bf16.msra.mxu0 0
    %734 = vmatprep.subr.bf16.mxu0 0
    %735 = vmatpush1.bf16.msra.mxu0 0
    %736 = vmatprep.subr.bf16.mxu0 0
    %737 = vmatpush1.bf16.msra.mxu0 0
    %738 = vmatprep.subr.bf16.mxu0 0
    %739 = vmatpush1.bf16.msra.mxu0 0
    %740 = vmatprep.subr.bf16.mxu0 0
    %741 = vmatpush1.bf16.msra.mxu0 0
    %742 = vmatprep.subr.bf16.mxu0 0
    %743 = vmatpush1.bf16.msra.mxu0 0
    %744 = vmatprep.subr.bf16.mxu0 0
    %745 = vmatpush1.bf16.msra.mxu0 0
    %746 = vmatprep.subr.bf16.mxu0 0
    %747 = vmatpush1.bf16.msra.mxu0 0
    %748 = vmatprep.mubr.bf16.mxu0 0
    %749 = vmatmul.mubr.bf16.gmra.mrb[0].mxu0 %v714
    %v750 = vpop.f32.mrb[0].mxu0
    %v751 = vadd.f32 0.0, %v750
    %v752 = vpop.f32.mrb[0].mxu0
    %v753 = vadd.f32 0.0, %v752
    %v754 = vpop.f32.mrb[0].mxu0
    %v755 = vpop.f32.mrb[0].mxu0
    %756 = vdwg.mxu0
    %757 = vmatprep.subr.bf16.mxu0 0
    %758 = vmatpush1.bf16.msra.mxu0 %v383
    %759 = vmatprep.subr.bf16.mxu0 0
    %760 = vmatpush1.bf16.msra.mxu0 %v386
    %761 = vmatprep.subr.bf16.mxu0 0
    %762 = vmatpush1.bf16.msra.mxu0 0
    %763 = vmatprep.subr.bf16.mxu0 0
    %764 = vmatpush1.bf16.msra.mxu0 0
    %765 = vmatprep.subr.bf16.mxu0 0
    %766 = vmatpush1.bf16.msra.mxu0 0
    %767 = vmatprep.subr.bf16.mxu0 0
    %768 = vmatpush1.bf16.msra.mxu0 0
    %769 = vmatprep.subr.bf16.mxu0 0
    %770 = vmatpush1.bf16.msra.mxu0 0
    %771 = vmatprep.subr.bf16.mxu0 0
    %772 = vmatpush1.bf16.msra.mxu0 0
    %773 = vmatprep.subr.bf16.mxu0 0
    %774 = vmatpush1.bf16.msra.mxu0 0
    %775 = vmatprep.subr.bf16.mxu0 0
    %776 = vmatpush1.bf16.msra.mxu0 0
    %777 = vmatprep.subr.bf16.mxu0 0
    %778 = vmatpush1.bf16.msra.mxu0 0
    %779 = vmatprep.subr.bf16.mxu0 0
    %780 = vmatpush1.bf16.msra.mxu0 0
    %781 = vmatprep.subr.bf16.mxu0 0
    %782 = vmatpush1.bf16.msra.mxu0 0
    %783 = vmatprep.subr.bf16.mxu0 0
    %784 = vmatpush1.bf16.msra.mxu0 0
    %785 = vmatprep.subr.bf16.mxu0 0
    %786 = vmatpush1.bf16.msra.mxu0 0
    %787 = vmatprep.subr.bf16.mxu0 0
    %788 = vmatpush1.bf16.msra.mxu0 0
    %789 = vmatprep.mubr.bf16.mxu0 0
    %790 = vmatmul.mubr.bf16.gmra.mrb[0].mxu0 %v714
    %v791 = vpop.f32.mrb[0].mxu0
    %v792 = vadd.f32 0.0, %v791
    %v793 = vpop.f32.mrb[0].mxu0
    %v794 = vpop.f32.mrb[0].mxu0
    %v795 = vpop.f32.mrb[0].mxu0
    %796 = vdwg.mxu0
    %v797 = vadd.f32 %v709, %v751
    %v798 = vadd.f32 %v710, %v753
    %v799 = vmul.f32 %v797, 0.5
    %v800 = vmul.f32 %v798, 0.5
    %v801 = vtanh.pop %v799
    %v802 = vtanh.pop %v800
    %v803 = vmul.f32 %v801, 0.5
    %v804 = vmul.f32 %v802, 0.5
    %v805 = vadd.f32 %v803, 0.5
    %v806 = vadd.f32 %v804, 0.5
    %v807 = vadd.f32 %v792, %v112
    %v808 = vmul.f32 %v805, %v807
    %v809 = vadd.f32 %v711, %v808
    %v810 = vtanh.pop %v809
    %v811 = vsub.f32 %v706, %v810
    %v812 = vmul.f32 %v806, %v811
    %v813 = vadd.f32 %v810, %v812
    %s814 = scalar_lea.vmem [#allocation2], 24
    %815 = vst.msk [vmem:[%s814] sm:$0xff] %vm174, %v813
    %v816 = vld [vmem:[%s340] sm:$0xff]
    %v817 = vld [vmem:[%s340 + $0x8] sm:$0xff]
    %v818 = vld [vmem:[%s340 + $0x10] sm:$0xff]
    %v819 = vpack.c.bf16 %v813, %v813
    %v821 = vsel %vm174, %v819, 0
    %823 = vmatprep.subr.bf16.mxu0 %v382
    %824 = vmatpush1.bf16.msra.mxu0 %v381
    %825 = vmatprep.subr.bf16.mxu0 %v385
    %826 = vmatpush1.bf16.msra.mxu0 %v384
    %827 = vmatprep.subr.bf16.mxu0 0
    %828 = vmatpush1.bf16.msra.mxu0 0
    %829 = vmatprep.subr.bf16.mxu0 0
    %830 = vmatpush1.bf16.msra.mxu0 0
    %831 = vmatprep.subr.bf16.mxu0 0
    %832 = vmatpush1.bf16.msra.mxu0 0
    %833 = vmatprep.subr.bf16.mxu0 0
    %834 = vmatpush1.bf16.msra.mxu0 0
    %835 = vmatprep.subr.bf16.mxu0 0
    %836 = vmatpush1.bf16.msra.mxu0 0
    %837 = vmatprep.subr.bf16.mxu0 0
    %838 = vmatpush1.bf16.msra.mxu0 0
    %839 = vmatprep.subr.bf16.mxu0 0
    %840 = vmatpush1.bf16.msra.mxu0 0
    %841 = vmatprep.subr.bf16.mxu0 0
    %842 = vmatpush1.bf16.msra.mxu0 0
    %843 = vmatprep.subr.bf16.mxu0 0
    %844 = vmatpush1.bf16.msra.mxu0 0
    %845 = vmatprep.subr.bf16.mxu0 0
    %846 = vmatpush1.bf16.msra.mxu0 0
    %847 = vmatprep.subr.bf16.mxu0 0
    %848 = vmatpush1.bf16.msra.mxu0 0
    %849 = vmatprep.subr.bf16.mxu0 0
    %850 = vmatpush1.bf16.msra.mxu0 0
    %851 = vmatprep.subr.bf16.mxu0 0
    %852 = vmatpush1.bf16.msra.mxu0 0
    %853 = vmatprep.subr.bf16.mxu0 0
    %854 = vmatpush1.bf16.msra.mxu0 0
    %855 = vmatprep.mubr.bf16.mxu0 0
    %856 = vmatmul.mubr.bf16.gmra.mrb[0].mxu0 %v821
    %v857 = vpop.f32.mrb[0].mxu0
    %v858 = vadd.f32 0.0, %v857
    %v859 = vpop.f32.mrb[0].mxu0
    %v860 = vadd.f32 0.0, %v859
    %v861 = vpop.f32.mrb[0].mxu0
    %v862 = vpop.f32.mrb[0].mxu0
    %863 = vdwg.mxu0
    %864 = vmatprep.subr.bf16.mxu0 0
    %865 = vmatpush1.bf16.msra.mxu0 %v383
    %866 = vmatprep.subr.bf16.mxu0 0
    %867 = vmatpush1.bf16.msra.mxu0 %v386
    %868 = vmatprep.subr.bf16.mxu0 0
    %869 = vmatpush1.bf16.msra.mxu0 0
    %870 = vmatprep.subr.bf16.mxu0 0
    %871 = vmatpush1.bf16.msra.mxu0 0
    %872 = vmatprep.subr.bf16.mxu0 0
    %873 = vmatpush1.bf16.msra.mxu0 0
    %874 = vmatprep.subr.bf16.mxu0 0
    %875 = vmatpush1.bf16.msra.mxu0 0
    %876 = vmatprep.subr.bf16.mxu0 0
    %877 = vmatpush1.bf16.msra.mxu0 0
    %878 = vmatprep.subr.bf16.mxu0 0
    %879 = vmatpush1.bf16.msra.mxu0 0
    %880 = vmatprep.subr.bf16.mxu0 0
    %881 = vmatpush1.bf16.msra.mxu0 0
    %882 = vmatprep.subr.bf16.mxu0 0
    %883 = vmatpush1.bf16.msra.mxu0 0
    %884 = vmatprep.subr.bf16.mxu0 0
    %885 = vmatpush1.bf16.msra.mxu0 0
    %886 = vmatprep.subr.bf16.mxu0 0
    %887 = vmatpush1.bf16.msra.mxu0 0
    %888 = vmatprep.subr.bf16.mxu0 0
    %889 = vmatpush1.bf16.msra.mxu0 0
    %890 = vmatprep.subr.bf16.mxu0 0
    %891 = vmatpush1.bf16.msra.mxu0 0
    %892 = vmatprep.subr.bf16.mxu0 0
    %893 = vmatpush1.bf16.msra.mxu0 0
    %894 = vmatprep.subr.bf16.mxu0 0
    %895 = vmatpush1.bf16.msra.mxu0 0
    %896 = vmatprep.mubr.bf16.mxu0 0
    %897 = vmatmul.mubr.bf16.gmra.mrb[0].mxu0 %v821
    %v898 = vpop.f32.mrb[0].mxu0
    %v899 = vadd.f32 0.0, %v898
    %v900 = vpop.f32.mrb[0].mxu0
    %v901 = vpop.f32.mrb[0].mxu0
    %v902 = vpop.f32.mrb[0].mxu0
    %903 = vdwg.mxu0
    %v904 = vadd.f32 %v816, %v858
    %v905 = vadd.f32 %v817, %v860
    %v906 = vmul.f32 %v904, 0.5
    %v907 = vmul.f32 %v905, 0.5
    %v908 = vtanh.pop %v906
    %v909 = vtanh.pop %v907
    %v910 = vmul.f32 %v908, 0.5
    %v911 = vmul.f32 %v909, 0.5
    %v912 = vadd.f32 %v910, 0.5
    %v913 = vadd.f32 %v911, 0.5
    %v914 = vadd.f32 %v899, %v112
    %v915 = vmul.f32 %v912, %v914
    %v916 = vadd.f32 %v818, %v915
    %v917 = vtanh.pop %v916
    %v918 = vsub.f32 %v813, %v917
    %v919 = vmul.f32 %v913, %v918
    %v920 = vadd.f32 %v917, %v919
    %s921 = scalar_lea.vmem [#allocation2], 32
    %922 = vst.msk [vmem:[%s921] sm:$0xff] %vm174, %v920
    %v923 = vld [vmem:[%s344] sm:$0xff]
    %v924 = vld [vmem:[%s344 + $0x8] sm:$0xff]
    %v925 = vld [vmem:[%s344 + $0x10] sm:$0xff]
    %v926 = vpack.c.bf16 %v920, %v920
    %v928 = vsel %vm174, %v926, 0
    %930 = vmatprep.subr.bf16.mxu0 %v382
    %931 = vmatpush1.bf16.msra.mxu0 %v381
    %932 = vmatprep.subr.bf16.mxu0 %v385
    %933 = vmatpush1.bf16.msra.mxu0 %v384
    %934 = vmatprep.subr.bf16.mxu0 0
    %935 = vmatpush1.bf16.msra.mxu0 0
    %936 = vmatprep.subr.bf16.mxu0 0
    %937 = vmatpush1.bf16.msra.mxu0 0
    %938 = vmatprep.subr.bf16.mxu0 0
    %939 = vmatpush1.bf16.msra.mxu0 0
    %940 = vmatprep.subr.bf16.mxu0 0
    %941 = vmatpush1.bf16.msra.mxu0 0
    %942 = vmatprep.subr.bf16.mxu0 0
    %943 = vmatpush1.bf16.msra.mxu0 0
    %944 = vmatprep.subr.bf16.mxu0 0
    %945 = vmatpush1.bf16.msra.mxu0 0
    %946 = vmatprep.subr.bf16.mxu0 0
    %947 = vmatpush1.bf16.msra.mxu0 0
    %948 = vmatprep.subr.bf16.mxu0 0
    %949 = vmatpush1.bf16.msra.mxu0 0
    %950 = vmatprep.subr.bf16.mxu0 0
    %951 = vmatpush1.bf16.msra.mxu0 0
    %952 = vmatprep.subr.bf16.mxu0 0
    %953 = vmatpush1.bf16.msra.mxu0 0
    %954 = vmatprep.subr.bf16.mxu0 0
    %955 = vmatpush1.bf16.msra.mxu0 0
    %956 = vmatprep.subr.bf16.mxu0 0
    %957 = vmatpush1.bf16.msra.mxu0 0
    %958 = vmatprep.subr.bf16.mxu0 0
    %959 = vmatpush1.bf16.msra.mxu0 0
    %960 = vmatprep.subr.bf16.mxu0 0
    %961 = vmatpush1.bf16.msra.mxu0 0
    %962 = vmatprep.mubr.bf16.mxu0 0
    %963 = vmatmul.mubr.bf16.gmra.mrb[0].mxu0 %v928
    %v964 = vpop.f32.mrb[0].mxu0
    %v965 = vadd.f32 0.0, %v964
    %v966 = vpop.f32.mrb[0].mxu0
    %v967 = vadd.f32 0.0, %v966
    %v968 = vpop.f32.mrb[0].mxu0
    %v969 = vpop.f32.mrb[0].mxu0
    %970 = vdwg.mxu0
    %971 = vmatprep.subr.bf16.mxu0 0
    %972 = vmatpush1.bf16.msra.mxu0 %v383
    %973 = vmatprep.subr.bf16.mxu0 0
    %974 = vmatpush1.bf16.msra.mxu0 %v386
    %975 = vmatprep.subr.bf16.mxu0 0
    %976 = vmatpush1.bf16.msra.mxu0 0
    %977 = vmatprep.subr.bf16.mxu0 0
    %978 = vmatpush1.bf16.msra.mxu0 0
    %979 = vmatprep.subr.bf16.mxu0 0
    %980 = vmatpush1.bf16.msra.mxu0 0
    %981 = vmatprep.subr.bf16.mxu0 0
    %982 = vmatpush1.bf16.msra.mxu0 0
    %983 = vmatprep.subr.bf16.mxu0 0
    %984 = vmatpush1.bf16.msra.mxu0 0
    %985 = vmatprep.subr.bf16.mxu0 0
    %986 = vmatpush1.bf16.msra.mxu0 0
    %987 = vmatprep.subr.bf16.mxu0 0
    %988 = vmatpush1.bf16.msra.mxu0 0
    %989 = vmatprep.subr.bf16.mxu0 0
    %990 = vmatpush1.bf16.msra.mxu0 0
    %991 = vmatprep.subr.bf16.mxu0 0
    %992 = vmatpush1.bf16.msra.mxu0 0
    %993 = vmatprep.subr.bf16.mxu0 0
    %994 = vmatpush1.bf16.msra.mxu0 0
    %995 = vmatprep.subr.bf16.mxu0 0
    %996 = vmatpush1.bf16.msra.mxu0 0
    %997 = vmatprep.subr.bf16.mxu0 0
    %998 = vmatpush1.bf16.msra.mxu0 0
    %999 = vmatprep.subr.bf16.mxu0 0
    %1000 = vmatpush1.bf16.msra.mxu0 0
    %1001 = vmatprep.subr.bf16.mxu0 0
    %1002 = vmatpush1.bf16.msra.mxu0 0
    %1003 = vmatprep.mubr.bf16.mxu0 0
    %1004 = vmatmul.mubr.bf16.gmra.mrb[0].mxu0 %v928
    %v1005 = vpop.f32.mrb[0].mxu0
    %v1006 = vadd.f32 0.0, %v1005
    %v1007 = vpop.f32.mrb[0].mxu0
    %v1008 = vpop.f32.mrb[0].mxu0
    %v1009 = vpop.f32.mrb[0].mxu0
    %1010 = vdwg.mxu0
    %v1011 = vadd.f32 %v923, %v965
    %v1012 = vadd.f32 %v924, %v967
    %v1013 = vmul.f32 %v1011, 0.5
    %v1014 = vmul.f32 %v1012, 0.5
    %v1015 = vtanh.pop %v1013
    %v1016 = vtanh.pop %v1014
    %v1017 = vmul.f32 %v1015, 0.5
    %v1018 = vmul.f32 %v1016, 0.5
    %v1019 = vadd.f32 %v1017, 0.5
    %v1020 = vadd.f32 %v1018, 0.5
    %v1021 = vadd.f32 %v1006, %v112
    %v1022 = vmul.f32 %v1019, %v1021
    %v1023 = vadd.f32 %v925, %v1022
    %v1024 = vtanh.pop %v1023
    %v1025 = vsub.f32 %v920, %v1024
    %v1026 = vmul.f32 %v1020, %v1025
    %v1027 = vadd.f32 %v1024, %v1026
    %s1028 = scalar_lea.vmem [#allocation2], 40
    %1029 = vst.msk [vmem:[%s1028] sm:$0xff] %vm174, %v1027
    %v1030 = vld [vmem:[%s348] sm:$0xff]
    %v1031 = vld [vmem:[%s348 + $0x8] sm:$0xff]
    %v1032 = vld [vmem:[%s348 + $0x10] sm:$0xff]
    %v1033 = vpack.c.bf16 %v1027, %v1027
    %v1035 = vsel %vm174, %v1033, 0
    %1037 = vmatprep.subr.bf16.mxu0 %v382
    %1038 = vmatpush1.bf16.msra.mxu0 %v381
    %1039 = vmatprep.subr.bf16.mxu0 %v385
    %1040 = vmatpush1.bf16.msra.mxu0 %v384
    %1041 = vmatprep.subr.bf16.mxu0 0
    %1042 = vmatpush1.bf16.msra.mxu0 0
    %1043 = vmatprep.subr.bf16.mxu0 0
    %1044 = vmatpush1.bf16.msra.mxu0 0
    %1045 = vmatprep.subr.bf16.mxu0 0
    %1046 = vmatpush1.bf16.msra.mxu0 0
    %1047 = vmatprep.subr.bf16.mxu0 0
    %1048 = vmatpush1.bf16.msra.mxu0 0
    %1049 = vmatprep.subr.bf16.mxu0 0
    %1050 = vmatpush1.bf16.msra.mxu0 0
    %1051 = vmatprep.subr.bf16.mxu0 0
    %1052 = vmatpush1.bf16.msra.mxu0 0
    %1053 = vmatprep.subr.bf16.mxu0 0
    %1054 = vmatpush1.bf16.msra.mxu0 0
    %1055 = vmatprep.subr.bf16.mxu0 0
    %1056 = vmatpush1.bf16.msra.mxu0 0
    %1057 = vmatprep.subr.bf16.mxu0 0
    %1058 = vmatpush1.bf16.msra.mxu0 0
    %1059 = vmatprep.subr.bf16.mxu0 0
    %1060 = vmatpush1.bf16.msra.mxu0 0
    %1061 = vmatprep.subr.bf16.mxu0 0
    %1062 = vmatpush1.bf16.msra.mxu0 0
    %1063 = vmatprep.subr.bf16.mxu0 0
    %1064 = vmatpush1.bf16.msra.mxu0 0
    %1065 = vmatprep.subr.bf16.mxu0 0
    %1066 = vmatpush1.bf16.msra.mxu0 0
    %1067 = vmatprep.subr.bf16.mxu0 0
    %1068 = vmatpush1.bf16.msra.mxu0 0
    %1069 = vmatprep.mubr.bf16.mxu0 0
    %1070 = vmatmul.mubr.bf16.gmra.mrb[0].mxu0 %v1035
    %v1071 = vpop.f32.mrb[0].mxu0
    %v1072 = vadd.f32 0.0, %v1071
    %v1073 = vpop.f32.mrb[0].mxu0
    %v1074 = vadd.f32 0.0, %v1073
    %v1075 = vpop.f32.mrb[0].mxu0
    %v1076 = vpop.f32.mrb[0].mxu0
    %1077 = vdwg.mxu0
    %1078 = vmatprep.subr.bf16.mxu0 0
    %1079 = vmatpush1.bf16.msra.mxu0 %v383
    %1080 = vmatprep.subr.bf16.mxu0 0
    %1081 = vmatpush1.bf16.msra.mxu0 %v386
    %1082 = vmatprep.subr.bf16.mxu0 0
    %1083 = vmatpush1.bf16.msra.mxu0 0
    %1084 = vmatprep.subr.bf16.mxu0 0
    %1085 = vmatpush1.bf16.msra.mxu0 0
    %1086 = vmatprep.subr.bf16.mxu0 0
    %1087 = vmatpush1.bf16.msra.mxu0 0
    %1088 = vmatprep.subr.bf16.mxu0 0
    %1089 = vmatpush1.bf16.msra.mxu0 0
    %1090 = vmatprep.subr.bf16.mxu0 0
    %1091 = vmatpush1.bf16.msra.mxu0 0
    %1092 = vmatprep.subr.bf16.mxu0 0
    %1093 = vmatpush1.bf16.msra.mxu0 0
    %1094 = vmatprep.subr.bf16.mxu0 0
    %1095 = vmatpush1.bf16.msra.mxu0 0
    %1096 = vmatprep.subr.bf16.mxu0 0
    %1097 = vmatpush1.bf16.msra.mxu0 0
    %1098 = vmatprep.subr.bf16.mxu0 0
    %1099 = vmatpush1.bf16.msra.mxu0 0
    %1100 = vmatprep.subr.bf16.mxu0 0
    %1101 = vmatpush1.bf16.msra.mxu0 0
    %1102 = vmatprep.subr.bf16.mxu0 0
    %1103 = vmatpush1.bf16.msra.mxu0 0
    %1104 = vmatprep.subr.bf16.mxu0 0
    %1105 = vmatpush1.bf16.msra.mxu0 0
    %1106 = vmatprep.subr.bf16.mxu0 0
    %1107 = vmatpush1.bf16.msra.mxu0 0
    %1108 = vmatprep.subr.bf16.mxu0 0
    %1109 = vmatpush1.bf16.msra.mxu0 0
    %1110 = vmatprep.mubr.bf16.mxu0 0
    %1111 = vmatmul.mubr.bf16.gmra.mrb[0].mxu0 %v1035
    %v1112 = vpop.f32.mrb[0].mxu0
    %v1113 = vadd.f32 0.0, %v1112
    %v1114 = vpop.f32.mrb[0].mxu0
    %v1115 = vpop.f32.mrb[0].mxu0
    %v1116 = vpop.f32.mrb[0].mxu0
    %1117 = vdwg.mxu0
    %v1118 = vadd.f32 %v1030, %v1072
    %v1119 = vadd.f32 %v1031, %v1074
    %v1120 = vmul.f32 %v1118, 0.5
    %v1121 = vmul.f32 %v1119, 0.5
    %v1122 = vtanh.pop %v1120
    %v1123 = vtanh.pop %v1121
    %v1124 = vmul.f32 %v1122, 0.5
    %v1125 = vmul.f32 %v1123, 0.5
    %v1126 = vadd.f32 %v1124, 0.5
    %v1127 = vadd.f32 %v1125, 0.5
    %v1128 = vadd.f32 %v1113, %v112
    %v1129 = vmul.f32 %v1126, %v1128
    %v1130 = vadd.f32 %v1032, %v1129
    %v1131 = vtanh.pop %v1130
    %v1132 = vsub.f32 %v1027, %v1131
    %v1133 = vmul.f32 %v1127, %v1132
    %v1134 = vadd.f32 %v1131, %v1133
    %s1135 = scalar_lea.vmem [#allocation2], 48
    %1136 = vst.msk [vmem:[%s1135] sm:$0xff] %vm174, %v1134
    %v1137 = vld [vmem:[%s352] sm:$0xff]
    %v1138 = vld [vmem:[%s352 + $0x8] sm:$0xff]
    %v1139 = vld [vmem:[%s352 + $0x10] sm:$0xff]
    %v1140 = vpack.c.bf16 %v1134, %v1134
    %v1142 = vsel %vm174, %v1140, 0
    %1144 = vmatprep.subr.bf16.mxu0 %v382
    %1145 = vmatpush1.bf16.msra.mxu0 %v381
    %1146 = vmatprep.subr.bf16.mxu0 %v385
    %1147 = vmatpush1.bf16.msra.mxu0 %v384
    %1148 = vmatprep.subr.bf16.mxu0 0
    %1149 = vmatpush1.bf16.msra.mxu0 0
    %1150 = vmatprep.subr.bf16.mxu0 0
    %1151 = vmatpush1.bf16.msra.mxu0 0
    %1152 = vmatprep.subr.bf16.mxu0 0
    %1153 = vmatpush1.bf16.msra.mxu0 0
    %1154 = vmatprep.subr.bf16.mxu0 0
    %1155 = vmatpush1.bf16.msra.mxu0 0
    %1156 = vmatprep.subr.bf16.mxu0 0
    %1157 = vmatpush1.bf16.msra.mxu0 0
    %1158 = vmatprep.subr.bf16.mxu0 0
    %1159 = vmatpush1.bf16.msra.mxu0 0
    %1160 = vmatprep.subr.bf16.mxu0 0
    %1161 = vmatpush1.bf16.msra.mxu0 0
    %1162 = vmatprep.subr.bf16.mxu0 0
    %1163 = vmatpush1.bf16.msra.mxu0 0
    %1164 = vmatprep.subr.bf16.mxu0 0
    %1165 = vmatpush1.bf16.msra.mxu0 0
    %1166 = vmatprep.subr.bf16.mxu0 0
    %1167 = vmatpush1.bf16.msra.mxu0 0
    %1168 = vmatprep.subr.bf16.mxu0 0
    %1169 = vmatpush1.bf16.msra.mxu0 0
    %1170 = vmatprep.subr.bf16.mxu0 0
    %1171 = vmatpush1.bf16.msra.mxu0 0
    %1172 = vmatprep.subr.bf16.mxu0 0
    %1173 = vmatpush1.bf16.msra.mxu0 0
    %1174 = vmatprep.subr.bf16.mxu0 0
    %1175 = vmatpush1.bf16.msra.mxu0 0
    %1176 = vmatprep.mubr.bf16.mxu0 0
    %1177 = vmatmul.mubr.bf16.gmra.mrb[0].mxu0 %v1142
    %v1178 = vpop.f32.mrb[0].mxu0
    %v1179 = vadd.f32 0.0, %v1178
    %v1180 = vpop.f32.mrb[0].mxu0
    %v1181 = vadd.f32 0.0, %v1180
    %v1182 = vpop.f32.mrb[0].mxu0
    %v1183 = vpop.f32.mrb[0].mxu0
    %1184 = vdwg.mxu0
    %1185 = vmatprep.subr.bf16.mxu0 0
    %1186 = vmatpush1.bf16.msra.mxu0 %v383
    %1187 = vmatprep.subr.bf16.mxu0 0
    %1188 = vmatpush1.bf16.msra.mxu0 %v386
    %1189 = vmatprep.subr.bf16.mxu0 0
    %1190 = vmatpush1.bf16.msra.mxu0 0
    %1191 = vmatprep.subr.bf16.mxu0 0
    %1192 = vmatpush1.bf16.msra.mxu0 0
    %1193 = vmatprep.subr.bf16.mxu0 0
    %1194 = vmatpush1.bf16.msra.mxu0 0
    %1195 = vmatprep.subr.bf16.mxu0 0
    %1196 = vmatpush1.bf16.msra.mxu0 0
    %1197 = vmatprep.subr.bf16.mxu0 0
    %1198 = vmatpush1.bf16.msra.mxu0 0
    %1199 = vmatprep.subr.bf16.mxu0 0
    %1200 = vmatpush1.bf16.msra.mxu0 0
    %1201 = vmatprep.subr.bf16.mxu0 0
    %1202 = vmatpush1.bf16.msra.mxu0 0
    %1203 = vmatprep.subr.bf16.mxu0 0
    %1204 = vmatpush1.bf16.msra.mxu0 0
    %1205 = vmatprep.subr.bf16.mxu0 0
    %1206 = vmatpush1.bf16.msra.mxu0 0
    %1207 = vmatprep.subr.bf16.mxu0 0
    %1208 = vmatpush1.bf16.msra.mxu0 0
    %1209 = vmatprep.subr.bf16.mxu0 0
    %1210 = vmatpush1.bf16.msra.mxu0 0
    %1211 = vmatprep.subr.bf16.mxu0 0
    %1212 = vmatpush1.bf16.msra.mxu0 0
    %1213 = vmatprep.subr.bf16.mxu0 0
    %1214 = vmatpush1.bf16.msra.mxu0 0
    %1215 = vmatprep.subr.bf16.mxu0 0
    %1216 = vmatpush1.bf16.msra.mxu0 0
    %1217 = vmatprep.mubr.bf16.mxu0 0
    %1218 = vmatmul.mubr.bf16.gmra.mrb[0].mxu0 %v1142
    %v1219 = vpop.f32.mrb[0].mxu0
    %v1220 = vadd.f32 0.0, %v1219
    %v1221 = vpop.f32.mrb[0].mxu0
    %v1222 = vpop.f32.mrb[0].mxu0
    %v1223 = vpop.f32.mrb[0].mxu0
    %1224 = vdwg.mxu0
    %v1225 = vadd.f32 %v1137, %v1179
    %v1226 = vadd.f32 %v1138, %v1181
    %v1227 = vmul.f32 %v1225, 0.5
    %v1228 = vmul.f32 %v1226, 0.5
    %v1229 = vtanh.pop %v1227
    %v1230 = vtanh.pop %v1228
    %v1231 = vmul.f32 %v1229, 0.5
    %v1232 = vmul.f32 %v1230, 0.5
    %v1233 = vadd.f32 %v1231, 0.5
    %v1234 = vadd.f32 %v1232, 0.5
    %v1235 = vadd.f32 %v1220, %v112
    %v1236 = vmul.f32 %v1233, %v1235
    %v1237 = vadd.f32 %v1139, %v1236
    %v1238 = vtanh.pop %v1237
    %v1239 = vsub.f32 %v1134, %v1238
    %v1240 = vmul.f32 %v1234, %v1239
    %v1241 = vadd.f32 %v1238, %v1240
    %s1242 = scalar_lea.vmem [#allocation2], 56
    %1243 = vst.msk [vmem:[%s1242] sm:$0xff] %vm174, %v1241
    %1244 = vst.msk [vmem:[#allocation13] sm:$0xff] %vm174, %v1241
    %s1245 = scalar_lea.vmem [#allocation10], 48
    %v1246 = vld [vmem:[%s1245] sm:$0xff]
    %v1247 = vld [vmem:[%s1245 + $0x8] sm:$0xf]
    %v1248 = vld [vmem:[%s1245 + $0xc] sm:$0xff]
    %v1249 = vld [vmem:[%s1245 + $0x14] sm:$0xf]
    %v1250 = vld [vmem:[%s1245 + $0x18] sm:$0xff]
    %v1251 = vld [vmem:[%s1245 + $0x20] sm:$0xf]
    %v1252 = vld [vmem:[%s1245 + $0x24] sm:$0xff]
    %v1253 = vld [vmem:[%s1245 + $0x2c] sm:$0xf]
    %s1254 = scalar_lea.vmem [#allocation11], 48
    %v1255 = vld [vmem:[%s1254] sm:$0xff]
    %v1256 = vld [vmem:[%s1254 + $0x8] sm:$0xf]
    %v1257 = vld [vmem:[%s1254 + $0xc] sm:$0xff]
    %v1258 = vld [vmem:[%s1254 + $0x14] sm:$0xf]
    %v1259 = vld [vmem:[%s1254 + $0x18] sm:$0xff]
    %v1260 = vld [vmem:[%s1254 + $0x20] sm:$0xf]
    %v1261 = vld [vmem:[%s1254 + $0x24] sm:$0xff]
    %v1262 = vld [vmem:[%s1254 + $0x2c] sm:$0xf]
    %s1263 = scalar_lea.vmem %s4, 3
    %v1264 = vld [vmem:[%s1263] sm:$0x7]
    %s1265 = scalar_lea.vmem %s5, 1
    %v1266 = vld [vmem:[%s1265] sm:$0x1]
    %v1268 = vlaneseq
    %v1269 = vshrl.u32 %v1268, 7
    %v1270 = vsub.s32 0, %v1269
    %v1271 = vrot.slane %v1266, %v1270
    %v1273 = vld [vmem:[#allocation2] sm:$0xff]
    %v1274 = vld [vmem:[#allocation2 + $0x8] sm:$0xff]
    %v1275 = vld [vmem:[#allocation2 + $0x10] sm:$0xff]
    %v1276 = vld [vmem:[#allocation2 + $0x18] sm:$0xff]
    %v1277 = vld [vmem:[#allocation2 + $0x20] sm:$0xff]
    %v1278 = vld [vmem:[#allocation2 + $0x28] sm:$0xff]
    %v1279 = vld [vmem:[#allocation2 + $0x30] sm:$0xff]
    %v1280 = vld [vmem:[#allocation2 + $0x38] sm:$0xff]
    %v1281 = vpack.c.bf16 %v1274, %v1273
    %v1282 = vpack.c.bf16 %v1276, %v1275
    %v1283 = vpack.c.bf16 %v1278, %v1277
    %v1284 = vpack.c.bf16 %v1280, %v1279
    %v1286 = vlaneseq
    %v1287 = vshrl.u32 %v1286, 7
    %v1288 = vsub.s32 0, %v1287
    %v1289 = vrot.slane %v1264, %v1288
    %v1290 = vlaneseq
    %v1291 = vshrl.u32 %v1290, 7
    %v1292 = vsub.s32 1, %v1291
    %v1293 = vrot.slane %v1264, %v1292
    %v1294 = vlaneseq
    %v1295 = vshrl.u32 %v1294, 7
    %v1296 = vsub.s32 2, %v1295
    %v1297 = vrot.slane %v1264, %v1296
    %v1309 = vunpack.c.l.b16 %v1246
    %v1310 = vunpack.c.h.b16 %v1246
    %v1311 = vunpack.c.l.b16 %v1247
    %v1312 = vunpack.c.l.b16 %v1248
    %v1313 = vunpack.c.h.b16 %v1248
    %v1314 = vunpack.c.l.b16 %v1249
    %v1315 = vunpack.c.l.b16 %v1250
    %v1316 = vunpack.c.h.b16 %v1250
    %v1317 = vunpack.c.l.b16 %v1251
    %v1318 = vunpack.c.l.b16 %v1252
    %v1319 = vunpack.c.h.b16 %v1252
    %v1320 = vunpack.c.l.b16 %v1253
    %v1321 = vpack.c.b16 %v1312, %v1309
    %v1322 = vpack.c.b16 %v1313, %v1310
    %v1323 = vpack.c.b16 %v1314, %v1311
    %v1324 = vpack.c.b16 %v1318, %v1315
    %v1325 = vpack.c.b16 %v1319, %v1316
    %v1326 = vpack.c.b16 %v1320, %v1317
    %v1334 = vsel %vm174, %v1281, 0
    %v1337 = vsel %vm174, %v1282, 0
    %v1340 = vsel %vm174, %v1283, 0
    %v1343 = vsel %vm174, %v1284, 0
    %1345 = vmatprep.subr.bf16.mxu0 %v1322
    %1346 = vmatpush1.bf16.msra.mxu0 %v1321
    %1347 = vmatprep.subr.bf16.mxu0 %v1325
    %1348 = vmatpush1.bf16.msra.mxu0 %v1324
    %1349 = vmatprep.subr.bf16.mxu0 0
    %1350 = vmatpush1.bf16.msra.mxu0 0
    %1351 = vmatprep.subr.bf16.mxu0 0
    %1352 = vmatpush1.bf16.msra.mxu0 0
    %1353 = vmatprep.subr.bf16.mxu0 0
    %1354 = vmatpush1.bf16.msra.mxu0 0
    %1355 = vmatprep.subr.bf16.mxu0 0
    %1356 = vmatpush1.bf16.msra.mxu0 0
    %1357 = vmatprep.subr.bf16.mxu0 0
    %1358 = vmatpush1.bf16.msra.mxu0 0
    %1359 = vmatprep.subr.bf16.mxu0 0
    %1360 = vmatpush1.bf16.msra.mxu0 0
    %1361 = vmatprep.subr.bf16.mxu0 0
    %1362 = vmatpush1.bf16.msra.mxu0 0
    %1363 = vmatprep.subr.bf16.mxu0 0
    %1364 = vmatpush1.bf16.msra.mxu0 0
    %1365 = vmatprep.subr.bf16.mxu0 0
    %1366 = vmatpush1.bf16.msra.mxu0 0
    %1367 = vmatprep.subr.bf16.mxu0 0
    %1368 = vmatpush1.bf16.msra.mxu0 0
    %1369 = vmatprep.subr.bf16.mxu0 0
    %1370 = vmatpush1.bf16.msra.mxu0 0
    %1371 = vmatprep.subr.bf16.mxu0 0
    %1372 = vmatpush1.bf16.msra.mxu0 0
    %1373 = vmatprep.subr.bf16.mxu0 0
    %1374 = vmatpush1.bf16.msra.mxu0 0
    %1375 = vmatprep.subr.bf16.mxu0 0
    %1376 = vmatpush1.bf16.msra.mxu0 0
    %1377 = vmatprep.mubr.bf16.mxu0 0
    %1378 = vmatmul.mubr.bf16.gmra.mrb[0].mxu0 %v1334
    %v1379 = vpop.f32.mrb[0].mxu0
    %v1380 = vadd.f32 %v1289, %v1379
    %v1381 = vpop.f32.mrb[0].mxu0
    %v1382 = vadd.f32 %v1293, %v1381
    %v1383 = vpop.f32.mrb[0].mxu0
    %v1384 = vadd.f32 %v1289, %v1383
    %v1385 = vpop.f32.mrb[0].mxu0
    %v1386 = vadd.f32 %v1293, %v1385
    %1387 = vmatprep.mubr.bf16.mxu0 0
    %1388 = vmatmul.mubr.bf16.gmra.mrb[0].mxu0 %v1337
    %v1389 = vpop.f32.mrb[0].mxu0
    %v1390 = vadd.f32 %v1289, %v1389
    %v1391 = vpop.f32.mrb[0].mxu0
    %v1392 = vadd.f32 %v1293, %v1391
    %v1393 = vpop.f32.mrb[0].mxu0
    %v1394 = vadd.f32 %v1289, %v1393
    %v1395 = vpop.f32.mrb[0].mxu0
    %v1396 = vadd.f32 %v1293, %v1395
    %1397 = vmatprep.mubr.bf16.mxu0 0
    %1398 = vmatmul.mubr.bf16.gmra.mrb[0].mxu0 %v1340
    %v1399 = vpop.f32.mrb[0].mxu0
    %v1400 = vadd.f32 %v1289, %v1399
    %v1401 = vpop.f32.mrb[0].mxu0
    %v1402 = vadd.f32 %v1293, %v1401
    %v1403 = vpop.f32.mrb[0].mxu0
    %v1404 = vadd.f32 %v1289, %v1403
    %v1405 = vpop.f32.mrb[0].mxu0
    %v1406 = vadd.f32 %v1293, %v1405
    %1407 = vmatprep.mubr.bf16.mxu0 0
    %1408 = vmatmul.mubr.bf16.gmra.mrb[0].mxu0 %v1343
    %v1409 = vpop.f32.mrb[0].mxu0
    %v1410 = vadd.f32 %v1289, %v1409
    %v1411 = vpop.f32.mrb[0].mxu0
    %v1412 = vadd.f32 %v1293, %v1411
    %v1413 = vpop.f32.mrb[0].mxu0
    %v1414 = vadd.f32 %v1289, %v1413
    %v1415 = vpop.f32.mrb[0].mxu0
    %v1416 = vadd.f32 %v1293, %v1415
    %1417 = vdwg.mxu0
    %1418 = vmatprep.subr.bf16.mxu0 0
    %1419 = vmatpush1.bf16.msra.mxu0 %v1323
    %1420 = vmatprep.subr.bf16.mxu0 0
    %1421 = vmatpush1.bf16.msra.mxu0 %v1326
    %1422 = vmatprep.subr.bf16.mxu0 0
    %1423 = vmatpush1.bf16.msra.mxu0 0
    %1424 = vmatprep.subr.bf16.mxu0 0
    %1425 = vmatpush1.bf16.msra.mxu0 0
    %1426 = vmatprep.subr.bf16.mxu0 0
    %1427 = vmatpush1.bf16.msra.mxu0 0
    %1428 = vmatprep.subr.bf16.mxu0 0
    %1429 = vmatpush1.bf16.msra.mxu0 0
    %1430 = vmatprep.subr.bf16.mxu0 0
    %1431 = vmatpush1.bf16.msra.mxu0 0
    %1432 = vmatprep.subr.bf16.mxu0 0
    %1433 = vmatpush1.bf16.msra.mxu0 0
    %1434 = vmatprep.subr.bf16.mxu0 0
    %1435 = vmatpush1.bf16.msra.mxu0 0
    %1436 = vmatprep.subr.bf16.mxu0 0
    %1437 = vmatpush1.bf16.msra.mxu0 0
    %1438 = vmatprep.subr.bf16.mxu0 0
    %1439 = vmatpush1.bf16.msra.mxu0 0
    %1440 = vmatprep.subr.bf16.mxu0 0
    %1441 = vmatpush1.bf16.msra.mxu0 0
    %1442 = vmatprep.subr.bf16.mxu0 0
    %1443 = vmatpush1.bf16.msra.mxu0 0
    %1444 = vmatprep.subr.bf16.mxu0 0
    %1445 = vmatpush1.bf16.msra.mxu0 0
    %1446 = vmatprep.subr.bf16.mxu0 0
    %1447 = vmatpush1.bf16.msra.mxu0 0
    %1448 = vmatprep.subr.bf16.mxu0 0
    %1449 = vmatpush1.bf16.msra.mxu0 0
    %1450 = vmatprep.mubr.bf16.mxu0 0
    %1451 = vmatmul.mubr.bf16.gmra.mrb[0].mxu0 %v1334
    %v1452 = vpop.f32.mrb[0].mxu0
    %v1453 = vadd.f32 %v1297, %v1452
    %v1454 = vpop.f32.mrb[0].mxu0
    %v1455 = vpop.f32.mrb[0].mxu0
    %v1456 = vadd.f32 %v1297, %v1455
    %v1457 = vpop.f32.mrb[0].mxu0
    %1458 = vmatprep.mubr.bf16.mxu0 0
    %1459 = vmatmul.mubr.bf16.gmra.mrb[0].mxu0 %v1337
    %v1460 = vpop.f32.mrb[0].mxu0
    %v1461 = vadd.f32 %v1297, %v1460
    %v1462 = vpop.f32.mrb[0].mxu0
    %v1463 = vpop.f32.mrb[0].mxu0
    %v1464 = vadd.f32 %v1297, %v1463
    %v1465 = vpop.f32.mrb[0].mxu0
    %1466 = vmatprep.mubr.bf16.mxu0 0
    %1467 = vmatmul.mubr.bf16.gmra.mrb[0].mxu0 %v1340
    %v1468 = vpop.f32.mrb[0].mxu0
    %v1469 = vadd.f32 %v1297, %v1468
    %v1470 = vpop.f32.mrb[0].mxu0
    %v1471 = vpop.f32.mrb[0].mxu0
    %v1472 = vadd.f32 %v1297, %v1471
    %v1473 = vpop.f32.mrb[0].mxu0
    %1474 = vmatprep.mubr.bf16.mxu0 0
    %1475 = vmatmul.mubr.bf16.gmra.mrb[0].mxu0 %v1343
    %v1476 = vpop.f32.mrb[0].mxu0
    %v1477 = vadd.f32 %v1297, %v1476
    %v1478 = vpop.f32.mrb[0].mxu0
    %v1479 = vpop.f32.mrb[0].mxu0
    %v1480 = vadd.f32 %v1297, %v1479
    %v1481 = vpop.f32.mrb[0].mxu0
    %1482 = vdwg.mxu0
    %1483 = vst [vmem:[#allocation3] sm:$0xff] %v1380
    %1484 = vst [vmem:[#allocation3 + $0x8] sm:$0xff] %v1382
    %1485 = vst [vmem:[#allocation3 + $0x10] sm:$0xff] %v1453
    %1486 = vst [vmem:[%s328] sm:$0xff] %v1384
    %1487 = vst [vmem:[%s328 + $0x8] sm:$0xff] %v1386
    %1488 = vst [vmem:[%s328 + $0x10] sm:$0xff] %v1456
    %1489 = vst [vmem:[%s332] sm:$0xff] %v1390
    %1490 = vst [vmem:[%s332 + $0x8] sm:$0xff] %v1392
    %1491 = vst [vmem:[%s332 + $0x10] sm:$0xff] %v1461
    %1492 = vst [vmem:[%s336] sm:$0xff] %v1394
    %1493 = vst [vmem:[%s336 + $0x8] sm:$0xff] %v1396
    %1494 = vst [vmem:[%s336 + $0x10] sm:$0xff] %v1464
    %1495 = vst [vmem:[%s340] sm:$0xff] %v1400
    %1496 = vst [vmem:[%s340 + $0x8] sm:$0xff] %v1402
    %1497 = vst [vmem:[%s340 + $0x10] sm:$0xff] %v1469
    %1498 = vst [vmem:[%s344] sm:$0xff] %v1404
    %1499 = vst [vmem:[%s344 + $0x8] sm:$0xff] %v1406
    %1500 = vst [vmem:[%s344 + $0x10] sm:$0xff] %v1472
    %1501 = vst [vmem:[%s348] sm:$0xff] %v1410
    %1502 = vst [vmem:[%s348 + $0x8] sm:$0xff] %v1412
    %1503 = vst [vmem:[%s348 + $0x10] sm:$0xff] %v1477
    %1504 = vst [vmem:[%s352] sm:$0xff] %v1414
    %1505 = vst [vmem:[%s352 + $0x8] sm:$0xff] %v1416
    %1506 = vst [vmem:[%s352 + $0x10] sm:$0xff] %v1480
    %s1507 = scalar_lea.vmem [#allocation8], 8
    %v1508 = vld [vmem:[%s1507] sm:$0xff]
    %v1509 = vld [vmem:[#allocation3] sm:$0xff]
    %v1510 = vld [vmem:[#allocation3 + $0x8] sm:$0xff]
    %v1511 = vld [vmem:[#allocation3 + $0x10] sm:$0xff]
    %v1512 = vpack.c.bf16 %v1508, %v1508
    %v1521 = vunpack.c.l.b16 %v1255
    %v1522 = vunpack.c.h.b16 %v1255
    %v1523 = vunpack.c.l.b16 %v1256
    %v1524 = vunpack.c.l.b16 %v1257
    %v1525 = vunpack.c.h.b16 %v1257
    %v1526 = vunpack.c.l.b16 %v1258
    %v1527 = vunpack.c.l.b16 %v1259
    %v1528 = vunpack.c.h.b16 %v1259
    %v1529 = vunpack.c.l.b16 %v1260
    %v1530 = vunpack.c.l.b16 %v1261
    %v1531 = vunpack.c.h.b16 %v1261
    %v1532 = vunpack.c.l.b16 %v1262
    %v1533 = vpack.c.b16 %v1524, %v1521
    %v1534 = vpack.c.b16 %v1525, %v1522
    %v1535 = vpack.c.b16 %v1526, %v1523
    %v1536 = vpack.c.b16 %v1530, %v1527
    %v1537 = vpack.c.b16 %v1531, %v1528
    %v1538 = vpack.c.b16 %v1532, %v1529
    %v1546 = vsel %vm174, %v1512, 0
    %1548 = vmatprep.subr.bf16.mxu0 %v1534
    %1549 = vmatpush1.bf16.msra.mxu0 %v1533
    %1550 = vmatprep.subr.bf16.mxu0 %v1537
    %1551 = vmatpush1.bf16.msra.mxu0 %v1536
    %1552 = vmatprep.subr.bf16.mxu0 0
    %1553 = vmatpush1.bf16.msra.mxu0 0
    %1554 = vmatprep.subr.bf16.mxu0 0
    %1555 = vmatpush1.bf16.msra.mxu0 0
    %1556 = vmatprep.subr.bf16.mxu0 0
    %1557 = vmatpush1.bf16.msra.mxu0 0
    %1558 = vmatprep.subr.bf16.mxu0 0
    %1559 = vmatpush1.bf16.msra.mxu0 0
    %1560 = vmatprep.subr.bf16.mxu0 0
    %1561 = vmatpush1.bf16.msra.mxu0 0
    %1562 = vmatprep.subr.bf16.mxu0 0
    %1563 = vmatpush1.bf16.msra.mxu0 0
    %1564 = vmatprep.subr.bf16.mxu0 0
    %1565 = vmatpush1.bf16.msra.mxu0 0
    %1566 = vmatprep.subr.bf16.mxu0 0
    %1567 = vmatpush1.bf16.msra.mxu0 0
    %1568 = vmatprep.subr.bf16.mxu0 0
    %1569 = vmatpush1.bf16.msra.mxu0 0
    %1570 = vmatprep.subr.bf16.mxu0 0
    %1571 = vmatpush1.bf16.msra.mxu0 0
    %1572 = vmatprep.subr.bf16.mxu0 0
    %1573 = vmatpush1.bf16.msra.mxu0 0
    %1574 = vmatprep.subr.bf16.mxu0 0
    %1575 = vmatpush1.bf16.msra.mxu0 0
    %1576 = vmatprep.subr.bf16.mxu0 0
    %1577 = vmatpush1.bf16.msra.mxu0 0
    %1578 = vmatprep.subr.bf16.mxu0 0
    %1579 = vmatpush1.bf16.msra.mxu0 0
    %1580 = vmatprep.mubr.bf16.mxu0 0
    %1581 = vmatmul.mubr.bf16.gmra.mrb[0].mxu0 %v1546
    %v1582 = vpop.f32.mrb[0].mxu0
    %v1583 = vadd.f32 0.0, %v1582
    %v1584 = vpop.f32.mrb[0].mxu0
    %v1585 = vadd.f32 0.0, %v1584
    %v1586 = vpop.f32.mrb[0].mxu0
    %v1587 = vpop.f32.mrb[0].mxu0
    %1588 = vdwg.mxu0
    %1589 = vmatprep.subr.bf16.mxu0 0
    %1590 = vmatpush1.bf16.msra.mxu0 %v1535
    %1591 = vmatprep.subr.bf16.mxu0 0
    %1592 = vmatpush1.bf16.msra.mxu0 %v1538
    %1593 = vmatprep.subr.bf16.mxu0 0
    %1594 = vmatpush1.bf16.msra.mxu0 0
    %1595 = vmatprep.subr.bf16.mxu0 0
    %1596 = vmatpush1.bf16.msra.mxu0 0
    %1597 = vmatprep.subr.bf16.mxu0 0
    %1598 = vmatpush1.bf16.msra.mxu0 0
    %1599 = vmatprep.subr.bf16.mxu0 0
    %1600 = vmatpush1.bf16.msra.mxu0 0
    %1601 = vmatprep.subr.bf16.mxu0 0
    %1602 = vmatpush1.bf16.msra.mxu0 0
    %1603 = vmatprep.subr.bf16.mxu0 0
    %1604 = vmatpush1.bf16.msra.mxu0 0
    %1605 = vmatprep.subr.bf16.mxu0 0
    %1606 = vmatpush1.bf16.msra.mxu0 0
    %1607 = vmatprep.subr.bf16.mxu0 0
    %1608 = vmatpush1.bf16.msra.mxu0 0
    %1609 = vmatprep.subr.bf16.mxu0 0
    %1610 = vmatpush1.bf16.msra.mxu0 0
    %1611 = vmatprep.subr.bf16.mxu0 0
    %1612 = vmatpush1.bf16.msra.mxu0 0
    %1613 = vmatprep.subr.bf16.mxu0 0
    %1614 = vmatpush1.bf16.msra.mxu0 0
    %1615 = vmatprep.subr.bf16.mxu0 0
    %1616 = vmatpush1.bf16.msra.mxu0 0
    %1617 = vmatprep.subr.bf16.mxu0 0
    %1618 = vmatpush1.bf16.msra.mxu0 0
    %1619 = vmatprep.subr.bf16.mxu0 0
    %1620 = vmatpush1.bf16.msra.mxu0 0
    %1621 = vmatprep.mubr.bf16.mxu0 0
    %1622 = vmatmul.mubr.bf16.gmra.mrb[0].mxu0 %v1546
    %v1623 = vpop.f32.mrb[0].mxu0
    %v1624 = vadd.f32 0.0, %v1623
    %v1625 = vpop.f32.mrb[0].mxu0
    %v1626 = vpop.f32.mrb[0].mxu0
    %v1627 = vpop.f32.mrb[0].mxu0
    %1628 = vdwg.mxu0
    %v1629 = vadd.f32 %v1509, %v1583
    %v1630 = vadd.f32 %v1510, %v1585
    %v1631 = vmul.f32 %v1629, 0.5
    %v1632 = vmul.f32 %v1630, 0.5
    %v1633 = vtanh.pop %v1631
    %v1634 = vtanh.pop %v1632
    %v1635 = vmul.f32 %v1633, 0.5
    %v1636 = vmul.f32 %v1634, 0.5
    %v1637 = vadd.f32 %v1635, 0.5
    %v1638 = vadd.f32 %v1636, 0.5
    %v1639 = vadd.f32 %v1624, %v1271
    %v1640 = vmul.f32 %v1637, %v1639
    %v1641 = vadd.f32 %v1511, %v1640
    %v1642 = vtanh.pop %v1641
    %v1643 = vsub.f32 %v1508, %v1642
    %v1644 = vmul.f32 %v1638, %v1643
    %v1645 = vadd.f32 %v1642, %v1644
    %v1646 = vtanh.pop %v1645
    %v1647 = vld [vmem:[%s6] sm:$0x1]
    %v1649 = vlaneseq
    %v1650 = vshrl.u32 %v1649, 7
    %v1651 = vsub.s32 0, %v1650
    %v1652 = vrot.slane %v1647, %v1651
    %v1654 = vmul.f32 %v1646, %v1652
    %v1655 = vadd.f32 %v1654, 0.0
    %v1656 = vld [vmem:[%s328] sm:$0xff]
    %v1657 = vld [vmem:[%s328 + $0x8] sm:$0xff]
    %v1658 = vld [vmem:[%s328 + $0x10] sm:$0xff]
    %v1659 = vpack.c.bf16 %v1645, %v1645
    %v1661 = vsel %vm174, %v1659, 0
    %1663 = vmatprep.subr.bf16.mxu0 %v1534
    %1664 = vmatpush1.bf16.msra.mxu0 %v1533
    %1665 = vmatprep.subr.bf16.mxu0 %v1537
    %1666 = vmatpush1.bf16.msra.mxu0 %v1536
    %1667 = vmatprep.subr.bf16.mxu0 0
    %1668 = vmatpush1.bf16.msra.mxu0 0
    %1669 = vmatprep.subr.bf16.mxu0 0
    %1670 = vmatpush1.bf16.msra.mxu0 0
    %1671 = vmatprep.subr.bf16.mxu0 0
    %1672 = vmatpush1.bf16.msra.mxu0 0
    %1673 = vmatprep.subr.bf16.mxu0 0
    %1674 = vmatpush1.bf16.msra.mxu0 0
    %1675 = vmatprep.subr.bf16.mxu0 0
    %1676 = vmatpush1.bf16.msra.mxu0 0
    %1677 = vmatprep.subr.bf16.mxu0 0
    %1678 = vmatpush1.bf16.msra.mxu0 0
    %1679 = vmatprep.subr.bf16.mxu0 0
    %1680 = vmatpush1.bf16.msra.mxu0 0
    %1681 = vmatprep.subr.bf16.mxu0 0
    %1682 = vmatpush1.bf16.msra.mxu0 0
    %1683 = vmatprep.subr.bf16.mxu0 0
    %1684 = vmatpush1.bf16.msra.mxu0 0
    %1685 = vmatprep.subr.bf16.mxu0 0
    %1686 = vmatpush1.bf16.msra.mxu0 0
    %1687 = vmatprep.subr.bf16.mxu0 0
    %1688 = vmatpush1.bf16.msra.mxu0 0
    %1689 = vmatprep.subr.bf16.mxu0 0
    %1690 = vmatpush1.bf16.msra.mxu0 0
    %1691 = vmatprep.subr.bf16.mxu0 0
    %1692 = vmatpush1.bf16.msra.mxu0 0
    %1693 = vmatprep.subr.bf16.mxu0 0
    %1694 = vmatpush1.bf16.msra.mxu0 0
    %1695 = vmatprep.mubr.bf16.mxu0 0
    %1696 = vmatmul.mubr.bf16.gmra.mrb[0].mxu0 %v1661
    %v1697 = vpop.f32.mrb[0].mxu0
    %v1698 = vadd.f32 0.0, %v1697
    %v1699 = vpop.f32.mrb[0].mxu0
    %v1700 = vadd.f32 0.0, %v1699
    %v1701 = vpop.f32.mrb[0].mxu0
    %v1702 = vpop.f32.mrb[0].mxu0
    %1703 = vdwg.mxu0
    %1704 = vmatprep.subr.bf16.mxu0 0
    %1705 = vmatpush1.bf16.msra.mxu0 %v1535
    %1706 = vmatprep.subr.bf16.mxu0 0
    %1707 = vmatpush1.bf16.msra.mxu0 %v1538
    %1708 = vmatprep.subr.bf16.mxu0 0
    %1709 = vmatpush1.bf16.msra.mxu0 0
    %1710 = vmatprep.subr.bf16.mxu0 0
    %1711 = vmatpush1.bf16.msra.mxu0 0
    %1712 = vmatprep.subr.bf16.mxu0 0
    %1713 = vmatpush1.bf16.msra.mxu0 0
    %1714 = vmatprep.subr.bf16.mxu0 0
    %1715 = vmatpush1.bf16.msra.mxu0 0
    %1716 = vmatprep.subr.bf16.mxu0 0
    %1717 = vmatpush1.bf16.msra.mxu0 0
    %1718 = vmatprep.subr.bf16.mxu0 0
    %1719 = vmatpush1.bf16.msra.mxu0 0
    %1720 = vmatprep.subr.bf16.mxu0 0
    %1721 = vmatpush1.bf16.msra.mxu0 0
    %1722 = vmatprep.subr.bf16.mxu0 0
    %1723 = vmatpush1.bf16.msra.mxu0 0
    %1724 = vmatprep.subr.bf16.mxu0 0
    %1725 = vmatpush1.bf16.msra.mxu0 0
    %1726 = vmatprep.subr.bf16.mxu0 0
    %1727 = vmatpush1.bf16.msra.mxu0 0
    %1728 = vmatprep.subr.bf16.mxu0 0
    %1729 = vmatpush1.bf16.msra.mxu0 0
    %1730 = vmatprep.subr.bf16.mxu0 0
    %1731 = vmatpush1.bf16.msra.mxu0 0
    %1732 = vmatprep.subr.bf16.mxu0 0
    %1733 = vmatpush1.bf16.msra.mxu0 0
    %1734 = vmatprep.subr.bf16.mxu0 0
    %1735 = vmatpush1.bf16.msra.mxu0 0
    %1736 = vmatprep.mubr.bf16.mxu0 0
    %1737 = vmatmul.mubr.bf16.gmra.mrb[0].mxu0 %v1661
    %v1738 = vpop.f32.mrb[0].mxu0
    %v1739 = vadd.f32 0.0, %v1738
    %v1740 = vpop.f32.mrb[0].mxu0
    %v1741 = vpop.f32.mrb[0].mxu0
    %v1742 = vpop.f32.mrb[0].mxu0
    %1743 = vdwg.mxu0
    %v1744 = vadd.f32 %v1656, %v1698
    %v1745 = vadd.f32 %v1657, %v1700
    %v1746 = vmul.f32 %v1744, 0.5
    %v1747 = vmul.f32 %v1745, 0.5
    %v1748 = vtanh.pop %v1746
    %v1749 = vtanh.pop %v1747
    %v1750 = vmul.f32 %v1748, 0.5
    %v1751 = vmul.f32 %v1749, 0.5
    %v1752 = vadd.f32 %v1750, 0.5
    %v1753 = vadd.f32 %v1751, 0.5
    %v1754 = vadd.f32 %v1739, %v1271
    %v1755 = vmul.f32 %v1752, %v1754
    %v1756 = vadd.f32 %v1658, %v1755
    %v1757 = vtanh.pop %v1756
    %v1758 = vsub.f32 %v1645, %v1757
    %v1759 = vmul.f32 %v1753, %v1758
    %v1760 = vadd.f32 %v1757, %v1759
    %v1761 = vtanh.pop %v1760
    %s1762 = scalar_lea.vmem %s6, 1
    %v1763 = vld [vmem:[%s1762] sm:$0x1]
    %v1765 = vlaneseq
    %v1766 = vshrl.u32 %v1765, 7
    %v1767 = vsub.s32 0, %v1766
    %v1768 = vrot.slane %v1763, %v1767
    %v1770 = vmul.f32 %v1761, %v1768
    %v1771 = vadd.f32 %v1655, %v1770
    %v1772 = vld [vmem:[%s332] sm:$0xff]
    %v1773 = vld [vmem:[%s332 + $0x8] sm:$0xff]
    %v1774 = vld [vmem:[%s332 + $0x10] sm:$0xff]
    %v1775 = vpack.c.bf16 %v1760, %v1760
    %v1777 = vsel %vm174, %v1775, 0
    %1779 = vmatprep.subr.bf16.mxu0 %v1534
    %1780 = vmatpush1.bf16.msra.mxu0 %v1533
    %1781 = vmatprep.subr.bf16.mxu0 %v1537
    %1782 = vmatpush1.bf16.msra.mxu0 %v1536
    %1783 = vmatprep.subr.bf16.mxu0 0
    %1784 = vmatpush1.bf16.msra.mxu0 0
    %1785 = vmatprep.subr.bf16.mxu0 0
    %1786 = vmatpush1.bf16.msra.mxu0 0
    %1787 = vmatprep.subr.bf16.mxu0 0
    %1788 = vmatpush1.bf16.msra.mxu0 0
    %1789 = vmatprep.subr.bf16.mxu0 0
    %1790 = vmatpush1.bf16.msra.mxu0 0
    %1791 = vmatprep.subr.bf16.mxu0 0
    %1792 = vmatpush1.bf16.msra.mxu0 0
    %1793 = vmatprep.subr.bf16.mxu0 0
    %1794 = vmatpush1.bf16.msra.mxu0 0
    %1795 = vmatprep.subr.bf16.mxu0 0
    %1796 = vmatpush1.bf16.msra.mxu0 0
    %1797 = vmatprep.subr.bf16.mxu0 0
    %1798 = vmatpush1.bf16.msra.mxu0 0
    %1799 = vmatprep.subr.bf16.mxu0 0
    %1800 = vmatpush1.bf16.msra.mxu0 0
    %1801 = vmatprep.subr.bf16.mxu0 0
    %1802 = vmatpush1.bf16.msra.mxu0 0
    %1803 = vmatprep.subr.bf16.mxu0 0
    %1804 = vmatpush1.bf16.msra.mxu0 0
    %1805 = vmatprep.subr.bf16.mxu0 0
    %1806 = vmatpush1.bf16.msra.mxu0 0
    %1807 = vmatprep.subr.bf16.mxu0 0
    %1808 = vmatpush1.bf16.msra.mxu0 0
    %1809 = vmatprep.subr.bf16.mxu0 0
    %1810 = vmatpush1.bf16.msra.mxu0 0
    %1811 = vmatprep.mubr.bf16.mxu0 0
    %1812 = vmatmul.mubr.bf16.gmra.mrb[0].mxu0 %v1777
    %v1813 = vpop.f32.mrb[0].mxu0
    %v1814 = vadd.f32 0.0, %v1813
    %v1815 = vpop.f32.mrb[0].mxu0
    %v1816 = vadd.f32 0.0, %v1815
    %v1817 = vpop.f32.mrb[0].mxu0
    %v1818 = vpop.f32.mrb[0].mxu0
    %1819 = vdwg.mxu0
    %1820 = vmatprep.subr.bf16.mxu0 0
    %1821 = vmatpush1.bf16.msra.mxu0 %v1535
    %1822 = vmatprep.subr.bf16.mxu0 0
    %1823 = vmatpush1.bf16.msra.mxu0 %v1538
    %1824 = vmatprep.subr.bf16.mxu0 0
    %1825 = vmatpush1.bf16.msra.mxu0 0
    %1826 = vmatprep.subr.bf16.mxu0 0
    %1827 = vmatpush1.bf16.msra.mxu0 0
    %1828 = vmatprep.subr.bf16.mxu0 0
    %1829 = vmatpush1.bf16.msra.mxu0 0
    %1830 = vmatprep.subr.bf16.mxu0 0
    %1831 = vmatpush1.bf16.msra.mxu0 0
    %1832 = vmatprep.subr.bf16.mxu0 0
    %1833 = vmatpush1.bf16.msra.mxu0 0
    %1834 = vmatprep.subr.bf16.mxu0 0
    %1835 = vmatpush1.bf16.msra.mxu0 0
    %1836 = vmatprep.subr.bf16.mxu0 0
    %1837 = vmatpush1.bf16.msra.mxu0 0
    %1838 = vmatprep.subr.bf16.mxu0 0
    %1839 = vmatpush1.bf16.msra.mxu0 0
    %1840 = vmatprep.subr.bf16.mxu0 0
    %1841 = vmatpush1.bf16.msra.mxu0 0
    %1842 = vmatprep.subr.bf16.mxu0 0
    %1843 = vmatpush1.bf16.msra.mxu0 0
    %1844 = vmatprep.subr.bf16.mxu0 0
    %1845 = vmatpush1.bf16.msra.mxu0 0
    %1846 = vmatprep.subr.bf16.mxu0 0
    %1847 = vmatpush1.bf16.msra.mxu0 0
    %1848 = vmatprep.subr.bf16.mxu0 0
    %1849 = vmatpush1.bf16.msra.mxu0 0
    %1850 = vmatprep.subr.bf16.mxu0 0
    %1851 = vmatpush1.bf16.msra.mxu0 0
    %1852 = vmatprep.mubr.bf16.mxu0 0
    %1853 = vmatmul.mubr.bf16.gmra.mrb[0].mxu0 %v1777
    %v1854 = vpop.f32.mrb[0].mxu0
    %v1855 = vadd.f32 0.0, %v1854
    %v1856 = vpop.f32.mrb[0].mxu0
    %v1857 = vpop.f32.mrb[0].mxu0
    %v1858 = vpop.f32.mrb[0].mxu0
    %1859 = vdwg.mxu0
    %v1860 = vadd.f32 %v1772, %v1814
    %v1861 = vadd.f32 %v1773, %v1816
    %v1862 = vmul.f32 %v1860, 0.5
    %v1863 = vmul.f32 %v1861, 0.5
    %v1864 = vtanh.pop %v1862
    %v1865 = vtanh.pop %v1863
    %v1866 = vmul.f32 %v1864, 0.5
    %v1867 = vmul.f32 %v1865, 0.5
    %v1868 = vadd.f32 %v1866, 0.5
    %v1869 = vadd.f32 %v1867, 0.5
    %v1870 = vadd.f32 %v1855, %v1271
    %v1871 = vmul.f32 %v1868, %v1870
    %v1872 = vadd.f32 %v1774, %v1871
    %v1873 = vtanh.pop %v1872
    %v1874 = vsub.f32 %v1760, %v1873
    %v1875 = vmul.f32 %v1869, %v1874
    %v1876 = vadd.f32 %v1873, %v1875
    %v1877 = vtanh.pop %v1876
    %s1878 = scalar_lea.vmem %s6, 2
    %v1879 = vld [vmem:[%s1878] sm:$0x1]
    %v1881 = vlaneseq
    %v1882 = vshrl.u32 %v1881, 7
    %v1883 = vsub.s32 0, %v1882
    %v1884 = vrot.slane %v1879, %v1883
    %v1886 = vmul.f32 %v1877, %v1884
    %v1887 = vadd.f32 %v1771, %v1886
    %v1888 = vld [vmem:[%s336] sm:$0xff]
    %v1889 = vld [vmem:[%s336 + $0x8] sm:$0xff]
    %v1890 = vld [vmem:[%s336 + $0x10] sm:$0xff]
    %v1891 = vpack.c.bf16 %v1876, %v1876
    %v1893 = vsel %vm174, %v1891, 0
    %1895 = vmatprep.subr.bf16.mxu0 %v1534
    %1896 = vmatpush1.bf16.msra.mxu0 %v1533
    %1897 = vmatprep.subr.bf16.mxu0 %v1537
    %1898 = vmatpush1.bf16.msra.mxu0 %v1536
    %1899 = vmatprep.subr.bf16.mxu0 0
    %1900 = vmatpush1.bf16.msra.mxu0 0
    %1901 = vmatprep.subr.bf16.mxu0 0
    %1902 = vmatpush1.bf16.msra.mxu0 0
    %1903 = vmatprep.subr.bf16.mxu0 0
    %1904 = vmatpush1.bf16.msra.mxu0 0
    %1905 = vmatprep.subr.bf16.mxu0 0
    %1906 = vmatpush1.bf16.msra.mxu0 0
    %1907 = vmatprep.subr.bf16.mxu0 0
    %1908 = vmatpush1.bf16.msra.mxu0 0
    %1909 = vmatprep.subr.bf16.mxu0 0
    %1910 = vmatpush1.bf16.msra.mxu0 0
    %1911 = vmatprep.subr.bf16.mxu0 0
    %1912 = vmatpush1.bf16.msra.mxu0 0
    %1913 = vmatprep.subr.bf16.mxu0 0
    %1914 = vmatpush1.bf16.msra.mxu0 0
    %1915 = vmatprep.subr.bf16.mxu0 0
    %1916 = vmatpush1.bf16.msra.mxu0 0
    %1917 = vmatprep.subr.bf16.mxu0 0
    %1918 = vmatpush1.bf16.msra.mxu0 0
    %1919 = vmatprep.subr.bf16.mxu0 0
    %1920 = vmatpush1.bf16.msra.mxu0 0
    %1921 = vmatprep.subr.bf16.mxu0 0
    %1922 = vmatpush1.bf16.msra.mxu0 0
    %1923 = vmatprep.subr.bf16.mxu0 0
    %1924 = vmatpush1.bf16.msra.mxu0 0
    %1925 = vmatprep.subr.bf16.mxu0 0
    %1926 = vmatpush1.bf16.msra.mxu0 0
    %1927 = vmatprep.mubr.bf16.mxu0 0
    %1928 = vmatmul.mubr.bf16.gmra.mrb[0].mxu0 %v1893
    %v1929 = vpop.f32.mrb[0].mxu0
    %v1930 = vadd.f32 0.0, %v1929
    %v1931 = vpop.f32.mrb[0].mxu0
    %v1932 = vadd.f32 0.0, %v1931
    %v1933 = vpop.f32.mrb[0].mxu0
    %v1934 = vpop.f32.mrb[0].mxu0
    %1935 = vdwg.mxu0
    %1936 = vmatprep.subr.bf16.mxu0 0
    %1937 = vmatpush1.bf16.msra.mxu0 %v1535
    %1938 = vmatprep.subr.bf16.mxu0 0
    %1939 = vmatpush1.bf16.msra.mxu0 %v1538
    %1940 = vmatprep.subr.bf16.mxu0 0
    %1941 = vmatpush1.bf16.msra.mxu0 0
    %1942 = vmatprep.subr.bf16.mxu0 0
    %1943 = vmatpush1.bf16.msra.mxu0 0
    %1944 = vmatprep.subr.bf16.mxu0 0
    %1945 = vmatpush1.bf16.msra.mxu0 0
    %1946 = vmatprep.subr.bf16.mxu0 0
    %1947 = vmatpush1.bf16.msra.mxu0 0
    %1948 = vmatprep.subr.bf16.mxu0 0
    %1949 = vmatpush1.bf16.msra.mxu0 0
    %1950 = vmatprep.subr.bf16.mxu0 0
    %1951 = vmatpush1.bf16.msra.mxu0 0
    %1952 = vmatprep.subr.bf16.mxu0 0
    %1953 = vmatpush1.bf16.msra.mxu0 0
    %1954 = vmatprep.subr.bf16.mxu0 0
    %1955 = vmatpush1.bf16.msra.mxu0 0
    %1956 = vmatprep.subr.bf16.mxu0 0
    %1957 = vmatpush1.bf16.msra.mxu0 0
    %1958 = vmatprep.subr.bf16.mxu0 0
    %1959 = vmatpush1.bf16.msra.mxu0 0
    %1960 = vmatprep.subr.bf16.mxu0 0
    %1961 = vmatpush1.bf16.msra.mxu0 0
    %1962 = vmatprep.subr.bf16.mxu0 0
    %1963 = vmatpush1.bf16.msra.mxu0 0
    %1964 = vmatprep.subr.bf16.mxu0 0
    %1965 = vmatpush1.bf16.msra.mxu0 0
    %1966 = vmatprep.subr.bf16.mxu0 0
    %1967 = vmatpush1.bf16.msra.mxu0 0
    %1968 = vmatprep.mubr.bf16.mxu0 0
    %1969 = vmatmul.mubr.bf16.gmra.mrb[0].mxu0 %v1893
    %v1970 = vpop.f32.mrb[0].mxu0
    %v1971 = vadd.f32 0.0, %v1970
    %v1972 = vpop.f32.mrb[0].mxu0
    %v1973 = vpop.f32.mrb[0].mxu0
    %v1974 = vpop.f32.mrb[0].mxu0
    %1975 = vdwg.mxu0
    %v1976 = vadd.f32 %v1888, %v1930
    %v1977 = vadd.f32 %v1889, %v1932
    %v1978 = vmul.f32 %v1976, 0.5
    %v1979 = vmul.f32 %v1977, 0.5
    %v1980 = vtanh.pop %v1978
    %v1981 = vtanh.pop %v1979
    %v1982 = vmul.f32 %v1980, 0.5
    %v1983 = vmul.f32 %v1981, 0.5
    %v1984 = vadd.f32 %v1982, 0.5
    %v1985 = vadd.f32 %v1983, 0.5
    %v1986 = vadd.f32 %v1971, %v1271
    %v1987 = vmul.f32 %v1984, %v1986
    %v1988 = vadd.f32 %v1890, %v1987
    %v1989 = vtanh.pop %v1988
    %v1990 = vsub.f32 %v1876, %v1989
    %v1991 = vmul.f32 %v1985, %v1990
    %v1992 = vadd.f32 %v1989, %v1991
    %v1993 = vtanh.pop %v1992
    %s1994 = scalar_lea.vmem %s6, 3
    %v1995 = vld [vmem:[%s1994] sm:$0x1]
    %v1997 = vlaneseq
    %v1998 = vshrl.u32 %v1997, 7
    %v1999 = vsub.s32 0, %v1998
    %v2000 = vrot.slane %v1995, %v1999
    %v2002 = vmul.f32 %v1993, %v2000
    %v2003 = vadd.f32 %v1887, %v2002
    %v2004 = vld [vmem:[%s340] sm:$0xff]
    %v2005 = vld [vmem:[%s340 + $0x8] sm:$0xff]
    %v2006 = vld [vmem:[%s340 + $0x10] sm:$0xff]
    %v2007 = vpack.c.bf16 %v1992, %v1992
    %v2009 = vsel %vm174, %v2007, 0
    %2011 = vmatprep.subr.bf16.mxu0 %v1534
    %2012 = vmatpush1.bf16.msra.mxu0 %v1533
    %2013 = vmatprep.subr.bf16.mxu0 %v1537
    %2014 = vmatpush1.bf16.msra.mxu0 %v1536
    %2015 = vmatprep.subr.bf16.mxu0 0
    %2016 = vmatpush1.bf16.msra.mxu0 0
    %2017 = vmatprep.subr.bf16.mxu0 0
    %2018 = vmatpush1.bf16.msra.mxu0 0
    %2019 = vmatprep.subr.bf16.mxu0 0
    %2020 = vmatpush1.bf16.msra.mxu0 0
    %2021 = vmatprep.subr.bf16.mxu0 0
    %2022 = vmatpush1.bf16.msra.mxu0 0
    %2023 = vmatprep.subr.bf16.mxu0 0
    %2024 = vmatpush1.bf16.msra.mxu0 0
    %2025 = vmatprep.subr.bf16.mxu0 0
    %2026 = vmatpush1.bf16.msra.mxu0 0
    %2027 = vmatprep.subr.bf16.mxu0 0
    %2028 = vmatpush1.bf16.msra.mxu0 0
    %2029 = vmatprep.subr.bf16.mxu0 0
    %2030 = vmatpush1.bf16.msra.mxu0 0
    %2031 = vmatprep.subr.bf16.mxu0 0
    %2032 = vmatpush1.bf16.msra.mxu0 0
    %2033 = vmatprep.subr.bf16.mxu0 0
    %2034 = vmatpush1.bf16.msra.mxu0 0
    %2035 = vmatprep.subr.bf16.mxu0 0
    %2036 = vmatpush1.bf16.msra.mxu0 0
    %2037 = vmatprep.subr.bf16.mxu0 0
    %2038 = vmatpush1.bf16.msra.mxu0 0
    %2039 = vmatprep.subr.bf16.mxu0 0
    %2040 = vmatpush1.bf16.msra.mxu0 0
    %2041 = vmatprep.subr.bf16.mxu0 0
    %2042 = vmatpush1.bf16.msra.mxu0 0
    %2043 = vmatprep.mubr.bf16.mxu0 0
    %2044 = vmatmul.mubr.bf16.gmra.mrb[0].mxu0 %v2009
    %v2045 = vpop.f32.mrb[0].mxu0
    %v2046 = vadd.f32 0.0, %v2045
    %v2047 = vpop.f32.mrb[0].mxu0
    %v2048 = vadd.f32 0.0, %v2047
    %v2049 = vpop.f32.mrb[0].mxu0
    %v2050 = vpop.f32.mrb[0].mxu0
    %2051 = vdwg.mxu0
    %2052 = vmatprep.subr.bf16.mxu0 0
    %2053 = vmatpush1.bf16.msra.mxu0 %v1535
    %2054 = vmatprep.subr.bf16.mxu0 0
    %2055 = vmatpush1.bf16.msra.mxu0 %v1538
    %2056 = vmatprep.subr.bf16.mxu0 0
    %2057 = vmatpush1.bf16.msra.mxu0 0
    %2058 = vmatprep.subr.bf16.mxu0 0
    %2059 = vmatpush1.bf16.msra.mxu0 0
    %2060 = vmatprep.subr.bf16.mxu0 0
    %2061 = vmatpush1.bf16.msra.mxu0 0
    %2062 = vmatprep.subr.bf16.mxu0 0
    %2063 = vmatpush1.bf16.msra.mxu0 0
    %2064 = vmatprep.subr.bf16.mxu0 0
    %2065 = vmatpush1.bf16.msra.mxu0 0
    %2066 = vmatprep.subr.bf16.mxu0 0
    %2067 = vmatpush1.bf16.msra.mxu0 0
    %2068 = vmatprep.subr.bf16.mxu0 0
    %2069 = vmatpush1.bf16.msra.mxu0 0
    %2070 = vmatprep.subr.bf16.mxu0 0
    %2071 = vmatpush1.bf16.msra.mxu0 0
    %2072 = vmatprep.subr.bf16.mxu0 0
    %2073 = vmatpush1.bf16.msra.mxu0 0
    %2074 = vmatprep.subr.bf16.mxu0 0
    %2075 = vmatpush1.bf16.msra.mxu0 0
    %2076 = vmatprep.subr.bf16.mxu0 0
    %2077 = vmatpush1.bf16.msra.mxu0 0
    %2078 = vmatprep.subr.bf16.mxu0 0
    %2079 = vmatpush1.bf16.msra.mxu0 0
    %2080 = vmatprep.subr.bf16.mxu0 0
    %2081 = vmatpush1.bf16.msra.mxu0 0
    %2082 = vmatprep.subr.bf16.mxu0 0
    %2083 = vmatpush1.bf16.msra.mxu0 0
    %2084 = vmatprep.mubr.bf16.mxu0 0
    %2085 = vmatmul.mubr.bf16.gmra.mrb[0].mxu0 %v2009
    %v2086 = vpop.f32.mrb[0].mxu0
    %v2087 = vadd.f32 0.0, %v2086
    %v2088 = vpop.f32.mrb[0].mxu0
    %v2089 = vpop.f32.mrb[0].mxu0
    %v2090 = vpop.f32.mrb[0].mxu0
    %2091 = vdwg.mxu0
    %v2092 = vadd.f32 %v2004, %v2046
    %v2093 = vadd.f32 %v2005, %v2048
    %v2094 = vmul.f32 %v2092, 0.5
    %v2095 = vmul.f32 %v2093, 0.5
    %v2096 = vtanh.pop %v2094
    %v2097 = vtanh.pop %v2095
    %v2098 = vmul.f32 %v2096, 0.5
    %v2099 = vmul.f32 %v2097, 0.5
    %v2100 = vadd.f32 %v2098, 0.5
    %v2101 = vadd.f32 %v2099, 0.5
    %v2102 = vadd.f32 %v2087, %v1271
    %v2103 = vmul.f32 %v2100, %v2102
    %v2104 = vadd.f32 %v2006, %v2103
    %v2105 = vtanh.pop %v2104
    %v2106 = vsub.f32 %v1992, %v2105
    %v2107 = vmul.f32 %v2101, %v2106
    %v2108 = vadd.f32 %v2105, %v2107
    %v2109 = vtanh.pop %v2108
    %s2110 = scalar_lea.vmem %s6, 4
    %v2111 = vld [vmem:[%s2110] sm:$0x1]
    %v2113 = vlaneseq
    %v2114 = vshrl.u32 %v2113, 7
    %v2115 = vsub.s32 0, %v2114
    %v2116 = vrot.slane %v2111, %v2115
    %v2118 = vmul.f32 %v2109, %v2116
    %v2119 = vadd.f32 %v2003, %v2118
    %v2120 = vld [vmem:[%s344] sm:$0xff]
    %v2121 = vld [vmem:[%s344 + $0x8] sm:$0xff]
    %v2122 = vld [vmem:[%s344 + $0x10] sm:$0xff]
    %v2123 = vpack.c.bf16 %v2108, %v2108
    %v2125 = vsel %vm174, %v2123, 0
    %2127 = vmatprep.subr.bf16.mxu0 %v1534
    %2128 = vmatpush1.bf16.msra.mxu0 %v1533
    %2129 = vmatprep.subr.bf16.mxu0 %v1537
    %2130 = vmatpush1.bf16.msra.mxu0 %v1536
    %2131 = vmatprep.subr.bf16.mxu0 0
    %2132 = vmatpush1.bf16.msra.mxu0 0
    %2133 = vmatprep.subr.bf16.mxu0 0
    %2134 = vmatpush1.bf16.msra.mxu0 0
    %2135 = vmatprep.subr.bf16.mxu0 0
    %2136 = vmatpush1.bf16.msra.mxu0 0
    %2137 = vmatprep.subr.bf16.mxu0 0
    %2138 = vmatpush1.bf16.msra.mxu0 0
    %2139 = vmatprep.subr.bf16.mxu0 0
    %2140 = vmatpush1.bf16.msra.mxu0 0
    %2141 = vmatprep.subr.bf16.mxu0 0
    %2142 = vmatpush1.bf16.msra.mxu0 0
    %2143 = vmatprep.subr.bf16.mxu0 0
    %2144 = vmatpush1.bf16.msra.mxu0 0
    %2145 = vmatprep.subr.bf16.mxu0 0
    %2146 = vmatpush1.bf16.msra.mxu0 0
    %2147 = vmatprep.subr.bf16.mxu0 0
    %2148 = vmatpush1.bf16.msra.mxu0 0
    %2149 = vmatprep.subr.bf16.mxu0 0
    %2150 = vmatpush1.bf16.msra.mxu0 0
    %2151 = vmatprep.subr.bf16.mxu0 0
    %2152 = vmatpush1.bf16.msra.mxu0 0
    %2153 = vmatprep.subr.bf16.mxu0 0
    %2154 = vmatpush1.bf16.msra.mxu0 0
    %2155 = vmatprep.subr.bf16.mxu0 0
    %2156 = vmatpush1.bf16.msra.mxu0 0
    %2157 = vmatprep.subr.bf16.mxu0 0
    %2158 = vmatpush1.bf16.msra.mxu0 0
    %2159 = vmatprep.mubr.bf16.mxu0 0
    %2160 = vmatmul.mubr.bf16.gmra.mrb[0].mxu0 %v2125
    %v2161 = vpop.f32.mrb[0].mxu0
    %v2162 = vadd.f32 0.0, %v2161
    %v2163 = vpop.f32.mrb[0].mxu0
    %v2164 = vadd.f32 0.0, %v2163
    %v2165 = vpop.f32.mrb[0].mxu0
    %v2166 = vpop.f32.mrb[0].mxu0
    %2167 = vdwg.mxu0
    %2168 = vmatprep.subr.bf16.mxu0 0
    %2169 = vmatpush1.bf16.msra.mxu0 %v1535
    %2170 = vmatprep.subr.bf16.mxu0 0
    %2171 = vmatpush1.bf16.msra.mxu0 %v1538
    %2172 = vmatprep.subr.bf16.mxu0 0
    %2173 = vmatpush1.bf16.msra.mxu0 0
    %2174 = vmatprep.subr.bf16.mxu0 0
    %2175 = vmatpush1.bf16.msra.mxu0 0
    %2176 = vmatprep.subr.bf16.mxu0 0
    %2177 = vmatpush1.bf16.msra.mxu0 0
    %2178 = vmatprep.subr.bf16.mxu0 0
    %2179 = vmatpush1.bf16.msra.mxu0 0
    %2180 = vmatprep.subr.bf16.mxu0 0
    %2181 = vmatpush1.bf16.msra.mxu0 0
    %2182 = vmatprep.subr.bf16.mxu0 0
    %2183 = vmatpush1.bf16.msra.mxu0 0
    %2184 = vmatprep.subr.bf16.mxu0 0
    %2185 = vmatpush1.bf16.msra.mxu0 0
    %2186 = vmatprep.subr.bf16.mxu0 0
    %2187 = vmatpush1.bf16.msra.mxu0 0
    %2188 = vmatprep.subr.bf16.mxu0 0
    %2189 = vmatpush1.bf16.msra.mxu0 0
    %2190 = vmatprep.subr.bf16.mxu0 0
    %2191 = vmatpush1.bf16.msra.mxu0 0
    %2192 = vmatprep.subr.bf16.mxu0 0
    %2193 = vmatpush1.bf16.msra.mxu0 0
    %2194 = vmatprep.subr.bf16.mxu0 0
    %2195 = vmatpush1.bf16.msra.mxu0 0
    %2196 = vmatprep.subr.bf16.mxu0 0
    %2197 = vmatpush1.bf16.msra.mxu0 0
    %2198 = vmatprep.subr.bf16.mxu0 0
    %2199 = vmatpush1.bf16.msra.mxu0 0
    %2200 = vmatprep.mubr.bf16.mxu0 0
    %2201 = vmatmul.mubr.bf16.gmra.mrb[0].mxu0 %v2125
    %v2202 = vpop.f32.mrb[0].mxu0
    %v2203 = vadd.f32 0.0, %v2202
    %v2204 = vpop.f32.mrb[0].mxu0
    %v2205 = vpop.f32.mrb[0].mxu0
    %v2206 = vpop.f32.mrb[0].mxu0
    %2207 = vdwg.mxu0
    %v2208 = vadd.f32 %v2120, %v2162
    %v2209 = vadd.f32 %v2121, %v2164
    %v2210 = vmul.f32 %v2208, 0.5
    %v2211 = vmul.f32 %v2209, 0.5
    %v2212 = vtanh.pop %v2210
    %v2213 = vtanh.pop %v2211
    %v2214 = vmul.f32 %v2212, 0.5
    %v2215 = vmul.f32 %v2213, 0.5
    %v2216 = vadd.f32 %v2214, 0.5
    %v2217 = vadd.f32 %v2215, 0.5
    %v2218 = vadd.f32 %v2203, %v1271
    %v2219 = vmul.f32 %v2216, %v2218
    %v2220 = vadd.f32 %v2122, %v2219
    %v2221 = vtanh.pop %v2220
    %v2222 = vsub.f32 %v2108, %v2221
    %v2223 = vmul.f32 %v2217, %v2222
    %v2224 = vadd.f32 %v2221, %v2223
    %v2225 = vtanh.pop %v2224
    %s2226 = scalar_lea.vmem %s6, 5
    %v2227 = vld [vmem:[%s2226] sm:$0x1]
    %v2229 = vlaneseq
    %v2230 = vshrl.u32 %v2229, 7
    %v2231 = vsub.s32 0, %v2230
    %v2232 = vrot.slane %v2227, %v2231
    %v2234 = vmul.f32 %v2225, %v2232
    %v2235 = vadd.f32 %v2119, %v2234
    %v2236 = vld [vmem:[%s348] sm:$0xff]
    %v2237 = vld [vmem:[%s348 + $0x8] sm:$0xff]
    %v2238 = vld [vmem:[%s348 + $0x10] sm:$0xff]
    %v2239 = vpack.c.bf16 %v2224, %v2224
    %v2241 = vsel %vm174, %v2239, 0
    %2243 = vmatprep.subr.bf16.mxu0 %v1534
    %2244 = vmatpush1.bf16.msra.mxu0 %v1533
    %2245 = vmatprep.subr.bf16.mxu0 %v1537
    %2246 = vmatpush1.bf16.msra.mxu0 %v1536
    %2247 = vmatprep.subr.bf16.mxu0 0
    %2248 = vmatpush1.bf16.msra.mxu0 0
    %2249 = vmatprep.subr.bf16.mxu0 0
    %2250 = vmatpush1.bf16.msra.mxu0 0
    %2251 = vmatprep.subr.bf16.mxu0 0
    %2252 = vmatpush1.bf16.msra.mxu0 0
    %2253 = vmatprep.subr.bf16.mxu0 0
    %2254 = vmatpush1.bf16.msra.mxu0 0
    %2255 = vmatprep.subr.bf16.mxu0 0
    %2256 = vmatpush1.bf16.msra.mxu0 0
    %2257 = vmatprep.subr.bf16.mxu0 0
    %2258 = vmatpush1.bf16.msra.mxu0 0
    %2259 = vmatprep.subr.bf16.mxu0 0
    %2260 = vmatpush1.bf16.msra.mxu0 0
    %2261 = vmatprep.subr.bf16.mxu0 0
    %2262 = vmatpush1.bf16.msra.mxu0 0
    %2263 = vmatprep.subr.bf16.mxu0 0
    %2264 = vmatpush1.bf16.msra.mxu0 0
    %2265 = vmatprep.subr.bf16.mxu0 0
    %2266 = vmatpush1.bf16.msra.mxu0 0
    %2267 = vmatprep.subr.bf16.mxu0 0
    %2268 = vmatpush1.bf16.msra.mxu0 0
    %2269 = vmatprep.subr.bf16.mxu0 0
    %2270 = vmatpush1.bf16.msra.mxu0 0
    %2271 = vmatprep.subr.bf16.mxu0 0
    %2272 = vmatpush1.bf16.msra.mxu0 0
    %2273 = vmatprep.subr.bf16.mxu0 0
    %2274 = vmatpush1.bf16.msra.mxu0 0
    %2275 = vmatprep.mubr.bf16.mxu0 0
    %2276 = vmatmul.mubr.bf16.gmra.mrb[0].mxu0 %v2241
    %v2277 = vpop.f32.mrb[0].mxu0
    %v2278 = vadd.f32 0.0, %v2277
    %v2279 = vpop.f32.mrb[0].mxu0
    %v2280 = vadd.f32 0.0, %v2279
    %v2281 = vpop.f32.mrb[0].mxu0
    %v2282 = vpop.f32.mrb[0].mxu0
    %2283 = vdwg.mxu0
    %2284 = vmatprep.subr.bf16.mxu0 0
    %2285 = vmatpush1.bf16.msra.mxu0 %v1535
    %2286 = vmatprep.subr.bf16.mxu0 0
    %2287 = vmatpush1.bf16.msra.mxu0 %v1538
    %2288 = vmatprep.subr.bf16.mxu0 0
    %2289 = vmatpush1.bf16.msra.mxu0 0
    %2290 = vmatprep.subr.bf16.mxu0 0
    %2291 = vmatpush1.bf16.msra.mxu0 0
    %2292 = vmatprep.subr.bf16.mxu0 0
    %2293 = vmatpush1.bf16.msra.mxu0 0
    %2294 = vmatprep.subr.bf16.mxu0 0
    %2295 = vmatpush1.bf16.msra.mxu0 0
    %2296 = vmatprep.subr.bf16.mxu0 0
    %2297 = vmatpush1.bf16.msra.mxu0 0
    %2298 = vmatprep.subr.bf16.mxu0 0
    %2299 = vmatpush1.bf16.msra.mxu0 0
    %2300 = vmatprep.subr.bf16.mxu0 0
    %2301 = vmatpush1.bf16.msra.mxu0 0
    %2302 = vmatprep.subr.bf16.mxu0 0
    %2303 = vmatpush1.bf16.msra.mxu0 0
    %2304 = vmatprep.subr.bf16.mxu0 0
    %2305 = vmatpush1.bf16.msra.mxu0 0
    %2306 = vmatprep.subr.bf16.mxu0 0
    %2307 = vmatpush1.bf16.msra.mxu0 0
    %2308 = vmatprep.subr.bf16.mxu0 0
    %2309 = vmatpush1.bf16.msra.mxu0 0
    %2310 = vmatprep.subr.bf16.mxu0 0
    %2311 = vmatpush1.bf16.msra.mxu0 0
    %2312 = vmatprep.subr.bf16.mxu0 0
    %2313 = vmatpush1.bf16.msra.mxu0 0
    %2314 = vmatprep.subr.bf16.mxu0 0
    %2315 = vmatpush1.bf16.msra.mxu0 0
    %2316 = vmatprep.mubr.bf16.mxu0 0
    %2317 = vmatmul.mubr.bf16.gmra.mrb[0].mxu0 %v2241
    %v2318 = vpop.f32.mrb[0].mxu0
    %v2319 = vadd.f32 0.0, %v2318
    %v2320 = vpop.f32.mrb[0].mxu0
    %v2321 = vpop.f32.mrb[0].mxu0
    %v2322 = vpop.f32.mrb[0].mxu0
    %2323 = vdwg.mxu0
    %v2324 = vadd.f32 %v2236, %v2278
    %v2325 = vadd.f32 %v2237, %v2280
    %v2326 = vmul.f32 %v2324, 0.5
    %v2327 = vmul.f32 %v2325, 0.5
    %v2328 = vtanh.pop %v2326
    %v2329 = vtanh.pop %v2327
    %v2330 = vmul.f32 %v2328, 0.5
    %v2331 = vmul.f32 %v2329, 0.5
    %v2332 = vadd.f32 %v2330, 0.5
    %v2333 = vadd.f32 %v2331, 0.5
    %v2334 = vadd.f32 %v2319, %v1271
    %v2335 = vmul.f32 %v2332, %v2334
    %v2336 = vadd.f32 %v2238, %v2335
    %v2337 = vtanh.pop %v2336
    %v2338 = vsub.f32 %v2224, %v2337
    %v2339 = vmul.f32 %v2333, %v2338
    %v2340 = vadd.f32 %v2337, %v2339
    %v2341 = vtanh.pop %v2340
    %s2342 = scalar_lea.vmem %s6, 6
    %v2343 = vld [vmem:[%s2342] sm:$0x1]
    %v2345 = vlaneseq
    %v2346 = vshrl.u32 %v2345, 7
    %v2347 = vsub.s32 0, %v2346
    %v2348 = vrot.slane %v2343, %v2347
    %v2350 = vmul.f32 %v2341, %v2348
    %v2351 = vadd.f32 %v2235, %v2350
    %v2352 = vld [vmem:[%s352] sm:$0xff]
    %v2353 = vld [vmem:[%s352 + $0x8] sm:$0xff]
    %v2354 = vld [vmem:[%s352 + $0x10] sm:$0xff]
    %v2355 = vpack.c.bf16 %v2340, %v2340
    %v2357 = vsel %vm174, %v2355, 0
    %2359 = vmatprep.subr.bf16.mxu0 %v1534
    %2360 = vmatpush1.bf16.msra.mxu0 %v1533
    %2361 = vmatprep.subr.bf16.mxu0 %v1537
    %2362 = vmatpush1.bf16.msra.mxu0 %v1536
    %2363 = vmatprep.subr.bf16.mxu0 0
    %2364 = vmatpush1.bf16.msra.mxu0 0
    %2365 = vmatprep.subr.bf16.mxu0 0
    %2366 = vmatpush1.bf16.msra.mxu0 0
    %2367 = vmatprep.subr.bf16.mxu0 0
    %2368 = vmatpush1.bf16.msra.mxu0 0
    %2369 = vmatprep.subr.bf16.mxu0 0
    %2370 = vmatpush1.bf16.msra.mxu0 0
    %2371 = vmatprep.subr.bf16.mxu0 0
    %2372 = vmatpush1.bf16.msra.mxu0 0
    %2373 = vmatprep.subr.bf16.mxu0 0
    %2374 = vmatpush1.bf16.msra.mxu0 0
    %2375 = vmatprep.subr.bf16.mxu0 0
    %2376 = vmatpush1.bf16.msra.mxu0 0
    %2377 = vmatprep.subr.bf16.mxu0 0
    %2378 = vmatpush1.bf16.msra.mxu0 0
    %2379 = vmatprep.subr.bf16.mxu0 0
    %2380 = vmatpush1.bf16.msra.mxu0 0
    %2381 = vmatprep.subr.bf16.mxu0 0
    %2382 = vmatpush1.bf16.msra.mxu0 0
    %2383 = vmatprep.subr.bf16.mxu0 0
    %2384 = vmatpush1.bf16.msra.mxu0 0
    %2385 = vmatprep.subr.bf16.mxu0 0
    %2386 = vmatpush1.bf16.msra.mxu0 0
    %2387 = vmatprep.subr.bf16.mxu0 0
    %2388 = vmatpush1.bf16.msra.mxu0 0
    %2389 = vmatprep.subr.bf16.mxu0 0
    %2390 = vmatpush1.bf16.msra.mxu0 0
    %2391 = vmatprep.mubr.bf16.mxu0 0
    %2392 = vmatmul.mubr.bf16.gmra.mrb[0].mxu0 %v2357
    %v2393 = vpop.f32.mrb[0].mxu0
    %v2394 = vadd.f32 0.0, %v2393
    %v2395 = vpop.f32.mrb[0].mxu0
    %v2396 = vadd.f32 0.0, %v2395
    %v2397 = vpop.f32.mrb[0].mxu0
    %v2398 = vpop.f32.mrb[0].mxu0
    %2399 = vdwg.mxu0
    %2400 = vmatprep.subr.bf16.mxu0 0
    %2401 = vmatpush1.bf16.msra.mxu0 %v1535
    %2402 = vmatprep.subr.bf16.mxu0 0
    %2403 = vmatpush1.bf16.msra.mxu0 %v1538
    %2404 = vmatprep.subr.bf16.mxu0 0
    %2405 = vmatpush1.bf16.msra.mxu0 0
    %2406 = vmatprep.subr.bf16.mxu0 0
    %2407 = vmatpush1.bf16.msra.mxu0 0
    %2408 = vmatprep.subr.bf16.mxu0 0
    %2409 = vmatpush1.bf16.msra.mxu0 0
    %2410 = vmatprep.subr.bf16.mxu0 0
    %2411 = vmatpush1.bf16.msra.mxu0 0
    %2412 = vmatprep.subr.bf16.mxu0 0
    %2413 = vmatpush1.bf16.msra.mxu0 0
    %2414 = vmatprep.subr.bf16.mxu0 0
    %2415 = vmatpush1.bf16.msra.mxu0 0
    %2416 = vmatprep.subr.bf16.mxu0 0
    %2417 = vmatpush1.bf16.msra.mxu0 0
    %2418 = vmatprep.subr.bf16.mxu0 0
    %2419 = vmatpush1.bf16.msra.mxu0 0
    %2420 = vmatprep.subr.bf16.mxu0 0
    %2421 = vmatpush1.bf16.msra.mxu0 0
    %2422 = vmatprep.subr.bf16.mxu0 0
    %2423 = vmatpush1.bf16.msra.mxu0 0
    %2424 = vmatprep.subr.bf16.mxu0 0
    %2425 = vmatpush1.bf16.msra.mxu0 0
    %2426 = vmatprep.subr.bf16.mxu0 0
    %2427 = vmatpush1.bf16.msra.mxu0 0
    %2428 = vmatprep.subr.bf16.mxu0 0
    %2429 = vmatpush1.bf16.msra.mxu0 0
    %2430 = vmatprep.subr.bf16.mxu0 0
    %2431 = vmatpush1.bf16.msra.mxu0 0
    %2432 = vmatprep.mubr.bf16.mxu0 0
    %2433 = vmatmul.mubr.bf16.gmra.mrb[0].mxu0 %v2357
    %v2434 = vpop.f32.mrb[0].mxu0
    %v2435 = vadd.f32 0.0, %v2434
    %v2436 = vpop.f32.mrb[0].mxu0
    %v2437 = vpop.f32.mrb[0].mxu0
    %v2438 = vpop.f32.mrb[0].mxu0
    %2439 = vdwg.mxu0
    %v2440 = vadd.f32 %v2352, %v2394
    %v2441 = vadd.f32 %v2353, %v2396
    %v2442 = vmul.f32 %v2440, 0.5
    %v2443 = vmul.f32 %v2441, 0.5
    %v2444 = vtanh.pop %v2442
    %v2445 = vtanh.pop %v2443
    %v2446 = vmul.f32 %v2444, 0.5
    %v2447 = vmul.f32 %v2445, 0.5
    %v2448 = vadd.f32 %v2446, 0.5
    %v2449 = vadd.f32 %v2447, 0.5
    %v2450 = vadd.f32 %v2435, %v1271
    %v2451 = vmul.f32 %v2448, %v2450
    %v2452 = vadd.f32 %v2354, %v2451
    %v2453 = vtanh.pop %v2452
    %v2454 = vsub.f32 %v2340, %v2453
    %v2455 = vmul.f32 %v2449, %v2454
    %v2456 = vadd.f32 %v2453, %v2455
    %v2457 = vtanh.pop %v2456
    %s2458 = scalar_lea.vmem %s6, 7
    %v2459 = vld [vmem:[%s2458] sm:$0x1]
    %v2461 = vlaneseq
    %v2462 = vshrl.u32 %v2461, 7
    %v2463 = vsub.s32 0, %v2462
    %v2464 = vrot.slane %v2459, %v2463
    %v2466 = vmul.f32 %v2457, %v2464
    %v2467 = vadd.f32 %v2351, %v2466
    %s2468 = scalar_lea.vmem [#allocation13], 8
    %2469 = vst.msk [vmem:[%s2468] sm:$0xff] %vm174, %v2456
    %v2470 = vsel %vm174, %v2467, 0.0
    %2471 = vadd.xlane.f32.xlu0 %v2470
    %v2472 = vpop.xlane.xlu0 %2471
    %v2473 = vld [vmem:[#allocation4] sm:$0x1]
    %v2475 = vlaneseq
    %v2476 = vshrl.u32 %v2475, 7
    %v2477 = vsub.s32 0, %v2476
    %v2478 = vrot.slane %v2473, %v2477
    %v2480 = vadd.f32 %v2472, %v2478
    %vm2481 = vcmask 7168
    %2482 = vst.msk [vmem:[%s8] sm:$0xff] %vm2481, %v2480
    // Predicated region
    $region50: #{tpu_custom_call.1} parent=1 // pred_check
      _
    $region51: #{tpu_custom_call.1} parent=1 // pred_check_branch
      %2484 = sbr.rel (0) target = $region53
    $region52: #{tpu_custom_call.1} parent=1 // pred_region
      _
    $region53: #{tpu_custom_call.1} parent=1 // pred_fallthru
      _
    // Predicated region
    $region54: #{tpu_custom_call.1} parent=1 // pred_check
      _
    $region55: #{tpu_custom_call.1} parent=1 // pred_check_branch
      %2486 = sbr.rel (0) target = $region57
    $region56: #{tpu_custom_call.1} parent=1 // pred_region
      %s2488 = ssub.s32 256, 256
      %2489 = vsyncadd [#allocation7], %s2488
      %s2490 = sshll.u32 [#allocation13], 4
      %s2491 = int_to_ptr.vmem [resolvable:$true] %s2490
      %2496 = dma.vmem_to_hbm [thread:$0]  %s2491, 256, %s9, [#allocation7], 128, 128, 8
    $region57: #{tpu_custom_call.1} parent=1 // pred_fallthru
      _
    // Predicated region
    $region58: #{tpu_custom_call.1} parent=1 // pred_check
      _
    $region59: #{tpu_custom_call.1} parent=1 // pred_check_branch
      %2498 = sbr.rel (0) target = $region61
    $region60: #{tpu_custom_call.1} parent=1 // pred_region
      _
    $region61: #{tpu_custom_call.1} parent=1 // pred_fallthru
      _
    // Predicated region
    $region62: #{tpu_custom_call.1} parent=1 // pred_check
      _
    $region63: #{tpu_custom_call.1} parent=1 // pred_check_branch
      %2500 = sbr.rel (0) target = $region65
    $region64: #{tpu_custom_call.1} parent=1 // pred_region
      %2501 = dma.done [#allocation7], 256
    $region65: #{tpu_custom_call.1} parent=1 // pred_fallthru
      _
    %2502 = vsyncpa [#allocation6], 1
    %2503 = vsyncpa [#allocation9], 1
    %2504 = vsyncpa [#allocation12], 1
    %2505 = vsyncpa [#allocation7], 1

</llo_original>
